<compile_context>
chip_gen: v6e
topology: v6e:2x2x1
jax: 0.10.0
libtpu: 0.0.40
codegen_flags: <defaults>
</compile_context>

<pallas_src>
import functools
import math

import jax
import jax.numpy as jnp
from jax.experimental import pallas as pl
from jax.experimental.pallas import tpu as pltpu


def _round_up(x, m):
    return (x + m - 1) // m * m


# ---------------------------------------------------------------------------
# Kernel 1: per-node projection.   XW = X @ W_rel ;  XR = X @ W_root + b
# ---------------------------------------------------------------------------
def _project_kernel(x_ref, w_rel_ref, w_root_ref, b_ref, xw_ref, xr_ref):
    x = x_ref[...]
    xw_ref[...] = jnp.dot(x, w_rel_ref[...], preferred_element_type=jnp.float32)
    xr_ref[...] = (
        jnp.dot(x, w_root_ref[...], preferred_element_type=jnp.float32)
        + b_ref[...]
    )


# ---------------------------------------------------------------------------
# Kernel 2: tiled aggregation.  out = relu( A @ XW + XR )
#   grid = (rows // TM [parallel], cols // TK [reduction, "arbitrary"])
# ---------------------------------------------------------------------------
def _agg_relu_kernel(adj_ref, xw_ref, xr_ref, out_ref, acc_ref):
    k = pl.program_id(1)

    @pl.when(k == 0)
    def _():
        acc_ref[...] = jnp.zeros_like(acc_ref)

    adj = adj_ref[...].astype(jnp.float32)  # bf16 HBM stream -> exact f32 counts
    acc_ref[...] += jnp.dot(adj, xw_ref[...], preferred_element_type=jnp.float32)

    @pl.when(k == pl.num_programs(1) - 1)
    def _():
        out_ref[...] = jnp.maximum(acc_ref[...] + xr_ref[...], 0.0)


# ---------------------------------------------------------------------------
# One relu(GraphConv) layer on padded inputs.
# ---------------------------------------------------------------------------
def _graphconv_layer(adj_p, x_p, w_rel, w_root, b, *, tm, tk):
    n_pad, cin = x_p.shape
    cout = w_rel.shape[1]

    # ---- projection pass (row-tiled; weights resident via constant index_map)
    xw, xr = pl.pallas_call(
        _project_kernel,
        out_shape=(jax.ShapeDtypeStruct((n_pad, cout), jnp.float32),
                   jax.ShapeDtypeStruct((n_pad, cout), jnp.float32)),
        grid_spec=pltpu.PrefetchScalarGridSpec(
            num_scalar_prefetch=0,
            grid=(n_pad // tm,),
            in_specs=[
                pl.BlockSpec((tm, cin), lambda i: (i, 0)),
                pl.BlockSpec((cin, cout), lambda i: (0, 0)),   # resident
                pl.BlockSpec((cin, cout), lambda i: (0, 0)),   # resident
                pl.BlockSpec((1, cout), lambda i: (0, 0)),     # resident
            ],
            out_specs=[
                pl.BlockSpec((tm, cout), lambda i: (i, 0)),
                pl.BlockSpec((tm, cout), lambda i: (i, 0)),
            ],
        ),
        compiler_params=pltpu.CompilerParams(
            dimension_semantics=("parallel",)),
    )(x_p, w_rel, w_root, b)

    # ---- aggregation pass (streams adj tiles, accumulates over K) ----------
    out = pl.pallas_call(
        _agg_relu_kernel,
        out_shape=jax.ShapeDtypeStruct((n_pad, cout), jnp.float32),
        grid_spec=pltpu.PrefetchScalarGridSpec(
            num_scalar_prefetch=0,
            grid=(n_pad // tm, n_pad // tk),
            in_specs=[
                pl.BlockSpec((tm, tk), lambda i, k: (i, k)),    # adj tile (bf16)
                pl.BlockSpec((tk, cout), lambda i, k: (k, 0)),  # XW tile
                pl.BlockSpec((tm, cout), lambda i, k: (i, 0)),  # XR (resident over k)
            ],
            out_specs=pl.BlockSpec((tm, cout), lambda i, k: (i, 0)),
            scratch_shapes=[pltpu.VMEM((tm, cout), jnp.float32)],
        ),
        compiler_params=pltpu.CompilerParams(
            dimension_semantics=("parallel", "arbitrary")),
    )(adj_p, xw, xr)
    return out


# ---------------------------------------------------------------------------
# Full forward pass.
# ---------------------------------------------------------------------------
@functools.partial(jax.jit, static_argnames=("problem", "tm", "tk"))
def fae_graphconv_forward(x, adj, params, *, problem="Prediction", tm=128, tk=128):
    """x: [N, Cin] f32, adj: [N, N] f32 with A[i, j] = #edges j->i."""
    assert tm % 8 == 0 and tk % 128 == 0
    n, _ = x.shape
    n_pad = _round_up(n, math.lcm(tm, tk))

    x_p = jnp.pad(x.astype(jnp.float32), ((0, n_pad - n), (0, 0)))
    # bf16 adjacency stream: exact for edge multiplicities <= 256.
    adj_p = jnp.pad(adj, ((0, n_pad - n), (0, n_pad - n))).astype(jnp.bfloat16)

    h1 = _graphconv_layer(adj_p, x_p, params["w1_rel"], params["w1_root"],
                          params["b1"], tm=tm, tk=tk)
    if problem == "Prediction":
        h2 = _graphconv_layer(adj_p, h1, params["w2_rel"], params["w2_root"],
                              params["b2"], tm=tm, tk=tk)
        feats = h2[:n]
    else:
        feats = h1[:n]

    # Tiny final Linear stays in the wrapper so the Pallas outputs remain
    # lane-dense (a last-dim-1 kernel output would force masked partial stores).
    return feats @ params["w_lin"] + params["b_lin"]


# ---------------------------------------------------------------------------
# Pure-JAX reference mirroring the PyTorch forward.
# ---------------------------------------------------------------------------
def _reference_forward(x, adj, params, problem="Prediction"):
    agg1 = adj @ x
    h1 = jax.nn.relu(agg1 @ params["w1_rel"] + x @ params["w1_root"] + params["b1"])
    if problem == "Prediction":
        agg2 = adj @ h1
        h2 = jax.nn.relu(agg2 @ params["w2_rel"] + h1 @ params["w2_root"] + params["b2"])
        return h2 @ params["w_lin"] + params["b_lin"]
    return h1 @ params["w_lin"] + params["b_lin"]


def init_params(key, in_channels, problem="Prediction"):
    """Deterministic synthetic parameters. Weights stored [Cin, Cout] (torch W.T)."""
    ks = jax.random.split(key, 8)

    def lin(k, cin, cout, scale=0.1):
        return scale * jax.random.normal(k, (cin, cout), jnp.float32)

    p = {
        "w1_rel":  lin(ks[0], in_channels, 64),
        "w1_root": lin(ks[1], in_channels, 64),
        "b1":      0.01 * jax.random.normal(ks[2], (1, 64), jnp.float32),
    }
    if problem == "Prediction":
        p.update({
            "w2_rel":  lin(ks[3], 64, 32),
            "w2_root": lin(ks[4], 64, 32),
            "b2":      0.01 * jax.random.normal(ks[5], (1, 32), jnp.float32),
            "w_lin":   lin(ks[6], 32, 1),
            "b_lin":   0.01 * jax.random.normal(ks[7], (1, 1), jnp.float32),
        })
    else:
        p.update({
            "w_lin":   lin(ks[6], 64, in_channels),
            "b_lin":   0.01 * jax.random.normal(ks[7], (1, in_channels), jnp.float32),
        })
    return p


def edges_to_dense_adj(edge_index, num_nodes):
    """edge_index: [2, E] int32, row 0 = source j, row 1 = target i (PyG flow)."""
    src, dst = edge_index[0], edge_index[1]
    adj = jnp.zeros((num_nodes, num_nodes), jnp.float32)
    return adj.at[dst, src].add(1.0)


if __name__ == "__main__":
    key = jax.random.PRNGKey(0)
    k_x, k_e, k_p = jax.random.split(key, 3)

    num_nodes, in_channels, num_edges = 200, 8, 600

    x = jax.random.normal(k_x, (num_nodes, in_channels), jnp.float32)
    edge_index = jax.random.randint(k_e, (2, num_edges), 0, num_nodes, jnp.int32)
    adj = edges_to_dense_adj(edge_index, num_nodes)

    # --- 'Prediction' branch: GraphConv->relu->GraphConv(sum)->relu->Linear(32,1)
    params = init_params(k_p, in_channels, problem="Prediction")
    out = jax.block_until_ready(
        fae_graphconv_forward(x, adj, params, problem="Prediction"))
    ref = _reference_forward(x, adj, params, problem="Prediction")
    assert out.shape == (num_nodes, 1)
    assert jnp.allclose(out, ref, atol=1e-4, rtol=1e-4), "Prediction branch mismatch"

    # --- other branch: GraphConv->relu->Linear(64, Cin)
    params_r = init_params(k_p, in_channels, problem="Reconstruction")
    out_r = jax.block_until_ready(
        fae_graphconv_forward(x, adj, params_r, problem="Reconstruction"))
    ref_r = _reference_forward(x, adj, params_r, problem="Reconstruction")
    assert out_r.shape == (num_nodes, in_channels)
    assert jnp.allclose(out_r, ref_r, atol=1e-4, rtol=1e-4), "other branch mismatch"

    # TODO(synk): for genuinely sparse graphs (E << N^2), replace the dense-A matmul
    # with a CSR scalar-prefetch gather formulation (PrefetchScalarGridSpec).
    print("KERNEL_OK")
</pallas_src>

<mosaic_0001>
module attributes {stable_mosaic.version = 11 : i64} {
  func.func @_project_kernel(%arg0: i32, %arg1: memref<128x8xf32, #tpu.memory_space<vmem>>, %arg2: memref<8x64xf32, #tpu.memory_space<vmem>>, %arg3: memref<8x64xf32, #tpu.memory_space<vmem>>, %arg4: memref<1x64xf32, #tpu.memory_space<vmem>>, %arg5: memref<128x64xf32, #tpu.memory_space<vmem>>, %arg6: memref<128x64xf32, #tpu.memory_space<vmem>>) attributes {dimension_semantics = [#tpu.dimension_semantics<parallel>], iteration_bounds = array<i64: 2>, scalar_prefetch = 0 : i64, scratch_operands = 0 : i64, tpu.core_type = #tpu.core_type<tc>, window_params = [{transform_indices = @transform_0, window_bounds = array<i64: 128, 8>}, {pipeline_mode = #tpu.pipeline_mode<synchronous>, transform_indices = @transform_1, window_bounds = array<i64: 8, 64>}, {pipeline_mode = #tpu.pipeline_mode<synchronous>, transform_indices = @transform_2, window_bounds = array<i64: 8, 64>}, {pipeline_mode = #tpu.pipeline_mode<synchronous>, transform_indices = @transform_3, window_bounds = array<i64: 1, 64>}, {transform_indices = @transform_4, window_bounds = array<i64: 128, 64>}, {transform_indices = @transform_5, window_bounds = array<i64: 128, 64>}]} {
    %c0 = arith.constant 0 : index
    %c0_0 = arith.constant 0 : index
    %0 = vector.load %arg1[%c0, %c0_0] : memref<128x8xf32, #tpu.memory_space<vmem>>, vector<128x8xf32>
    %c0_1 = arith.constant 0 : index
    %c0_2 = arith.constant 0 : index
    %1 = vector.load %arg2[%c0_1, %c0_2] : memref<8x64xf32, #tpu.memory_space<vmem>>, vector<8x64xf32>
    %cst = arith.constant dense<0.000000e+00> : vector<128x64xf32>
    %2 = tpu.matmul %0, %1, %cst {dimension_numbers = #tpu.dot_dimension_numbers<[1], [0], [0], [1], [0, 0, 1, 1], [], []>} : vector<128x8xf32>, vector<8x64xf32>, vector<128x64xf32> -> vector<128x64xf32>
    %c0_3 = arith.constant 0 : index
    %c0_4 = arith.constant 0 : index
    %3 = vector.load %arg5[%c0_3, %c0_4] : memref<128x64xf32, #tpu.memory_space<vmem>>, vector<128x64xf32>
    tpu.vector_store %arg5[%c0_3, %c0_4], %2 {strides = array<i32>} : memref<128x64xf32, #tpu.memory_space<vmem>>, vector<128x64xf32>,
    %c0_5 = arith.constant 0 : index
    %c0_6 = arith.constant 0 : index
    %4 = vector.load %arg3[%c0_5, %c0_6] : memref<8x64xf32, #tpu.memory_space<vmem>>, vector<8x64xf32>
    %cst_7 = arith.constant dense<0.000000e+00> : vector<128x64xf32>
    %5 = tpu.matmul %0, %4, %cst_7 {dimension_numbers = #tpu.dot_dimension_numbers<[1], [0], [0], [1], [0, 0, 1, 1], [], []>} : vector<128x8xf32>, vector<8x64xf32>, vector<128x64xf32> -> vector<128x64xf32>
    %c0_8 = arith.constant 0 : index
    %c0_9 = arith.constant 0 : index
    %6 = vector.load %arg4[%c0_8, %c0_9] : memref<1x64xf32, #tpu.memory_space<vmem>>, vector<1x64xf32>
    %7 = vector.broadcast %6 : vector<1x64xf32> to vector<128x64xf32>
    %8 = arith.addf %5, %7 : vector<128x64xf32>
    %c0_10 = arith.constant 0 : index
    %c0_11 = arith.constant 0 : index
    %9 = vector.load %arg6[%c0_10, %c0_11] : memref<128x64xf32, #tpu.memory_space<vmem>>, vector<128x64xf32>
    tpu.vector_store %arg6[%c0_10, %c0_11], %8 {strides = array<i32>} : memref<128x64xf32, #tpu.memory_space<vmem>>, vector<128x64xf32>,
    return
  }
  func.func @transform_0(%arg0: i32) -> (i32, i32) {
    %c0_i32 = arith.constant 0 : i32
    %c0_i32_0 = arith.constant 0 : i32
    return %arg0, %c0_i32 : i32, i32
  }
  func.func @transform_1(%arg0: i32) -> (i32, i32) {
    %c0_i32 = arith.constant 0 : i32
    %c0_i32_0 = arith.constant 0 : i32
    %c0_i32_1 = arith.constant 0 : i32
    return %c0_i32, %c0_i32_0 : i32, i32
  }
  func.func @transform_2(%arg0: i32) -> (i32, i32) {
    %c0_i32 = arith.constant 0 : i32
    %c0_i32_0 = arith.constant 0 : i32
    %c0_i32_1 = arith.constant 0 : i32
    return %c0_i32, %c0_i32_0 : i32, i32
  }
  func.func @transform_3(%arg0: i32) -> (i32, i32) {
    %c0_i32 = arith.constant 0 : i32
    %c0_i32_0 = arith.constant 0 : i32
    %c0_i32_1 = arith.constant 0 : i32
    return %c0_i32, %c0_i32_0 : i32, i32
  }
  func.func @transform_4(%arg0: i32) -> (i32, i32) {
    %c0_i32 = arith.constant 0 : i32
    %c0_i32_0 = arith.constant 0 : i32
    return %arg0, %c0_i32 : i32, i32
  }
  func.func @transform_5(%arg0: i32) -> (i32, i32) {
    %c0_i32 = arith.constant 0 : i32
    %c0_i32_0 = arith.constant 0 : i32
    return %arg0, %c0_i32 : i32, i32
  }
}

module attributes {stable_mosaic.version = 11 : i64} {
  func.func @_agg_relu_kernel(%arg0: i32, %arg1: i32, %arg2: memref<128x128xbf16, #tpu.memory_space<vmem>>, %arg3: memref<128x64xf32, #tpu.memory_space<vmem>>, %arg4: memref<128x64xf32, #tpu.memory_space<vmem>>, %arg5: memref<128x64xf32, #tpu.memory_space<vmem>>, %arg6: memref<128x64xf32, #tpu.memory_space<vmem>>) attributes {dimension_semantics = [#tpu.dimension_semantics<parallel>, #tpu.dimension_semantics<arbitrary>], iteration_bounds = array<i64: 2, 2>, scalar_prefetch = 0 : i64, scratch_operands = 1 : i64, tpu.core_type = #tpu.core_type<tc>, window_params = [{transform_indices = @transform_0, window_bounds = array<i64: 128, 128>}, {transform_indices = @transform_1, window_bounds = array<i64: 128, 64>}, {transform_indices = @transform_2, window_bounds = array<i64: 128, 64>}, {transform_indices = @transform_3, window_bounds = array<i64: 128, 64>}]} {
    %c0_i32 = arith.constant 0 : i32
    %0 = arith.cmpi eq, %arg1, %c0_i32 : i32
    %1 = arith.extui %0 : i1 to i32
    %c0_i32_0 = arith.constant 0 : i32
    %2 = arith.cmpi ne, %1, %c0_i32_0 : i32
    scf.if %2 {
      %cst_9 = arith.constant 0.000000e+00 : f32
      %13 = vector.broadcast %cst_9 : f32 to vector<128x64xf32>
      %c0_10 = arith.constant 0 : index
      %c0_11 = arith.constant 0 : index
      %14 = vector.load %arg6[%c0_10, %c0_11] : memref<128x64xf32, #tpu.memory_space<vmem>>, vector<128x64xf32>
      tpu.vector_store %arg6[%c0_10, %c0_11], %13 {strides = array<i32>} : memref<128x64xf32, #tpu.memory_space<vmem>>, vector<128x64xf32>,
    } else {
    }
    %c0 = arith.constant 0 : index
    %c0_1 = arith.constant 0 : index
    %3 = vector.load %arg2[%c0, %c0_1] : memref<128x128xbf16, #tpu.memory_space<vmem>>, vector<128x128xbf16>
    %4 = arith.extf %3 : vector<128x128xbf16> to vector<128x128xf32>
    %c0_2 = arith.constant 0 : index
    %c0_3 = arith.constant 0 : index
    %5 = vector.load %arg6[%c0_2, %c0_3] : memref<128x64xf32, #tpu.memory_space<vmem>>, vector<128x64xf32>
    %c0_4 = arith.constant 0 : index
    %c0_5 = arith.constant 0 : index
    %6 = vector.load %arg3[%c0_4, %c0_5] : memref<128x64xf32, #tpu.memory_space<vmem>>, vector<128x64xf32>
    %cst = arith.constant dense<0.000000e+00> : vector<128x64xf32>
    %7 = tpu.matmul %4, %6, %cst {dimension_numbers = #tpu.dot_dimension_numbers<[1], [0], [0], [1], [0, 0, 1, 1], [], []>} : vector<128x128xf32>, vector<128x64xf32>, vector<128x64xf32> -> vector<128x64xf32>
    %8 = arith.addf %5, %7 : vector<128x64xf32>
    %c0_6 = arith.constant 0 : index
    %c0_7 = arith.constant 0 : index
    %9 = vector.load %arg6[%c0_6, %c0_7] : memref<128x64xf32, #tpu.memory_space<vmem>>, vector<128x64xf32>
    tpu.vector_store %arg6[%c0_6, %c0_7], %8 {strides = array<i32>} : memref<128x64xf32, #tpu.memory_space<vmem>>, vector<128x64xf32>,
    %c1_i32 = arith.constant 1 : i32
    %10 = arith.cmpi eq, %arg1, %c1_i32 : i32
    %11 = arith.extui %10 : i1 to i32
    %c0_i32_8 = arith.constant 0 : i32
    %12 = arith.cmpi ne, %11, %c0_i32_8 : i32
    scf.if %12 {
      %c0_9 = arith.constant 0 : index
      %c0_10 = arith.constant 0 : index
      %13 = vector.load %arg6[%c0_9, %c0_10] : memref<128x64xf32, #tpu.memory_space<vmem>>, vector<128x64xf32>
      %c0_11 = arith.constant 0 : index
      %c0_12 = arith.constant 0 : index
      %14 = vector.load %arg4[%c0_11, %c0_12] : memref<128x64xf32, #tpu.memory_space<vmem>>, vector<128x64xf32>
      %15 = arith.addf %13, %14 : vector<128x64xf32>
      %cst_13 = arith.constant 0.000000e+00 : f32
      %16 = vector.broadcast %cst_13 : f32 to vector<128x64xf32>
      %17 = arith.maximumf %15, %16 : vector<128x64xf32>
      %c0_14 = arith.constant 0 : index
      %c0_15 = arith.constant 0 : index
      %18 = vector.load %arg5[%c0_14, %c0_15] : memref<128x64xf32, #tpu.memory_space<vmem>>, vector<128x64xf32>
      tpu.vector_store %arg5[%c0_14, %c0_15], %17 {strides = array<i32>} : memref<128x64xf32, #tpu.memory_space<vmem>>, vector<128x64xf32>,
    } else {
    }
    return
  }
  func.func @transform_0(%arg0: i32, %arg1: i32) -> (i32, i32) {
    %c0_i32 = arith.constant 0 : i32
    return %arg0, %arg1 : i32, i32
  }
  func.func @transform_1(%arg0: i32, %arg1: i32) -> (i32, i32) {
    %c0_i32 = arith.constant 0 : i32
    %c0_i32_0 = arith.constant 0 : i32
    return %arg1, %c0_i32 : i32, i32
  }
  func.func @transform_2(%arg0: i32, %arg1: i32) -> (i32, i32) {
    %c0_i32 = arith.constant 0 : i32
    %c0_i32_0 = arith.constant 0 : i32
    return %arg0, %c0_i32 : i32, i32
  }
  func.func @transform_3(%arg0: i32, %arg1: i32) -> (i32, i32) {
    %c0_i32 = arith.constant 0 : i32
    %c0_i32_0 = arith.constant 0 : i32
    return %arg0, %c0_i32 : i32, i32
  }
}

module attributes {stable_mosaic.version = 11 : i64} {
  func.func @_project_kernel(%arg0: i32, %arg1: memref<128x64xf32, #tpu.memory_space<vmem>>, %arg2: memref<64x32xf32, #tpu.memory_space<vmem>>, %arg3: memref<64x32xf32, #tpu.memory_space<vmem>>, %arg4: memref<1x32xf32, #tpu.memory_space<vmem>>, %arg5: memref<128x32xf32, #tpu.memory_space<vmem>>, %arg6: memref<128x32xf32, #tpu.memory_space<vmem>>) attributes {dimension_semantics = [#tpu.dimension_semantics<parallel>], iteration_bounds = array<i64: 2>, scalar_prefetch = 0 : i64, scratch_operands = 0 : i64, tpu.core_type = #tpu.core_type<tc>, window_params = [{transform_indices = @transform_0, window_bounds = array<i64: 128, 64>}, {pipeline_mode = #tpu.pipeline_mode<synchronous>, transform_indices = @transform_1, window_bounds = array<i64: 64, 32>}, {pipeline_mode = #tpu.pipeline_mode<synchronous>, transform_indices = @transform_2, window_bounds = array<i64: 64, 32>}, {pipeline_mode = #tpu.pipeline_mode<synchronous>, transform_indices = @transform_3, window_bounds = array<i64: 1, 32>}, {transform_indices = @transform_4, window_bounds = array<i64: 128, 32>}, {transform_indices = @transform_5, window_bounds = array<i64: 128, 32>}]} {
    %c0 = arith.constant 0 : index
    %c0_0 = arith.constant 0 : index
    %0 = vector.load %arg1[%c0, %c0_0] : memref<128x64xf32, #tpu.memory_space<vmem>>, vector<128x64xf32>
    %c0_1 = arith.constant 0 : index
    %c0_2 = arith.constant 0 : index
    %1 = vector.load %arg2[%c0_1, %c0_2] : memref<64x32xf32, #tpu.memory_space<vmem>>, vector<64x32xf32>
    %cst = arith.constant dense<0.000000e+00> : vector<128x32xf32>
    %2 = tpu.matmul %0, %1, %cst {dimension_numbers = #tpu.dot_dimension_numbers<[1], [0], [0], [1], [0, 0, 1, 1], [], []>} : vector<128x64xf32>, vector<64x32xf32>, vector<128x32xf32> -> vector<128x32xf32>
    %c0_3 = arith.constant 0 : index
    %c0_4 = arith.constant 0 : index
    %3 = vector.load %arg5[%c0_3, %c0_4] : memref<128x32xf32, #tpu.memory_space<vmem>>, vector<128x32xf32>
    tpu.vector_store %arg5[%c0_3, %c0_4], %2 {strides = array<i32>} : memref<128x32xf32, #tpu.memory_space<vmem>>, vector<128x32xf32>,
    %c0_5 = arith.constant 0 : index
    %c0_6 = arith.constant 0 : index
    %4 = vector.load %arg3[%c0_5, %c0_6] : memref<64x32xf32, #tpu.memory_space<vmem>>, vector<64x32xf32>
    %cst_7 = arith.constant dense<0.000000e+00> : vector<128x32xf32>
    %5 = tpu.matmul %0, %4, %cst_7 {dimension_numbers = #tpu.dot_dimension_numbers<[1], [0], [0], [1], [0, 0, 1, 1], [], []>} : vector<128x64xf32>, vector<64x32xf32>, vector<128x32xf32> -> vector<128x32xf32>
    %c0_8 = arith.constant 0 : index
    %c0_9 = arith.constant 0 : index
    %6 = vector.load %arg4[%c0_8, %c0_9] : memref<1x32xf32, #tpu.memory_space<vmem>>, vector<1x32xf32>
    %7 = vector.broadcast %6 : vector<1x32xf32> to vector<128x32xf32>
    %8 = arith.addf %5, %7 : vector<128x32xf32>
    %c0_10 = arith.constant 0 : index
    %c0_11 = arith.constant 0 : index
    %9 = vector.load %arg6[%c0_10, %c0_11] : memref<128x32xf32, #tpu.memory_space<vmem>>, vector<128x32xf32>
    tpu.vector_store %arg6[%c0_10, %c0_11], %8 {strides = array<i32>} : memref<128x32xf32, #tpu.memory_space<vmem>>, vector<128x32xf32>,
    return
  }
  func.func @transform_0(%arg0: i32) -> (i32, i32) {
    %c0_i32 = arith.constant 0 : i32
    %c0_i32_0 = arith.constant 0 : i32
    return %arg0, %c0_i32 : i32, i32
  }
  func.func @transform_1(%arg0: i32) -> (i32, i32) {
    %c0_i32 = arith.constant 0 : i32
    %c0_i32_0 = arith.constant 0 : i32
    %c0_i32_1 = arith.constant 0 : i32
    return %c0_i32, %c0_i32_0 : i32, i32
  }
  func.func @transform_2(%arg0: i32) -> (i32, i32) {
    %c0_i32 = arith.constant 0 : i32
    %c0_i32_0 = arith.constant 0 : i32
    %c0_i32_1 = arith.constant 0 : i32
    return %c0_i32, %c0_i32_0 : i32, i32
  }
  func.func @transform_3(%arg0: i32) -> (i32, i32) {
    %c0_i32 = arith.constant 0 : i32
    %c0_i32_0 = arith.constant 0 : i32
    %c0_i32_1 = arith.constant 0 : i32
    return %c0_i32, %c0_i32_0 : i32, i32
  }
  func.func @transform_4(%arg0: i32) -> (i32, i32) {
    %c0_i32 = arith.constant 0 : i32
    %c0_i32_0 = arith.constant 0 : i32
    return %arg0, %c0_i32 : i32, i32
  }
  func.func @transform_5(%arg0: i32) -> (i32, i32) {
    %c0_i32 = arith.constant 0 : i32
    %c0_i32_0 = arith.constant 0 : i32
    return %arg0, %c0_i32 : i32, i32
  }
}

module attributes {stable_mosaic.version = 11 : i64} {
  func.func @_agg_relu_kernel(%arg0: i32, %arg1: i32, %arg2: memref<128x128xbf16, #tpu.memory_space<vmem>>, %arg3: memref<128x32xf32, #tpu.memory_space<vmem>>, %arg4: memref<128x32xf32, #tpu.memory_space<vmem>>, %arg5: memref<128x32xf32, #tpu.memory_space<vmem>>, %arg6: memref<128x32xf32, #tpu.memory_space<vmem>>) attributes {dimension_semantics = [#tpu.dimension_semantics<parallel>, #tpu.dimension_semantics<arbitrary>], iteration_bounds = array<i64: 2, 2>, scalar_prefetch = 0 : i64, scratch_operands = 1 : i64, tpu.core_type = #tpu.core_type<tc>, window_params = [{transform_indices = @transform_0, window_bounds = array<i64: 128, 128>}, {transform_indices = @transform_1, window_bounds = array<i64: 128, 32>}, {transform_indices = @transform_2, window_bounds = array<i64: 128, 32>}, {transform_indices = @transform_3, window_bounds = array<i64: 128, 32>}]} {
    %c0_i32 = arith.constant 0 : i32
    %0 = arith.cmpi eq, %arg1, %c0_i32 : i32
    %1 = arith.extui %0 : i1 to i32
    %c0_i32_0 = arith.constant 0 : i32
    %2 = arith.cmpi ne, %1, %c0_i32_0 : i32
    scf.if %2 {
      %cst_9 = arith.constant 0.000000e+00 : f32
      %13 = vector.broadcast %cst_9 : f32 to vector<128x32xf32>
      %c0_10 = arith.constant 0 : index
      %c0_11 = arith.constant 0 : index
      %14 = vector.load %arg6[%c0_10, %c0_11] : memref<128x32xf32, #tpu.memory_space<vmem>>, vector<128x32xf32>
      tpu.vector_store %arg6[%c0_10, %c0_11], %13 {strides = array<i32>} : memref<128x32xf32, #tpu.memory_space<vmem>>, vector<128x32xf32>,
    } else {
    }
    %c0 = arith.constant 0 : index
    %c0_1 = arith.constant 0 : index
    %3 = vector.load %arg2[%c0, %c0_1] : memref<128x128xbf16, #tpu.memory_space<vmem>>, vector<128x128xbf16>
    %4 = arith.extf %3 : vector<128x128xbf16> to vector<128x128xf32>
    %c0_2 = arith.constant 0 : index
    %c0_3 = arith.constant 0 : index
    %5 = vector.load %arg6[%c0_2, %c0_3] : memref<128x32xf32, #tpu.memory_space<vmem>>, vector<128x32xf32>
    %c0_4 = arith.constant 0 : index
    %c0_5 = arith.constant 0 : index
    %6 = vector.load %arg3[%c0_4, %c0_5] : memref<128x32xf32, #tpu.memory_space<vmem>>, vector<128x32xf32>
    %cst = arith.constant dense<0.000000e+00> : vector<128x32xf32>
    %7 = tpu.matmul %4, %6, %cst {dimension_numbers = #tpu.dot_dimension_numbers<[1], [0], [0], [1], [0, 0, 1, 1], [], []>} : vector<128x128xf32>, vector<128x32xf32>, vector<128x32xf32> -> vector<128x32xf32>
    %8 = arith.addf %5, %7 : vector<128x32xf32>
    %c0_6 = arith.constant 0 : index
    %c0_7 = arith.constant 0 : index
    %9 = vector.load %arg6[%c0_6, %c0_7] : memref<128x32xf32, #tpu.memory_space<vmem>>, vector<128x32xf32>
    tpu.vector_store %arg6[%c0_6, %c0_7], %8 {strides = array<i32>} : memref<128x32xf32, #tpu.memory_space<vmem>>, vector<128x32xf32>,
    %c1_i32 = arith.constant 1 : i32
    %10 = arith.cmpi eq, %arg1, %c1_i32 : i32
    %11 = arith.extui %10 : i1 to i32
    %c0_i32_8 = arith.constant 0 : i32
    %12 = arith.cmpi ne, %11, %c0_i32_8 : i32
    scf.if %12 {
      %c0_9 = arith.constant 0 : index
      %c0_10 = arith.constant 0 : index
      %13 = vector.load %arg6[%c0_9, %c0_10] : memref<128x32xf32, #tpu.memory_space<vmem>>, vector<128x32xf32>
      %c0_11 = arith.constant 0 : index
      %c0_12 = arith.constant 0 : index
      %14 = vector.load %arg4[%c0_11, %c0_12] : memref<128x32xf32, #tpu.memory_space<vmem>>, vector<128x32xf32>
      %15 = arith.addf %13, %14 : vector<128x32xf32>
      %cst_13 = arith.constant 0.000000e+00 : f32
      %16 = vector.broadcast %cst_13 : f32 to vector<128x32xf32>
      %17 = arith.maximumf %15, %16 : vector<128x32xf32>
      %c0_14 = arith.constant 0 : index
      %c0_15 = arith.constant 0 : index
      %18 = vector.load %arg5[%c0_14, %c0_15] : memref<128x32xf32, #tpu.memory_space<vmem>>, vector<128x32xf32>
      tpu.vector_store %arg5[%c0_14, %c0_15], %17 {strides = array<i32>} : memref<128x32xf32, #tpu.memory_space<vmem>>, vector<128x32xf32>,
    } else {
    }
    return
  }
  func.func @transform_0(%arg0: i32, %arg1: i32) -> (i32, i32) {
    %c0_i32 = arith.constant 0 : i32
    return %arg0, %arg1 : i32, i32
  }
  func.func @transform_1(%arg0: i32, %arg1: i32) -> (i32, i32) {
    %c0_i32 = arith.constant 0 : i32
    %c0_i32_0 = arith.constant 0 : i32
    return %arg1, %c0_i32 : i32, i32
  }
  func.func @transform_2(%arg0: i32, %arg1: i32) -> (i32, i32) {
    %c0_i32 = arith.constant 0 : i32
    %c0_i32_0 = arith.constant 0 : i32
    return %arg0, %c0_i32 : i32, i32
  }
  func.func @transform_3(%arg0: i32, %arg1: i32) -> (i32, i32) {
    %c0_i32 = arith.constant 0 : i32
    %c0_i32_0 = arith.constant 0 : i32
    return %arg0, %c0_i32 : i32, i32
  }
}

</mosaic_0001>

<llo_original>
// kernel: fae_graphconv_forward.4
$region0: #{fae_graphconv_forward.4}
  #allocation0 [shape = 'u32[]', space=smem, size = 0x4, offset = 0x4, fixed_abs, tag = 'smem constant byte address 0x4 - core index']
  #allocation1 [shape = 'u32[144,128]{1,0:T(1,128)}', space=vmem, size = 0x12000, scoped, tag = 'internal scratch']
  %s0 = inlined_call_operand.vmem [shape: f32[256,8], index: 0, kind: input, shape index: {}]
  %s1 = inlined_call_operand.vmem [shape: f32[8,64], index: 1, kind: input, shape index: {}]
  %s2 = inlined_call_operand.vmem [shape: f32[8,64], index: 2, kind: input, shape index: {}]
  %s3 = inlined_call_operand.vmem [shape: f32[1,64], index: 3, kind: input, shape index: {}]
  %s4 = inlined_call_operand.vmem [shape: f32[256,64], index: 4, kind: output, shape index: {0}]
  %s5 = inlined_call_operand.vmem [shape: f32[256,64], index: 5, kind: output, shape index: {1}]
  %6 = xla_tuple %s4, %s5
  %s7 = sld [smem:[#allocation0]]
  $region57: #{fae_graphconv_forward.4} parent=0
    _
  %s9 = ssub.s32 1, %s7
  %s10 = scalar_select 0, %s9, %s7
  loop: start=0, step=1, limit=4
  $region2: #{fae_graphconv_forward.4} parent=0 // loop_pre_header
    _
  $region3: #{fae_graphconv_forward.4} parent=0 // loop_header
    %s12 = sphi 0, %s16
    %p13 = scmp.ge.s32.totalorder %s12, 4
    %s22 = sphi 0, %s24
    %s25 = sphi 0, %s22
    %s26 = sphi 0, %s25
    %s42 = sphi 0, %s26
    %s46 = sphi 0, %s46
    %s48 = sphi 0, %s46
    %s49 = sphi 0, %s48
    %s63 = sphi 0, %s49
    %s67 = sphi 0, %s67
    %s69 = sphi 0, %s67
    %s70 = sphi 0, %s69
    %s84 = sphi 0, %s70
    %s88 = sphi 0, %s88
    %s90 = sphi 0, %s88
    %s91 = sphi 0, %s90
    %s105 = sphi 0, %s91
    %s111 = sphi 0, %s113
    %s114 = sphi 0, %s111
    %s115 = sphi 0, %s114
    %s131 = sphi 0, %s115
    %s137 = sphi 0, %s139
    %s140 = sphi 0, %s137
    %s141 = sphi 0, %s140
    %s157 = sphi 0, %s141
  $region4: #{fae_graphconv_forward.4} parent=0 // loop_header_branch
    %15 = sbr.rel (%p13) target = $region8
  $region5: #{fae_graphconv_forward.4} parent=0 // loop_body
    %s17 = ssub.s32 %s12, 1
    %s18 = ssub.s32 %s12, 2
    %s19 = sadd.s32 %s12, 1
    %s20 = ssub.s32 %s12, %s19
    %p21 = scmp.eq.s32.totalorder %s20, 0
    %s23 = sadd.s32 %s22, 1
    %s24 = scalar_select %p21, %s22, %s23
    %p27 = pneg %p21
    %p28 = scmp.eq.s32.totalorder %s12, 1
    %p29 = por %p27, %p28
    %p30 = scmp.ne.s32.totalorder %s22, %s25
    %p31 = scmp.eq.s32.totalorder %s12, 0
    %p32 = por %p30, %p31
    %p33 = scmp.ne.s32.totalorder %s22, %s25
    %p34 = scmp.eq.s32.totalorder %s17, 1
    %p35 = por %p33, %p34
    %p36 = scmp.ne.s32.totalorder %s25, %s26
    %p37 = scmp.eq.s32.totalorder %s17, 0
    %p38 = por %p36, %p37
    %p39 = scmp.ne.s32.totalorder %s25, %s26
    %p40 = scmp.eq.s32.totalorder %s18, 1
    %p41 = por %p39, %p40
    %p43 = scmp.ne.s32.totalorder %s26, %s42
    %p44 = scmp.eq.s32.totalorder %s18, 0
    %p45 = por %p43, %p44
    %s47 = sadd.s32 %s46, 1
    %p50 = scmp.eq.s32.totalorder %s12, 1
    %p51 = scmp.ne.s32.totalorder %s46, %s48
    %p52 = scmp.eq.s32.totalorder %s12, 0
    %p53 = por %p51, %p52
    %p54 = scmp.ne.s32.totalorder %s46, %s48
    %p55 = scmp.eq.s32.totalorder %s17, 1
    %p56 = por %p54, %p55
    %p57 = scmp.ne.s32.totalorder %s48, %s49
    %p58 = scmp.eq.s32.totalorder %s17, 0
    %p59 = por %p57, %p58
    %p60 = scmp.ne.s32.totalorder %s48, %s49
    %p61 = scmp.eq.s32.totalorder %s18, 1
    %p62 = por %p60, %p61
    %p64 = scmp.ne.s32.totalorder %s49, %s63
    %p65 = scmp.eq.s32.totalorder %s18, 0
    %p66 = por %p64, %p65
    %s68 = sadd.s32 %s67, 1
    %p71 = scmp.eq.s32.totalorder %s12, 1
    %p72 = scmp.ne.s32.totalorder %s67, %s69
    %p73 = scmp.eq.s32.totalorder %s12, 0
    %p74 = por %p72, %p73
    %p75 = scmp.ne.s32.totalorder %s67, %s69
    %p76 = scmp.eq.s32.totalorder %s17, 1
    %p77 = por %p75, %p76
    %p78 = scmp.ne.s32.totalorder %s69, %s70
    %p79 = scmp.eq.s32.totalorder %s17, 0
    %p80 = por %p78, %p79
    %p81 = scmp.ne.s32.totalorder %s69, %s70
    %p82 = scmp.eq.s32.totalorder %s18, 1
    %p83 = por %p81, %p82
    %p85 = scmp.ne.s32.totalorder %s70, %s84
    %p86 = scmp.eq.s32.totalorder %s18, 0
    %p87 = por %p85, %p86
    %s89 = sadd.s32 %s88, 1
    %p92 = scmp.eq.s32.totalorder %s12, 1
    %p93 = scmp.ne.s32.totalorder %s88, %s90
    %p94 = scmp.eq.s32.totalorder %s12, 0
    %p95 = por %p93, %p94
    %p96 = scmp.ne.s32.totalorder %s88, %s90
    %p97 = scmp.eq.s32.totalorder %s17, 1
    %p98 = por %p96, %p97
    %p99 = scmp.ne.s32.totalorder %s90, %s91
    %p100 = scmp.eq.s32.totalorder %s17, 0
    %p101 = por %p99, %p100
    %p102 = scmp.ne.s32.totalorder %s90, %s91
    %p103 = scmp.eq.s32.totalorder %s18, 1
    %p104 = por %p102, %p103
    %p106 = scmp.ne.s32.totalorder %s91, %s105
    %p107 = scmp.eq.s32.totalorder %s18, 0
    %p108 = por %p106, %p107
    %s109 = ssub.s32 %s12, %s19
    %p110 = scmp.eq.s32.totalorder %s109, 0
    %s112 = sadd.s32 %s111, 1
    %s113 = scalar_select %p110, %s111, %s112
    %p116 = pneg %p110
    %p117 = scmp.eq.s32.totalorder %s12, 1
    %p118 = por %p116, %p117
    %p119 = scmp.ne.s32.totalorder %s111, %s114
    %p120 = scmp.eq.s32.totalorder %s12, 0
    %p121 = por %p119, %p120
    %p122 = scmp.ne.s32.totalorder %s111, %s114
    %p123 = scmp.eq.s32.totalorder %s17, 1
    %p124 = por %p122, %p123
    %p125 = scmp.ne.s32.totalorder %s114, %s115
    %p126 = scmp.eq.s32.totalorder %s17, 0
    %p127 = por %p125, %p126
    %p128 = scmp.ne.s32.totalorder %s114, %s115
    %p129 = scmp.eq.s32.totalorder %s18, 1
    %p130 = por %p128, %p129
    %p132 = scmp.ne.s32.totalorder %s115, %s131
    %p133 = scmp.eq.s32.totalorder %s18, 0
    %p134 = por %p132, %p133
    %s135 = ssub.s32 %s12, %s19
    %p136 = scmp.eq.s32.totalorder %s135, 0
    %s138 = sadd.s32 %s137, 1
    %s139 = scalar_select %p136, %s137, %s138
    %p142 = pneg %p136
    %p143 = scmp.eq.s32.totalorder %s12, 1
    %p144 = por %p142, %p143
    %p145 = scmp.ne.s32.totalorder %s137, %s140
    %p146 = scmp.eq.s32.totalorder %s12, 0
    %p147 = por %p145, %p146
    %p148 = scmp.ne.s32.totalorder %s137, %s140
    %p149 = scmp.eq.s32.totalorder %s17, 1
    %p150 = por %p148, %p149
    %p151 = scmp.ne.s32.totalorder %s140, %s141
    %p152 = scmp.eq.s32.totalorder %s17, 0
    %p153 = por %p151, %p152
    %p154 = scmp.ne.s32.totalorder %s140, %s141
    %p155 = scmp.eq.s32.totalorder %s18, 1
    %p156 = por %p154, %p155
    %p158 = scmp.ne.s32.totalorder %s141, %s157
    %p159 = scmp.eq.s32.totalorder %s18, 0
    %p160 = por %p158, %p159
    %p161 = scmp.le.s32.totalorder 1, %s12
    %p162 = scmp.lt.s32.totalorder %s12, 3
    %p163 = pnand %p161, %p162
    %p164 = pneg %p163
    // Predicated region
    $region9: #{fae_graphconv_forward.4} parent=5 // pred_check
      _
    $region10: #{fae_graphconv_forward.4} parent=5 // pred_check_branch
      %166 = sbr.rel (%p163) target = $region12
    $region11: #{fae_graphconv_forward.4} parent=5 // pred_region
      %s167 = ssub.s32 %s12, 1
      // Predicated region
      $region13: #{fae_graphconv_forward.4} parent=11 // pred_check
        %p168 = pneg %p59
      $region14: #{fae_graphconv_forward.4} parent=11 // pred_check_branch
        %170 = sbr.rel (%p168) target = $region16
      $region15: #{fae_graphconv_forward.4} parent=11 // pred_region
        _
      $region16: #{fae_graphconv_forward.4} parent=11 // pred_fallthru
        _
      // Predicated region
      $region17: #{fae_graphconv_forward.4} parent=11 // pred_check
        %p171 = pneg %p80
      $region18: #{fae_graphconv_forward.4} parent=11 // pred_check_branch
        %173 = sbr.rel (%p171) target = $region20
      $region19: #{fae_graphconv_forward.4} parent=11 // pred_region
        _
      $region20: #{fae_graphconv_forward.4} parent=11 // pred_fallthru
        _
      // Predicated region
      $region21: #{fae_graphconv_forward.4} parent=11 // pred_check
        %p174 = pneg %p101
      $region22: #{fae_graphconv_forward.4} parent=11 // pred_check_branch
        %176 = sbr.rel (%p174) target = $region24
      $region23: #{fae_graphconv_forward.4} parent=11 // pred_region
        _
      $region24: #{fae_graphconv_forward.4} parent=11 // pred_fallthru
        _
    $region12: #{fae_graphconv_forward.4} parent=5 // pred_fallthru
      _
    %p177 = scmp.lt.s32.totalorder %s12, 2
    // Predicated region
    $region25: #{fae_graphconv_forward.4} parent=5 // pred_check
      %p178 = pneg %p177
    $region26: #{fae_graphconv_forward.4} parent=5 // pred_check_branch
      %180 = sbr.rel (%p178) target = $region28
    $region27: #{fae_graphconv_forward.4} parent=5 // pred_region
      // Predicated region
      $region29: #{fae_graphconv_forward.4} parent=27 // pred_check
        %p181 = pneg %p32
      $region30: #{fae_graphconv_forward.4} parent=27 // pred_check_branch
        %183 = sbr.rel (%p181) target = $region32
      $region31: #{fae_graphconv_forward.4} parent=27 // pred_region
        %s184 = smul.u32 16, %s12
        %p185 = scmp.lt.s32.totalorder %s184, 31
        %s186 = scalar_select %p185, %s184, 31
        %s187 = smul.addr %s186, 8
        %s188 = scalar_lea.vmem %s0, %s187
        %s189 = smul.u32 16, %s12
      $region32: #{fae_graphconv_forward.4} parent=27 // pred_fallthru
        _
    $region28: #{fae_graphconv_forward.4} parent=5 // pred_fallthru
      _
    %p190 = scmp.le.s32.totalorder 1, %s12
    %p191 = scmp.lt.s32.totalorder %s12, 3
    %p192 = pnand %p190, %p191
    %p193 = pneg %p192
    // Predicated region
    $region33: #{fae_graphconv_forward.4} parent=5 // pred_check
      _
    $region34: #{fae_graphconv_forward.4} parent=5 // pred_check_branch
      %195 = sbr.rel (%p192) target = $region36
    $region35: #{fae_graphconv_forward.4} parent=5 // pred_region
      %s196 = ssub.s32 %s12, 1
      %s197 = smul.u32 16, %s17
      %p198 = scmp.lt.s32.totalorder %s197, 31
      %s199 = scalar_select %p198, %s197, 31
      %s200 = smul.addr %s199, 8
      %s201 = scalar_lea.vmem %s0, %s200
      %p202 = pneg %p38
      %p203 = pneg %p35
      %p204 = pneg %p59
      %p205 = pneg %p56
      %p206 = pneg %p80
      %p207 = pneg %p77
      %p208 = pneg %p101
      %p209 = pneg %p98
      %p210 = pneg %p127
      %p211 = pneg %p124
      %s212 = smul.u32 16, %s17
      %p213 = scmp.lt.s32.totalorder %s212, 31
      %s214 = scalar_select %p213, %s212, 31
      %s215 = smul.addr %s214, 8
      %s216 = scalar_lea.vmem %s4, %s215
      %p217 = pneg %p153
      %p218 = pneg %p150
      %s219 = smul.u32 16, %s17
      %p220 = scmp.lt.s32.totalorder %s219, 31
      %s221 = scalar_select %p220, %s219, 31
      %s222 = smul.addr %s221, 8
      %s223 = scalar_lea.vmem %s5, %s222
      %s224 = smul.u32 16, %s17
      %p225 = scmp.lt.s32.totalorder %s224, 31
      %s226 = scalar_select %p225, %s224, 31
      %s227 = smul.addr %s226, 8
      %s228 = scalar_lea.vmem %s0, %s227
      %s229 = smul.u32 16, %s17
      %s230 = smul.u32 16, %s17
      %p231 = scmp.lt.s32.totalorder %s230, 31
      %s232 = scalar_select %p231, %s230, 31
      %s233 = smul.addr %s232, 8
      %s234 = scalar_lea.vmem %s4, %s233
      %s235 = smul.u32 16, %s17
      %s236 = smul.u32 16, %s17
      %p237 = scmp.lt.s32.totalorder %s236, 31
      %s238 = scalar_select %p237, %s236, 31
      %s239 = smul.addr %s238, 8
      %s240 = scalar_lea.vmem %s5, %s239
      %s241 = smul.u32 16, %s17
      %v242 = vld [vmem:[%s228] sm:$0xff]
      %v243 = vld [vmem:[%s228 + $0x8] sm:$0xff]
      %v244 = vld [vmem:[%s228 + $0x10] sm:$0xff]
      %v245 = vld [vmem:[%s228 + $0x18] sm:$0xff]
      %v246 = vld [vmem:[%s228 + $0x20] sm:$0xff]
      %v247 = vld [vmem:[%s228 + $0x28] sm:$0xff]
      %v248 = vld [vmem:[%s228 + $0x30] sm:$0xff]
      %v249 = vld [vmem:[%s228 + $0x38] sm:$0xff]
      %v250 = vld [vmem:[%s228 + $0x40] sm:$0xff]
      %v251 = vld [vmem:[%s228 + $0x48] sm:$0xff]
      %v252 = vld [vmem:[%s228 + $0x50] sm:$0xff]
      %v253 = vld [vmem:[%s228 + $0x58] sm:$0xff]
      %v254 = vld [vmem:[%s228 + $0x60] sm:$0xff]
      %v255 = vld [vmem:[%s228 + $0x68] sm:$0xff]
      %v256 = vld [vmem:[%s228 + $0x70] sm:$0xff]
      %v257 = vld [vmem:[%s228 + $0x78] sm:$0xff]
      %v258 = vld [vmem:[%s1] sm:$0xff]
      %vm259 = vcmask 64512
      %v261 = vsel %vm259, %v242, 0
      %v264 = vsel %vm259, %v243, 0
      %v267 = vsel %vm259, %v244, 0
      %v270 = vsel %vm259, %v245, 0
      %v273 = vsel %vm259, %v246, 0
      %v276 = vsel %vm259, %v247, 0
      %v279 = vsel %vm259, %v248, 0
      %v282 = vsel %vm259, %v249, 0
      %v285 = vsel %vm259, %v250, 0
      %v288 = vsel %vm259, %v251, 0
      %v291 = vsel %vm259, %v252, 0
      %v294 = vsel %vm259, %v253, 0
      %v297 = vsel %vm259, %v254, 0
      %v300 = vsel %vm259, %v255, 0
      %v303 = vsel %vm259, %v256, 0
      %v306 = vsel %vm259, %v257, 0
      %308 = vmatprep.subr.mxu0 0.0
      %309 = vmatpush1.msra.mxu0 0.0
      %310 = vmatprep.subr.mxu0 0.0
      %311 = vmatpush1.msra.mxu0 0.0
      %312 = vmatprep.subr.mxu0 0.0
      %313 = vmatpush1.msra.mxu0 0.0
      %314 = vmatprep.subr.mxu0 0.0
      %315 = vmatpush1.msra.mxu0 0.0
      %316 = vmatprep.subr.mxu0 0.0
      %317 = vmatpush1.msra.mxu0 0.0
      %318 = vmatprep.subr.mxu0 0.0
      %319 = vmatpush1.msra.mxu0 0.0
      %320 = vmatprep.subr.mxu0 0.0
      %321 = vmatpush1.msra.mxu0 0.0
      %322 = vmatprep.subr.mxu0 0.0
      %323 = vmatpush1.msra.mxu0 0.0
      %324 = vmatprep.subr.mxu0 0.0
      %325 = vmatpush1.msra.mxu0 0.0
      %326 = vmatprep.subr.mxu0 0.0
      %327 = vmatpush1.msra.mxu0 0.0
      %328 = vmatprep.subr.mxu0 0.0
      %329 = vmatpush1.msra.mxu0 0.0
      %330 = vmatprep.subr.mxu0 0.0
      %331 = vmatpush1.msra.mxu0 0.0
      %332 = vmatprep.subr.mxu0 0.0
      %333 = vmatpush1.msra.mxu0 0.0
      %334 = vmatprep.subr.mxu0 0.0
      %335 = vmatpush1.msra.mxu0 0.0
      %336 = vmatprep.subr.mxu0 0.0
      %337 = vmatpush1.msra.mxu0 0.0
      %338 = vmatprep.subr.mxu0 0.0
      %339 = vmatpush1.msra.mxu0 %v258
      %340 = vmatprep.subr.mxu0 0.0
      %341 = vmatpush2.msra.mxu0 0.0
      %342 = vmatprep.subr.mxu0 0.0
      %343 = vmatpush2.msra.mxu0 0.0
      %344 = vmatprep.subr.mxu0 0.0
      %345 = vmatpush2.msra.mxu0 0.0
      %346 = vmatprep.subr.mxu0 0.0
      %347 = vmatpush2.msra.mxu0 0.0
      %348 = vmatprep.subr.mxu0 0.0
      %349 = vmatpush2.msra.mxu0 0.0
      %350 = vmatprep.subr.mxu0 0.0
      %351 = vmatpush2.msra.mxu0 0.0
      %352 = vmatprep.subr.mxu0 0.0
      %353 = vmatpush2.msra.mxu0 0.0
      %354 = vmatprep.subr.mxu0 0.0
      %355 = vmatpush2.msra.mxu0 0.0
      %356 = vmatprep.subr.mxu0 0.0
      %357 = vmatpush2.msra.mxu0 0.0
      %358 = vmatprep.subr.mxu0 0.0
      %359 = vmatpush2.msra.mxu0 0.0
      %360 = vmatprep.subr.mxu0 0.0
      %361 = vmatpush2.msra.mxu0 0.0
      %362 = vmatprep.subr.mxu0 0.0
      %363 = vmatpush2.msra.mxu0 0.0
      %364 = vmatprep.subr.mxu0 0.0
      %365 = vmatpush2.msra.mxu0 0.0
      %366 = vmatprep.subr.mxu0 0.0
      %367 = vmatpush2.msra.mxu0 0.0
      %368 = vmatprep.subr.mxu0 0.0
      %369 = vmatpush2.msra.mxu0 0.0
      %370 = vmatprep.subr.mxu0 0.0
      %371 = vmatpush2.msra.mxu0 0.0
      %372 = vmatprep.mubr.f32.mxu0 0.0
      %373 = vmatmul.mubr.f32.gmra.mxu0 %v261
      %v374 = vpop.f32.mrf.mxu0
      %v375 = vadd.f32 0.0, %v374
      %v376 = vpop.f32.mrf.mxu0
      %377 = vmatprep.mubr.f32.mxu0 0.0
      %378 = vmatmul.mubr.f32.gmra.mxu0 %v264
      %v379 = vpop.f32.mrf.mxu0
      %v380 = vadd.f32 0.0, %v379
      %v381 = vpop.f32.mrf.mxu0
      %382 = vmatprep.mubr.f32.mxu0 0.0
      %383 = vmatmul.mubr.f32.gmra.mxu0 %v267
      %v384 = vpop.f32.mrf.mxu0
      %v385 = vadd.f32 0.0, %v384
      %v386 = vpop.f32.mrf.mxu0
      %387 = vmatprep.mubr.f32.mxu0 0.0
      %388 = vmatmul.mubr.f32.gmra.mxu0 %v270
      %v389 = vpop.f32.mrf.mxu0
      %v390 = vadd.f32 0.0, %v389
      %v391 = vpop.f32.mrf.mxu0
      %392 = vmatprep.mubr.f32.mxu0 0.0
      %393 = vmatmul.mubr.f32.gmra.mxu0 %v273
      %v394 = vpop.f32.mrf.mxu0
      %v395 = vadd.f32 0.0, %v394
      %v396 = vpop.f32.mrf.mxu0
      %397 = vmatprep.mubr.f32.mxu0 0.0
      %398 = vmatmul.mubr.f32.gmra.mxu0 %v276
      %v399 = vpop.f32.mrf.mxu0
      %v400 = vadd.f32 0.0, %v399
      %v401 = vpop.f32.mrf.mxu0
      %402 = vmatprep.mubr.f32.mxu0 0.0
      %403 = vmatmul.mubr.f32.gmra.mxu0 %v279
      %v404 = vpop.f32.mrf.mxu0
      %v405 = vadd.f32 0.0, %v404
      %v406 = vpop.f32.mrf.mxu0
      %407 = vmatprep.mubr.f32.mxu0 0.0
      %408 = vmatmul.mubr.f32.gmra.mxu0 %v282
      %v409 = vpop.f32.mrf.mxu0
      %v410 = vadd.f32 0.0, %v409
      %v411 = vpop.f32.mrf.mxu0
      %412 = vmatprep.mubr.f32.mxu0 0.0
      %413 = vmatmul.mubr.f32.gmra.mxu0 %v285
      %v414 = vpop.f32.mrf.mxu0
      %v415 = vadd.f32 0.0, %v414
      %v416 = vpop.f32.mrf.mxu0
      %417 = vmatprep.mubr.f32.mxu0 0.0
      %418 = vmatmul.mubr.f32.gmra.mxu0 %v288
      %v419 = vpop.f32.mrf.mxu0
      %v420 = vadd.f32 0.0, %v419
      %v421 = vpop.f32.mrf.mxu0
      %422 = vmatprep.mubr.f32.mxu0 0.0
      %423 = vmatmul.mubr.f32.gmra.mxu0 %v291
      %v424 = vpop.f32.mrf.mxu0
      %v425 = vadd.f32 0.0, %v424
      %v426 = vpop.f32.mrf.mxu0
      %427 = vmatprep.mubr.f32.mxu0 0.0
      %428 = vmatmul.mubr.f32.gmra.mxu0 %v294
      %v429 = vpop.f32.mrf.mxu0
      %v430 = vadd.f32 0.0, %v429
      %v431 = vpop.f32.mrf.mxu0
      %432 = vmatprep.mubr.f32.mxu0 0.0
      %433 = vmatmul.mubr.f32.gmra.mxu0 %v297
      %v434 = vpop.f32.mrf.mxu0
      %v435 = vadd.f32 0.0, %v434
      %v436 = vpop.f32.mrf.mxu0
      %437 = vmatprep.mubr.f32.mxu0 0.0
      %438 = vmatmul.mubr.f32.gmra.mxu0 %v300
      %v439 = vpop.f32.mrf.mxu0
      %v440 = vadd.f32 0.0, %v439
      %v441 = vpop.f32.mrf.mxu0
      %442 = vmatprep.mubr.f32.mxu0 0.0
      %443 = vmatmul.mubr.f32.gmra.mxu0 %v303
      %v444 = vpop.f32.mrf.mxu0
      %v445 = vadd.f32 0.0, %v444
      %v446 = vpop.f32.mrf.mxu0
      %447 = vmatprep.mubr.f32.mxu0 0.0
      %448 = vmatmul.mubr.f32.gmra.mxu0 %v306
      %v449 = vpop.f32.mrf.mxu0
      %v450 = vadd.f32 0.0, %v449
      %v451 = vpop.f32.mrf.mxu0
      %452 = vdwg.mxu0
      %vm453 = vcmask 523264
      %454 = vst.msk [vmem:[%s234] sm:$0xff] %vm453, %v375
      %455 = vst.msk [vmem:[%s234 + $0x8] sm:$0xff] %vm453, %v380
      %456 = vst.msk [vmem:[%s234 + $0x10] sm:$0xff] %vm453, %v385
      %457 = vst.msk [vmem:[%s234 + $0x18] sm:$0xff] %vm453, %v390
      %458 = vst.msk [vmem:[%s234 + $0x20] sm:$0xff] %vm453, %v395
      %459 = vst.msk [vmem:[%s234 + $0x28] sm:$0xff] %vm453, %v400
      %460 = vst.msk [vmem:[%s234 + $0x30] sm:$0xff] %vm453, %v405
      %461 = vst.msk [vmem:[%s234 + $0x38] sm:$0xff] %vm453, %v410
      %462 = vst.msk [vmem:[%s234 + $0x40] sm:$0xff] %vm453, %v415
      %463 = vst.msk [vmem:[%s234 + $0x48] sm:$0xff] %vm453, %v420
      %464 = vst.msk [vmem:[%s234 + $0x50] sm:$0xff] %vm453, %v425
      %465 = vst.msk [vmem:[%s234 + $0x58] sm:$0xff] %vm453, %v430
      %466 = vst.msk [vmem:[%s234 + $0x60] sm:$0xff] %vm453, %v435
      %467 = vst.msk [vmem:[%s234 + $0x68] sm:$0xff] %vm453, %v440
      %468 = vst.msk [vmem:[%s234 + $0x70] sm:$0xff] %vm453, %v445
      %469 = vst.msk [vmem:[%s234 + $0x78] sm:$0xff] %vm453, %v450
      %v470 = vld [vmem:[%s2] sm:$0xff]
      %v471 = vld [vmem:[%s3] sm:$0x1]
      %v473 = vlaneseq
      %v474 = vshrl.u32 %v473, 7
      %v475 = vsub.s32 0, %v474
      %v476 = vrot.slane %v471, %v475
      %478 = vmatprep.subr.mxu0 0.0
      %479 = vmatpush1.msra.mxu0 0.0
      %480 = vmatprep.subr.mxu0 0.0
      %481 = vmatpush1.msra.mxu0 0.0
      %482 = vmatprep.subr.mxu0 0.0
      %483 = vmatpush1.msra.mxu0 0.0
      %484 = vmatprep.subr.mxu0 0.0
      %485 = vmatpush1.msra.mxu0 0.0
      %486 = vmatprep.subr.mxu0 0.0
      %487 = vmatpush1.msra.mxu0 0.0
      %488 = vmatprep.subr.mxu0 0.0
      %489 = vmatpush1.msra.mxu0 0.0
      %490 = vmatprep.subr.mxu0 0.0
      %491 = vmatpush1.msra.mxu0 0.0
      %492 = vmatprep.subr.mxu0 0.0
      %493 = vmatpush1.msra.mxu0 0.0
      %494 = vmatprep.subr.mxu0 0.0
      %495 = vmatpush1.msra.mxu0 0.0
      %496 = vmatprep.subr.mxu0 0.0
      %497 = vmatpush1.msra.mxu0 0.0
      %498 = vmatprep.subr.mxu0 0.0
      %499 = vmatpush1.msra.mxu0 0.0
      %500 = vmatprep.subr.mxu0 0.0
      %501 = vmatpush1.msra.mxu0 0.0
      %502 = vmatprep.subr.mxu0 0.0
      %503 = vmatpush1.msra.mxu0 0.0
      %504 = vmatprep.subr.mxu0 0.0
      %505 = vmatpush1.msra.mxu0 0.0
      %506 = vmatprep.subr.mxu0 0.0
      %507 = vmatpush1.msra.mxu0 0.0
      %508 = vmatprep.subr.mxu0 0.0
      %509 = vmatpush1.msra.mxu0 %v470
      %510 = vmatprep.subr.mxu0 0.0
      %511 = vmatpush2.msra.mxu0 0.0
      %512 = vmatprep.subr.mxu0 0.0
      %513 = vmatpush2.msra.mxu0 0.0
      %514 = vmatprep.subr.mxu0 0.0
      %515 = vmatpush2.msra.mxu0 0.0
      %516 = vmatprep.subr.mxu0 0.0
      %517 = vmatpush2.msra.mxu0 0.0
      %518 = vmatprep.subr.mxu0 0.0
      %519 = vmatpush2.msra.mxu0 0.0
      %520 = vmatprep.subr.mxu0 0.0
      %521 = vmatpush2.msra.mxu0 0.0
      %522 = vmatprep.subr.mxu0 0.0
      %523 = vmatpush2.msra.mxu0 0.0
      %524 = vmatprep.subr.mxu0 0.0
      %525 = vmatpush2.msra.mxu0 0.0
      %526 = vmatprep.subr.mxu0 0.0
      %527 = vmatpush2.msra.mxu0 0.0
      %528 = vmatprep.subr.mxu0 0.0
      %529 = vmatpush2.msra.mxu0 0.0
      %530 = vmatprep.subr.mxu0 0.0
      %531 = vmatpush2.msra.mxu0 0.0
      %532 = vmatprep.subr.mxu0 0.0
      %533 = vmatpush2.msra.mxu0 0.0
      %534 = vmatprep.subr.mxu0 0.0
      %535 = vmatpush2.msra.mxu0 0.0
      %536 = vmatprep.subr.mxu0 0.0
      %537 = vmatpush2.msra.mxu0 0.0
      %538 = vmatprep.subr.mxu0 0.0
      %539 = vmatpush2.msra.mxu0 0.0
      %540 = vmatprep.subr.mxu0 0.0
      %541 = vmatpush2.msra.mxu0 0.0
      %542 = vmatprep.mubr.f32.mxu0 0.0
      %543 = vmatmul.mubr.f32.gmra.mxu0 %v261
      %v544 = vpop.f32.mrf.mxu0
      %v545 = vadd.f32 %v476, %v544
      %v546 = vpop.f32.mrf.mxu0
      %547 = vmatprep.mubr.f32.mxu0 0.0
      %548 = vmatmul.mubr.f32.gmra.mxu0 %v264
      %v549 = vpop.f32.mrf.mxu0
      %v550 = vadd.f32 %v476, %v549
      %v551 = vpop.f32.mrf.mxu0
      %552 = vmatprep.mubr.f32.mxu0 0.0
      %553 = vmatmul.mubr.f32.gmra.mxu0 %v267
      %v554 = vpop.f32.mrf.mxu0
      %v555 = vadd.f32 %v476, %v554
      %v556 = vpop.f32.mrf.mxu0
      %557 = vmatprep.mubr.f32.mxu0 0.0
      %558 = vmatmul.mubr.f32.gmra.mxu0 %v270
      %v559 = vpop.f32.mrf.mxu0
      %v560 = vadd.f32 %v476, %v559
      %v561 = vpop.f32.mrf.mxu0
      %562 = vmatprep.mubr.f32.mxu0 0.0
      %563 = vmatmul.mubr.f32.gmra.mxu0 %v273
      %v564 = vpop.f32.mrf.mxu0
      %v565 = vadd.f32 %v476, %v564
      %v566 = vpop.f32.mrf.mxu0
      %567 = vmatprep.mubr.f32.mxu0 0.0
      %568 = vmatmul.mubr.f32.gmra.mxu0 %v276
      %v569 = vpop.f32.mrf.mxu0
      %v570 = vadd.f32 %v476, %v569
      %v571 = vpop.f32.mrf.mxu0
      %572 = vmatprep.mubr.f32.mxu0 0.0
      %573 = vmatmul.mubr.f32.gmra.mxu0 %v279
      %v574 = vpop.f32.mrf.mxu0
      %v575 = vadd.f32 %v476, %v574
      %v576 = vpop.f32.mrf.mxu0
      %577 = vmatprep.mubr.f32.mxu0 0.0
      %578 = vmatmul.mubr.f32.gmra.mxu0 %v282
      %v579 = vpop.f32.mrf.mxu0
      %v580 = vadd.f32 %v476, %v579
      %v581 = vpop.f32.mrf.mxu0
      %582 = vmatprep.mubr.f32.mxu0 0.0
      %583 = vmatmul.mubr.f32.gmra.mxu0 %v285
      %v584 = vpop.f32.mrf.mxu0
      %v585 = vadd.f32 %v476, %v584
      %v586 = vpop.f32.mrf.mxu0
      %587 = vmatprep.mubr.f32.mxu0 0.0
      %588 = vmatmul.mubr.f32.gmra.mxu0 %v288
      %v589 = vpop.f32.mrf.mxu0
      %v590 = vadd.f32 %v476, %v589
      %v591 = vpop.f32.mrf.mxu0
      %592 = vmatprep.mubr.f32.mxu0 0.0
      %593 = vmatmul.mubr.f32.gmra.mxu0 %v291
      %v594 = vpop.f32.mrf.mxu0
      %v595 = vadd.f32 %v476, %v594
      %v596 = vpop.f32.mrf.mxu0
      %597 = vmatprep.mubr.f32.mxu0 0.0
      %598 = vmatmul.mubr.f32.gmra.mxu0 %v294
      %v599 = vpop.f32.mrf.mxu0
      %v600 = vadd.f32 %v476, %v599
      %v601 = vpop.f32.mrf.mxu0
      %602 = vmatprep.mubr.f32.mxu0 0.0
      %603 = vmatmul.mubr.f32.gmra.mxu0 %v297
      %v604 = vpop.f32.mrf.mxu0
      %v605 = vadd.f32 %v476, %v604
      %v606 = vpop.f32.mrf.mxu0
      %607 = vmatprep.mubr.f32.mxu0 0.0
      %608 = vmatmul.mubr.f32.gmra.mxu0 %v300
      %v609 = vpop.f32.mrf.mxu0
      %v610 = vadd.f32 %v476, %v609
      %v611 = vpop.f32.mrf.mxu0
      %612 = vmatprep.mubr.f32.mxu0 0.0
      %613 = vmatmul.mubr.f32.gmra.mxu0 %v303
      %v614 = vpop.f32.mrf.mxu0
      %v615 = vadd.f32 %v476, %v614
      %v616 = vpop.f32.mrf.mxu0
      %617 = vmatprep.mubr.f32.mxu0 0.0
      %618 = vmatmul.mubr.f32.gmra.mxu0 %v306
      %v619 = vpop.f32.mrf.mxu0
      %v620 = vadd.f32 %v476, %v619
      %v621 = vpop.f32.mrf.mxu0
      %622 = vdwg.mxu0
      %623 = vst.msk [vmem:[%s240] sm:$0xff] %vm453, %v545
      %624 = vst.msk [vmem:[%s240 + $0x8] sm:$0xff] %vm453, %v550
      %625 = vst.msk [vmem:[%s240 + $0x10] sm:$0xff] %vm453, %v555
      %626 = vst.msk [vmem:[%s240 + $0x18] sm:$0xff] %vm453, %v560
      %627 = vst.msk [vmem:[%s240 + $0x20] sm:$0xff] %vm453, %v565
      %628 = vst.msk [vmem:[%s240 + $0x28] sm:$0xff] %vm453, %v570
      %629 = vst.msk [vmem:[%s240 + $0x30] sm:$0xff] %vm453, %v575
      %630 = vst.msk [vmem:[%s240 + $0x38] sm:$0xff] %vm453, %v580
      %631 = vst.msk [vmem:[%s240 + $0x40] sm:$0xff] %vm453, %v585
      %632 = vst.msk [vmem:[%s240 + $0x48] sm:$0xff] %vm453, %v590
      %633 = vst.msk [vmem:[%s240 + $0x50] sm:$0xff] %vm453, %v595
      %634 = vst.msk [vmem:[%s240 + $0x58] sm:$0xff] %vm453, %v600
      %635 = vst.msk [vmem:[%s240 + $0x60] sm:$0xff] %vm453, %v605
      %636 = vst.msk [vmem:[%s240 + $0x68] sm:$0xff] %vm453, %v610
      %637 = vst.msk [vmem:[%s240 + $0x70] sm:$0xff] %vm453, %v615
      %638 = vst.msk [vmem:[%s240 + $0x78] sm:$0xff] %vm453, %v620
      %s639 = smul.u32 16, %s17
      %p640 = scmp.lt.s32.totalorder %s639, 31
      %s641 = scalar_select %p640, %s639, 31
      %s642 = smul.addr %s641, 8
      %s643 = scalar_lea.vmem %s4, %s642
      %s644 = smul.u32 16, %s17
      %p645 = scmp.lt.s32.totalorder %s644, 31
      %s646 = scalar_select %p645, %s644, 31
      %s647 = smul.addr %s646, 8
      %s648 = scalar_lea.vmem %s5, %s647
      // Predicated region
      $region37: #{fae_graphconv_forward.4} parent=35 // pred_check
        %p649 = pneg %p124
      $region38: #{fae_graphconv_forward.4} parent=35 // pred_check_branch
        %651 = sbr.rel (%p649) target = $region40
      $region39: #{fae_graphconv_forward.4} parent=35 // pred_region
        %s652 = smul.u32 16, %s17
      $region40: #{fae_graphconv_forward.4} parent=35 // pred_fallthru
        _
      // Predicated region
      $region41: #{fae_graphconv_forward.4} parent=35 // pred_check
        %p653 = pneg %p150
      $region42: #{fae_graphconv_forward.4} parent=35 // pred_check_branch
        %655 = sbr.rel (%p653) target = $region44
      $region43: #{fae_graphconv_forward.4} parent=35 // pred_region
        %s656 = smul.u32 16, %s17
      $region44: #{fae_graphconv_forward.4} parent=35 // pred_fallthru
        _
    $region36: #{fae_graphconv_forward.4} parent=5 // pred_fallthru
      _
    %p657 = scmp.le.s32.totalorder 2, %s12
    // Predicated region
    $region45: #{fae_graphconv_forward.4} parent=5 // pred_check
      %p658 = pneg %p657
    $region46: #{fae_graphconv_forward.4} parent=5 // pred_check_branch
      %660 = sbr.rel (%p658) target = $region48
    $region47: #{fae_graphconv_forward.4} parent=5 // pred_region
      %s661 = ssub.s32 %s12, 2
      // Predicated region
      $region49: #{fae_graphconv_forward.4} parent=47 // pred_check
        %p662 = pneg %p130
      $region50: #{fae_graphconv_forward.4} parent=47 // pred_check_branch
        %664 = sbr.rel (%p662) target = $region52
      $region51: #{fae_graphconv_forward.4} parent=47 // pred_region
        %s665 = smul.u32 16, %s18
        %p666 = scmp.lt.s32.totalorder %s665, 31
        %s667 = scalar_select %p666, %s665, 31
        %s668 = smul.addr %s667, 8
        %s669 = scalar_lea.vmem %s4, %s668
      $region52: #{fae_graphconv_forward.4} parent=47 // pred_fallthru
        _
      // Predicated region
      $region53: #{fae_graphconv_forward.4} parent=47 // pred_check
        %p670 = pneg %p156
      $region54: #{fae_graphconv_forward.4} parent=47 // pred_check_branch
        %672 = sbr.rel (%p670) target = $region56
      $region55: #{fae_graphconv_forward.4} parent=47 // pred_region
        %s673 = smul.u32 16, %s18
        %p674 = scmp.lt.s32.totalorder %s673, 31
        %s675 = scalar_select %p674, %s673, 31
        %s676 = smul.addr %s675, 8
        %s677 = scalar_lea.vmem %s5, %s676
      $region56: #{fae_graphconv_forward.4} parent=47 // pred_fallthru
        _
    $region48: #{fae_graphconv_forward.4} parent=5 // pred_fallthru
      _
  $region6: #{fae_graphconv_forward.4} parent=0 // loop_footer
    %s16 = sadd.s32 1, %s12
  $region7: #{fae_graphconv_forward.4} parent=0 // loop_footer_branch
    %11 = sbr.rel target = $region3
  $region8: #{fae_graphconv_forward.4} parent=0 // loop_exit
    _

// kernel: fae_graphconv_forward.5
$region0: #{fae_graphconv_forward.5}
  #allocation0 [shape = 'u32[]', space=smem, size = 0x4, offset = 0x4, fixed_abs, tag = 'smem constant byte address 0x4 - core index']
  #allocation1 [shape = 'u32[144,128]{1,0:T(1,128)}', space=vmem, size = 0x12000, scoped, tag = 'internal scratch']
  #allocation2 [shape = 'f32[128,64]{1,0:T(8,128)}', space=vmem, size = 0x10000, scoped, tag = 'scratch operand']
  %s0 = inlined_call_operand.vmem [shape: bf16[256,256], index: 0, kind: input, shape index: {}]
  %s1 = inlined_call_operand.vmem [shape: f32[256,64], index: 1, kind: input, shape index: {}]
  %s2 = inlined_call_operand.vmem [shape: f32[256,64], index: 2, kind: input, shape index: {}]
  %s3 = inlined_call_operand.vmem [shape: f32[256,64], index: 3, kind: output, shape index: {}]
  %s4 = sld [smem:[#allocation0]]
  $region94: #{fae_graphconv_forward.5} parent=0
    _
  %s6 = ssub.s32 1, %s4
  %s7 = scalar_select 0, %s6, %s4
  $region1: #{fae_graphconv_forward.5} parent=0
    #allocation3 [shape = 'u8[65536]{0}', space=vmem, size = 0x10000, scoped, tag = 'input window, operand 0']
    loop: start=0, step=1, limit=6
    $region2: #{fae_graphconv_forward.5} parent=1 // loop_pre_header
      _
    $region3: #{fae_graphconv_forward.5} parent=1 // loop_header
      %s9 = sphi 0, %s13
      %p10 = scmp.ge.s32.totalorder %s9, 6
      %s16 = sphi 0, %s28
      %s17 = sphi 0, %s24
      %s18 = sphi 0, %s16
      %s19 = sphi 0, %s17
      %s20 = sphi 0, %s18
      %s21 = sphi 0, %s19
      %s33 = sphi 0, %s35
      %s36 = sphi 0, %s33
      %s37 = sphi 0, %s36
      %s53 = sphi 0, %s37
      %s59 = sphi 0, %s61
      %s62 = sphi 0, %s59
      %s63 = sphi 0, %s62
      %s79 = sphi 0, %s63
      %s85 = sphi 0, %s87
      %s88 = sphi 0, %s85
      %s89 = sphi 0, %s88
      %s105 = sphi 0, %s89
      %s111 = sphi 0, %s113
      %s114 = sphi 0, %s111
      %s115 = sphi 0, %s114
      %s131 = sphi 0, %s115
    $region4: #{fae_graphconv_forward.5} parent=1 // loop_header_branch
      %12 = sbr.rel (%p10) target = $region8
    $region5: #{fae_graphconv_forward.5} parent=1 // loop_body
      %s14 = ssub.s32 %s9, 1
      %s15 = ssub.s32 %s9, 2
      %s22 = sadd.s32 1, %s17
      %p23 = scmp.ge.s32.totalorder %s22, 2
      %s24 = scalar_select %p23, 0, %s22
      %s25 = sadd.s32 1, %s16
      %s26 = scalar_select %p23, %s25, %s16
      %p27 = scmp.ge.s32.totalorder %s26, 2
      %s28 = scalar_select %p27, 0, %s26
      %s29 = ssub.s32 %s16, %s28
      %s30 = ssub.s32 %s17, %s24
      %s31 = sor.u32 %s29, %s30
      %p32 = scmp.eq.s32.totalorder %s31, 0
      %s34 = sadd.s32 %s33, 1
      %s35 = scalar_select %p32, %s33, %s34
      %p38 = pneg %p32
      %p39 = scmp.eq.s32.totalorder %s9, 3
      %p40 = por %p38, %p39
      %p41 = scmp.ne.s32.totalorder %s33, %s36
      %p42 = scmp.eq.s32.totalorder %s9, 0
      %p43 = por %p41, %p42
      %p44 = scmp.ne.s32.totalorder %s33, %s36
      %p45 = scmp.eq.s32.totalorder %s14, 3
      %p46 = por %p44, %p45
      %p47 = scmp.ne.s32.totalorder %s36, %s37
      %p48 = scmp.eq.s32.totalorder %s14, 0
      %p49 = por %p47, %p48
      %p50 = scmp.ne.s32.totalorder %s36, %s37
      %p51 = scmp.eq.s32.totalorder %s15, 3
      %p52 = por %p50, %p51
      %p54 = scmp.ne.s32.totalorder %s37, %s53
      %p55 = scmp.eq.s32.totalorder %s15, 0
      %p56 = por %p54, %p55
      %s57 = ssub.s32 %s17, %s24
      %p58 = scmp.eq.s32.totalorder %s57, 0
      %s60 = sadd.s32 %s59, 1
      %s61 = scalar_select %p58, %s59, %s60
      %p64 = pneg %p58
      %p65 = scmp.eq.s32.totalorder %s9, 3
      %p66 = por %p64, %p65
      %p67 = scmp.ne.s32.totalorder %s59, %s62
      %p68 = scmp.eq.s32.totalorder %s9, 0
      %p69 = por %p67, %p68
      %p70 = scmp.ne.s32.totalorder %s59, %s62
      %p71 = scmp.eq.s32.totalorder %s14, 3
      %p72 = por %p70, %p71
      %p73 = scmp.ne.s32.totalorder %s62, %s63
      %p74 = scmp.eq.s32.totalorder %s14, 0
      %p75 = por %p73, %p74
      %p76 = scmp.ne.s32.totalorder %s62, %s63
      %p77 = scmp.eq.s32.totalorder %s15, 3
      %p78 = por %p76, %p77
      %p80 = scmp.ne.s32.totalorder %s63, %s79
      %p81 = scmp.eq.s32.totalorder %s15, 0
      %p82 = por %p80, %p81
      %s83 = ssub.s32 %s16, %s28
      %p84 = scmp.eq.s32.totalorder %s83, 0
      %s86 = sadd.s32 %s85, 1
      %s87 = scalar_select %p84, %s85, %s86
      %p90 = pneg %p84
      %p91 = scmp.eq.s32.totalorder %s9, 3
      %p92 = por %p90, %p91
      %p93 = scmp.ne.s32.totalorder %s85, %s88
      %p94 = scmp.eq.s32.totalorder %s9, 0
      %p95 = por %p93, %p94
      %p96 = scmp.ne.s32.totalorder %s85, %s88
      %p97 = scmp.eq.s32.totalorder %s14, 3
      %p98 = por %p96, %p97
      %p99 = scmp.ne.s32.totalorder %s88, %s89
      %p100 = scmp.eq.s32.totalorder %s14, 0
      %p101 = por %p99, %p100
      %p102 = scmp.ne.s32.totalorder %s88, %s89
      %p103 = scmp.eq.s32.totalorder %s15, 3
      %p104 = por %p102, %p103
      %p106 = scmp.ne.s32.totalorder %s89, %s105
      %p107 = scmp.eq.s32.totalorder %s15, 0
      %p108 = por %p106, %p107
      %s109 = ssub.s32 %s16, %s28
      %p110 = scmp.eq.s32.totalorder %s109, 0
      %s112 = sadd.s32 %s111, 1
      %s113 = scalar_select %p110, %s111, %s112
      %p116 = pneg %p110
      %p117 = scmp.eq.s32.totalorder %s9, 3
      %p118 = por %p116, %p117
      %p119 = scmp.ne.s32.totalorder %s111, %s114
      %p120 = scmp.eq.s32.totalorder %s9, 0
      %p121 = por %p119, %p120
      %p122 = scmp.ne.s32.totalorder %s111, %s114
      %p123 = scmp.eq.s32.totalorder %s14, 3
      %p124 = por %p122, %p123
      %p125 = scmp.ne.s32.totalorder %s114, %s115
      %p126 = scmp.eq.s32.totalorder %s14, 0
      %p127 = por %p125, %p126
      %p128 = scmp.ne.s32.totalorder %s114, %s115
      %p129 = scmp.eq.s32.totalorder %s15, 3
      %p130 = por %p128, %p129
      %p132 = scmp.ne.s32.totalorder %s115, %s131
      %p133 = scmp.eq.s32.totalorder %s15, 0
      %p134 = por %p132, %p133
      %p135 = scmp.le.s32.totalorder 1, %s9
      %p136 = scmp.lt.s32.totalorder %s9, 5
      %p137 = pnand %p135, %p136
      %p138 = pneg %p137
      // Predicated region
      $region9: #{fae_graphconv_forward.5} parent=5 // pred_check
        _
      $region10: #{fae_graphconv_forward.5} parent=5 // pred_check_branch
        %140 = sbr.rel (%p137) target = $region12
      $region11: #{fae_graphconv_forward.5} parent=5 // pred_region
        %s141 = ssub.s32 %s9, 1
      $region12: #{fae_graphconv_forward.5} parent=5 // pred_fallthru
        _
      %p142 = scmp.lt.s32.totalorder %s9, 4
      // Predicated region
      $region13: #{fae_graphconv_forward.5} parent=5 // pred_check
        %p143 = pneg %p142
      $region14: #{fae_graphconv_forward.5} parent=5 // pred_check_branch
        %145 = sbr.rel (%p143) target = $region16
      $region15: #{fae_graphconv_forward.5} parent=5 // pred_region
        // Predicated region
        $region17: #{fae_graphconv_forward.5} parent=15 // pred_check
          %p146 = pneg %p43
        $region18: #{fae_graphconv_forward.5} parent=15 // pred_check_branch
          %148 = sbr.rel (%p146) target = $region20
        $region19: #{fae_graphconv_forward.5} parent=15 // pred_region
          %s149 = sand.u32 %s33, 1
          %s150 = sand.u32 %s33, 1
          %s151 = smul.addr %s150, 64
          %s152 = scalar_lea.vmem [#allocation3], %s151
          %s153 = smul.u32 16, %s16
          %s154 = smul.addr %s153, 2
          %s155 = sadd.s32 %s17, %s154
          %s156 = smul.addr %s155, 4
          %s157 = scalar_lea.vmem %s0, %s156
          // Predicated region
          $region21: #{fae_graphconv_forward.5} parent=19 // pred_check
            _
          $region22: #{fae_graphconv_forward.5} parent=19 // pred_check_branch
            %159 = sbr.rel (0) target = $region24
          $region23: #{fae_graphconv_forward.5} parent=19 // pred_region
            // Predicated region
            $region25: #{fae_graphconv_forward.5} parent=23 // pred_check
              _
            $region26: #{fae_graphconv_forward.5} parent=23 // pred_check_branch
              %161 = sbr.rel target = $region28
            $region27: #{fae_graphconv_forward.5} parent=23 // pred_region
              // Predicated region
              $region40: #{fae_graphconv_forward.5} parent=27 // pred_check
                _
              $region41: #{fae_graphconv_forward.5} parent=27 // pred_check_branch
                %207 = sbr.rel (0) target = $region43
              $region42: #{fae_graphconv_forward.5} parent=27 // pred_region
                loop: start=0, step=1, limit=1
                $region44: #{fae_graphconv_forward.5} parent=42 // loop_pre_header
                  _
                $region45: #{fae_graphconv_forward.5} parent=42 // loop_header
                  %s209 = sphi 0, %s213
                  %p210 = scmp.ge.s32.totalorder %s209, 1
                  %s214 = sphi %s157, %s157
                  %s215 = sphi %s152, %s152
                $region46: #{fae_graphconv_forward.5} parent=42 // loop_header_branch
                  %212 = sbr.rel (%p210) target = $region50
                $region47: #{fae_graphconv_forward.5} parent=42 // loop_body
                  _
                $region48: #{fae_graphconv_forward.5} parent=42 // loop_footer
                  %s213 = sadd.s32 1, %s209
                $region49: #{fae_graphconv_forward.5} parent=42 // loop_footer_branch
                  %208 = sbr.rel target = $region45
                $region50: #{fae_graphconv_forward.5} parent=42 // loop_exit
                  _
                %s217 = ssub.s32 16, 1
                loop: start=0, step=1, limit=1
                $region51: #{fae_graphconv_forward.5} parent=42 // loop_pre_header
                  _
                $region52: #{fae_graphconv_forward.5} parent=42 // loop_header
                  %s219 = sphi 0, %s223
                  %p220 = scmp.ge.s32.totalorder %s219, 1
                  %s224 = sphi %s157, %s157
                  %s225 = sphi %s152, %s152
                $region53: #{fae_graphconv_forward.5} parent=42 // loop_header_branch
                  %222 = sbr.rel (%p220) target = $region57
                $region54: #{fae_graphconv_forward.5} parent=42 // loop_body
                  %v226 = vld [vmem:[%s224] sm:%s217]
                  %227 = vst [vmem:[%s225] sm:%s217] %v226
                  %v228 = vld [vmem:[%s224 + $0x8] sm:%s217]
                  %229 = vst [vmem:[%s225 + $0x4] sm:%s217] %v228
                  %v230 = vld [vmem:[%s224 + $0x10] sm:%s217]
                  %231 = vst [vmem:[%s225 + $0x8] sm:%s217] %v230
                  %v232 = vld [vmem:[%s224 + $0x18] sm:%s217]
                  %233 = vst [vmem:[%s225 + $0xc] sm:%s217] %v232
                  %v234 = vld [vmem:[%s224 + $0x20] sm:%s217]
                  %235 = vst [vmem:[%s225 + $0x10] sm:%s217] %v234
                  %v236 = vld [vmem:[%s224 + $0x28] sm:%s217]
                  %237 = vst [vmem:[%s225 + $0x14] sm:%s217] %v236
                  %v238 = vld [vmem:[%s224 + $0x30] sm:%s217]
                  %239 = vst [vmem:[%s225 + $0x18] sm:%s217] %v238
                  %v240 = vld [vmem:[%s224 + $0x38] sm:%s217]
                  %241 = vst [vmem:[%s225 + $0x1c] sm:%s217] %v240
                  %v242 = vld [vmem:[%s224 + $0x40] sm:%s217]
                  %243 = vst [vmem:[%s225 + $0x20] sm:%s217] %v242
                  %v244 = vld [vmem:[%s224 + $0x48] sm:%s217]
                  %245 = vst [vmem:[%s225 + $0x24] sm:%s217] %v244
                  %v246 = vld [vmem:[%s224 + $0x50] sm:%s217]
                  %247 = vst [vmem:[%s225 + $0x28] sm:%s217] %v246
                  %v248 = vld [vmem:[%s224 + $0x58] sm:%s217]
                  %249 = vst [vmem:[%s225 + $0x2c] sm:%s217] %v248
                  %v250 = vld [vmem:[%s224 + $0x60] sm:%s217]
                  %251 = vst [vmem:[%s225 + $0x30] sm:%s217] %v250
                  %v252 = vld [vmem:[%s224 + $0x68] sm:%s217]
                  %253 = vst [vmem:[%s225 + $0x34] sm:%s217] %v252
                  %v254 = vld [vmem:[%s224 + $0x70] sm:%s217]
                  %255 = vst [vmem:[%s225 + $0x38] sm:%s217] %v254
                  %v256 = vld [vmem:[%s224 + $0x78] sm:%s217]
                  %257 = vst [vmem:[%s225 + $0x3c] sm:%s217] %v256
                $region55: #{fae_graphconv_forward.5} parent=42 // loop_footer
                  %s223 = sadd.s32 1, %s219
                $region56: #{fae_graphconv_forward.5} parent=42 // loop_footer_branch
                  %218 = sbr.rel target = $region52
                $region57: #{fae_graphconv_forward.5} parent=42 // loop_exit
                  _
              $region43: #{fae_graphconv_forward.5} parent=27 // pred_fallthru
                _
            $region28: #{fae_graphconv_forward.5} parent=23 // pred_fallthru
              _
            // Predicated region
            $region29: #{fae_graphconv_forward.5} parent=23 // pred_check
              _
            $region30: #{fae_graphconv_forward.5} parent=23 // pred_check_branch
              %163 = sbr.rel (0) target = $region32
            $region31: #{fae_graphconv_forward.5} parent=23 // pred_region
              %s165 = ssub.s32 16, 1
              loop: start=0, step=1, limit=1
              $region33: #{fae_graphconv_forward.5} parent=31 // loop_pre_header
                _
              $region34: #{fae_graphconv_forward.5} parent=31 // loop_header
                %s167 = sphi 0, %s171
                %p168 = scmp.ge.s32.totalorder %s167, 1
                %s172 = sphi %s157, %s157
                %s173 = sphi %s152, %s152
              $region35: #{fae_graphconv_forward.5} parent=31 // loop_header_branch
                %170 = sbr.rel (%p168) target = $region39
              $region36: #{fae_graphconv_forward.5} parent=31 // loop_body
                %v174 = vld [vmem:[%s172] sm:%s165]
                %175 = vst [vmem:[%s173] sm:%s165] %v174
                %v176 = vld [vmem:[%s172 + $0x8] sm:%s165]
                %177 = vst [vmem:[%s173 + $0x4] sm:%s165] %v176
                %v178 = vld [vmem:[%s172 + $0x10] sm:%s165]
                %179 = vst [vmem:[%s173 + $0x8] sm:%s165] %v178
                %v180 = vld [vmem:[%s172 + $0x18] sm:%s165]
                %181 = vst [vmem:[%s173 + $0xc] sm:%s165] %v180
                %v182 = vld [vmem:[%s172 + $0x20] sm:%s165]
                %183 = vst [vmem:[%s173 + $0x10] sm:%s165] %v182
                %v184 = vld [vmem:[%s172 + $0x28] sm:%s165]
                %185 = vst [vmem:[%s173 + $0x14] sm:%s165] %v184
                %v186 = vld [vmem:[%s172 + $0x30] sm:%s165]
                %187 = vst [vmem:[%s173 + $0x18] sm:%s165] %v186
                %v188 = vld [vmem:[%s172 + $0x38] sm:%s165]
                %189 = vst [vmem:[%s173 + $0x1c] sm:%s165] %v188
                %v190 = vld [vmem:[%s172 + $0x40] sm:%s165]
                %191 = vst [vmem:[%s173 + $0x20] sm:%s165] %v190
                %v192 = vld [vmem:[%s172 + $0x48] sm:%s165]
                %193 = vst [vmem:[%s173 + $0x24] sm:%s165] %v192
                %v194 = vld [vmem:[%s172 + $0x50] sm:%s165]
                %195 = vst [vmem:[%s173 + $0x28] sm:%s165] %v194
                %v196 = vld [vmem:[%s172 + $0x58] sm:%s165]
                %197 = vst [vmem:[%s173 + $0x2c] sm:%s165] %v196
                %v198 = vld [vmem:[%s172 + $0x60] sm:%s165]
                %199 = vst [vmem:[%s173 + $0x30] sm:%s165] %v198
                %v200 = vld [vmem:[%s172 + $0x68] sm:%s165]
                %201 = vst [vmem:[%s173 + $0x34] sm:%s165] %v200
                %v202 = vld [vmem:[%s172 + $0x70] sm:%s165]
                %203 = vst [vmem:[%s173 + $0x38] sm:%s165] %v202
                %v204 = vld [vmem:[%s172 + $0x78] sm:%s165]
                %205 = vst [vmem:[%s173 + $0x3c] sm:%s165] %v204
              $region37: #{fae_graphconv_forward.5} parent=31 // loop_footer
                %s171 = sadd.s32 1, %s167
              $region38: #{fae_graphconv_forward.5} parent=31 // loop_footer_branch
                %166 = sbr.rel target = $region34
              $region39: #{fae_graphconv_forward.5} parent=31 // loop_exit
                _
            $region32: #{fae_graphconv_forward.5} parent=23 // pred_fallthru
              _
          $region24: #{fae_graphconv_forward.5} parent=19 // pred_fallthru
            _
          %258 = vnop
        $region20: #{fae_graphconv_forward.5} parent=15 // pred_fallthru
          _
        // Predicated region
        $region58: #{fae_graphconv_forward.5} parent=15 // pred_check
          %p259 = pneg %p69
        $region59: #{fae_graphconv_forward.5} parent=15 // pred_check_branch
          %261 = sbr.rel (%p259) target = $region61
        $region60: #{fae_graphconv_forward.5} parent=15 // pred_region
          %s262 = smul.u32 16, %s17
          %p263 = scmp.lt.s32.totalorder %s262, 31
          %s264 = scalar_select %p263, %s262, 31
          %s265 = smul.addr %s264, 8
          %s266 = scalar_lea.vmem %s1, %s265
          %s267 = smul.u32 16, %s17
        $region61: #{fae_graphconv_forward.5} parent=15 // pred_fallthru
          _
        // Predicated region
        $region62: #{fae_graphconv_forward.5} parent=15 // pred_check
          %p268 = pneg %p95
        $region63: #{fae_graphconv_forward.5} parent=15 // pred_check_branch
          %270 = sbr.rel (%p268) target = $region65
        $region64: #{fae_graphconv_forward.5} parent=15 // pred_region
          %s271 = smul.u32 16, %s16
          %p272 = scmp.lt.s32.totalorder %s271, 31
          %s273 = scalar_select %p272, %s271, 31
          %s274 = smul.addr %s273, 8
          %s275 = scalar_lea.vmem %s2, %s274
          %s276 = smul.u32 16, %s16
        $region65: #{fae_graphconv_forward.5} parent=15 // pred_fallthru
          _
      $region16: #{fae_graphconv_forward.5} parent=5 // pred_fallthru
        _
      %p277 = scmp.le.s32.totalorder 1, %s9
      %p278 = scmp.lt.s32.totalorder %s9, 5
      %p279 = pnand %p277, %p278
      %p280 = pneg %p279
      // Predicated region
      $region66: #{fae_graphconv_forward.5} parent=5 // pred_check
        _
      $region67: #{fae_graphconv_forward.5} parent=5 // pred_check_branch
        %282 = sbr.rel (%p279) target = $region69
      $region68: #{fae_graphconv_forward.5} parent=5 // pred_region
        %s283 = ssub.s32 %s9, 1
        %s284 = sand.u32 %s36, 1
        %s285 = sand.u32 %s36, 1
        %s286 = smul.addr %s285, 64
        %s287 = scalar_lea.vmem [#allocation3], %s286
        // Predicated region
        $region70: #{fae_graphconv_forward.5} parent=68 // pred_check
          %p288 = pneg %p49
        $region71: #{fae_graphconv_forward.5} parent=68 // pred_check_branch
          %290 = sbr.rel (%p288) target = $region73
        $region72: #{fae_graphconv_forward.5} parent=68 // pred_region
          _
        $region73: #{fae_graphconv_forward.5} parent=68 // pred_fallthru
          _
        %s291 = sand.u32 %s36, 1
        %s292 = sand.u32 %s36, 1
        %s293 = smul.addr %s292, 64
        %s294 = scalar_lea.vmem [#allocation3], %s293
        %p295 = pneg %p49
        %p296 = pneg %p46
        %s297 = smul.u32 16, %s19
        %p298 = scmp.lt.s32.totalorder %s297, 31
        %s299 = scalar_select %p298, %s297, 31
        %s300 = smul.addr %s299, 8
        %s301 = scalar_lea.vmem %s1, %s300
        %p302 = pneg %p75
        %p303 = pneg %p72
        %s304 = smul.u32 16, %s18
        %p305 = scmp.lt.s32.totalorder %s304, 31
        %s306 = scalar_select %p305, %s304, 31
        %s307 = smul.addr %s306, 8
        %s308 = scalar_lea.vmem %s2, %s307
        %p309 = pneg %p101
        %p310 = pneg %p98
        %p311 = pneg %p127
        %p312 = pneg %p124
        %s313 = smul.u32 16, %s18
        %p314 = scmp.lt.s32.totalorder %s313, 31
        %s315 = scalar_select %p314, %s313, 31
        %s316 = smul.addr %s315, 8
        %s317 = scalar_lea.vmem %s3, %s316
        %s318 = smul.u32 16, %s18
        %s319 = smul.u32 16, %s19
        %p320 = scmp.lt.s32.totalorder %s319, 31
        %s321 = scalar_select %p320, %s319, 31
        %s322 = smul.addr %s321, 8
        %s323 = scalar_lea.vmem %s1, %s322
        %s324 = smul.u32 16, %s19
        %s325 = smul.u32 16, %s18
        %p326 = scmp.lt.s32.totalorder %s325, 31
        %s327 = scalar_select %p326, %s325, 31
        %s328 = smul.addr %s327, 8
        %s329 = scalar_lea.vmem %s2, %s328
        %s330 = smul.u32 16, %s18
        %s331 = smul.u32 16, %s18
        %p332 = scmp.lt.s32.totalorder %s331, 31
        %s333 = scalar_select %p332, %s331, 31
        %s334 = smul.addr %s333, 8
        %s335 = scalar_lea.vmem %s3, %s334
        %s336 = smul.u32 16, %s18
        %p337 = scmp.eq.s32.totalorder %s19, 0
        // Predicated region
        $region74: #{fae_graphconv_forward.5} parent=68 // pred_check
          %p338 = pneg %p337
        $region75: #{fae_graphconv_forward.5} parent=68 // pred_check_branch
          %340 = sbr.rel (%p338) target = $region77
        $region76: #{fae_graphconv_forward.5} parent=68 // pred_region
          %vm341 = vcmask 523264
          %342 = vst.msk [vmem:[#allocation2] sm:$0xff] %vm341, 0.0
          %343 = vst.msk [vmem:[#allocation2 + $0x8] sm:$0xff] %vm341, 0.0
          %344 = vst.msk [vmem:[#allocation2 + $0x10] sm:$0xff] %vm341, 0.0
          %345 = vst.msk [vmem:[#allocation2 + $0x18] sm:$0xff] %vm341, 0.0
          %346 = vst.msk [vmem:[#allocation2 + $0x20] sm:$0xff] %vm341, 0.0
          %347 = vst.msk [vmem:[#allocation2 + $0x28] sm:$0xff] %vm341, 0.0
          %348 = vst.msk [vmem:[#allocation2 + $0x30] sm:$0xff] %vm341, 0.0
          %349 = vst.msk [vmem:[#allocation2 + $0x38] sm:$0xff] %vm341, 0.0
          %350 = vst.msk [vmem:[#allocation2 + $0x40] sm:$0xff] %vm341, 0.0
          %351 = vst.msk [vmem:[#allocation2 + $0x48] sm:$0xff] %vm341, 0.0
          %352 = vst.msk [vmem:[#allocation2 + $0x50] sm:$0xff] %vm341, 0.0
          %353 = vst.msk [vmem:[#allocation2 + $0x58] sm:$0xff] %vm341, 0.0
          %354 = vst.msk [vmem:[#allocation2 + $0x60] sm:$0xff] %vm341, 0.0
          %355 = vst.msk [vmem:[#allocation2 + $0x68] sm:$0xff] %vm341, 0.0
          %356 = vst.msk [vmem:[#allocation2 + $0x70] sm:$0xff] %vm341, 0.0
          %357 = vst.msk [vmem:[#allocation2 + $0x78] sm:$0xff] %vm341, 0.0
        $region77: #{fae_graphconv_forward.5} parent=68 // pred_fallthru
          _
        %v358 = vld [vmem:[%s287] sm:$0xf]
        %v359 = vld [vmem:[%s287 + $0x4] sm:$0xf]
        %v360 = vld [vmem:[%s287 + $0x8] sm:$0xf]
        %v361 = vld [vmem:[%s287 + $0xc] sm:$0xf]
        %v362 = vld [vmem:[%s287 + $0x10] sm:$0xf]
        %v363 = vld [vmem:[%s287 + $0x14] sm:$0xf]
        %v364 = vld [vmem:[%s287 + $0x18] sm:$0xf]
        %v365 = vld [vmem:[%s287 + $0x1c] sm:$0xf]
        %v366 = vld [vmem:[%s287 + $0x20] sm:$0xf]
        %v367 = vld [vmem:[%s287 + $0x24] sm:$0xf]
        %v368 = vld [vmem:[%s287 + $0x28] sm:$0xf]
        %v369 = vld [vmem:[%s287 + $0x2c] sm:$0xf]
        %v370 = vld [vmem:[%s287 + $0x30] sm:$0xf]
        %v371 = vld [vmem:[%s287 + $0x34] sm:$0xf]
        %v372 = vld [vmem:[%s287 + $0x38] sm:$0xf]
        %v373 = vld [vmem:[%s287 + $0x3c] sm:$0xf]
        %v374 = vunpack.c.l.bf16 %v358
        %v375 = vunpack.c.l.bf16 %v359
        %v376 = vunpack.c.l.bf16 %v360
        %v377 = vunpack.c.l.bf16 %v361
        %v378 = vunpack.c.l.bf16 %v362
        %v379 = vunpack.c.l.bf16 %v363
        %v380 = vunpack.c.l.bf16 %v364
        %v381 = vunpack.c.l.bf16 %v365
        %v382 = vunpack.c.l.bf16 %v366
        %v383 = vunpack.c.l.bf16 %v367
        %v384 = vunpack.c.l.bf16 %v368
        %v385 = vunpack.c.l.bf16 %v369
        %v386 = vunpack.c.l.bf16 %v370
        %v387 = vunpack.c.l.bf16 %v371
        %v388 = vunpack.c.l.bf16 %v372
        %v389 = vunpack.c.l.bf16 %v373
        %v390 = vld [vmem:[#allocation2] sm:$0xff]
        %v391 = vld [vmem:[#allocation2 + $0x8] sm:$0xff]
        %v392 = vld [vmem:[#allocation2 + $0x10] sm:$0xff]
        %v393 = vld [vmem:[#allocation2 + $0x18] sm:$0xff]
        %v394 = vld [vmem:[#allocation2 + $0x20] sm:$0xff]
        %v395 = vld [vmem:[#allocation2 + $0x28] sm:$0xff]
        %v396 = vld [vmem:[#allocation2 + $0x30] sm:$0xff]
        %v397 = vld [vmem:[#allocation2 + $0x38] sm:$0xff]
        %v398 = vld [vmem:[#allocation2 + $0x40] sm:$0xff]
        %v399 = vld [vmem:[#allocation2 + $0x48] sm:$0xff]
        %v400 = vld [vmem:[#allocation2 + $0x50] sm:$0xff]
        %v401 = vld [vmem:[#allocation2 + $0x58] sm:$0xff]
        %v402 = vld [vmem:[#allocation2 + $0x60] sm:$0xff]
        %v403 = vld [vmem:[#allocation2 + $0x68] sm:$0xff]
        %v404 = vld [vmem:[#allocation2 + $0x70] sm:$0xff]
        %v405 = vld [vmem:[#allocation2 + $0x78] sm:$0xff]
        %v406 = vld [vmem:[%s323] sm:$0xff]
        %v407 = vld [vmem:[%s323 + $0x8] sm:$0xff]
        %v408 = vld [vmem:[%s323 + $0x10] sm:$0xff]
        %v409 = vld [vmem:[%s323 + $0x18] sm:$0xff]
        %v410 = vld [vmem:[%s323 + $0x20] sm:$0xff]
        %v411 = vld [vmem:[%s323 + $0x28] sm:$0xff]
        %v412 = vld [vmem:[%s323 + $0x30] sm:$0xff]
        %v413 = vld [vmem:[%s323 + $0x38] sm:$0xff]
        %v414 = vld [vmem:[%s323 + $0x40] sm:$0xff]
        %v415 = vld [vmem:[%s323 + $0x48] sm:$0xff]
        %v416 = vld [vmem:[%s323 + $0x50] sm:$0xff]
        %v417 = vld [vmem:[%s323 + $0x58] sm:$0xff]
        %v418 = vld [vmem:[%s323 + $0x60] sm:$0xff]
        %v419 = vld [vmem:[%s323 + $0x68] sm:$0xff]
        %v420 = vld [vmem:[%s323 + $0x70] sm:$0xff]
        %v421 = vld [vmem:[%s323 + $0x78] sm:$0xff]
        %422 = vmatprep.subr.mxu0 0.0
        %423 = vmatpush1.msra.mxu0 %v421
        %424 = vmatprep.subr.mxu0 0.0
        %425 = vmatpush1.msra.mxu0 %v420
        %426 = vmatprep.subr.mxu0 0.0
        %427 = vmatpush1.msra.mxu0 %v419
        %428 = vmatprep.subr.mxu0 0.0
        %429 = vmatpush1.msra.mxu0 %v418
        %430 = vmatprep.subr.mxu0 0.0
        %431 = vmatpush1.msra.mxu0 %v417
        %432 = vmatprep.subr.mxu0 0.0
        %433 = vmatpush1.msra.mxu0 %v416
        %434 = vmatprep.subr.mxu0 0.0
        %435 = vmatpush1.msra.mxu0 %v415
        %436 = vmatprep.subr.mxu0 0.0
        %437 = vmatpush1.msra.mxu0 %v414
        %438 = vmatprep.subr.mxu0 0.0
        %439 = vmatpush1.msra.mxu0 %v413
        %440 = vmatprep.subr.mxu0 0.0
        %441 = vmatpush1.msra.mxu0 %v412
        %442 = vmatprep.subr.mxu0 0.0
        %443 = vmatpush1.msra.mxu0 %v411
        %444 = vmatprep.subr.mxu0 0.0
        %445 = vmatpush1.msra.mxu0 %v410
        %446 = vmatprep.subr.mxu0 0.0
        %447 = vmatpush1.msra.mxu0 %v409
        %448 = vmatprep.subr.mxu0 0.0
        %449 = vmatpush1.msra.mxu0 %v408
        %450 = vmatprep.subr.mxu0 0.0
        %451 = vmatpush1.msra.mxu0 %v407
        %452 = vmatprep.subr.mxu0 0.0
        %453 = vmatpush1.msra.mxu0 %v406
        %454 = vmatprep.subr.mxu0 0.0
        %455 = vmatpush2.msra.mxu0 0.0
        %456 = vmatprep.subr.mxu0 0.0
        %457 = vmatpush2.msra.mxu0 0.0
        %458 = vmatprep.subr.mxu0 0.0
        %459 = vmatpush2.msra.mxu0 0.0
        %460 = vmatprep.subr.mxu0 0.0
        %461 = vmatpush2.msra.mxu0 0.0
        %462 = vmatprep.subr.mxu0 0.0
        %463 = vmatpush2.msra.mxu0 0.0
        %464 = vmatprep.subr.mxu0 0.0
        %465 = vmatpush2.msra.mxu0 0.0
        %466 = vmatprep.subr.mxu0 0.0
        %467 = vmatpush2.msra.mxu0 0.0
        %468 = vmatprep.subr.mxu0 0.0
        %469 = vmatpush2.msra.mxu0 0.0
        %470 = vmatprep.subr.mxu0 0.0
        %471 = vmatpush2.msra.mxu0 0.0
        %472 = vmatprep.subr.mxu0 0.0
        %473 = vmatpush2.msra.mxu0 0.0
        %474 = vmatprep.subr.mxu0 0.0
        %475 = vmatpush2.msra.mxu0 0.0
        %476 = vmatprep.subr.mxu0 0.0
        %477 = vmatpush2.msra.mxu0 0.0
        %478 = vmatprep.subr.mxu0 0.0
        %479 = vmatpush2.msra.mxu0 0.0
        %480 = vmatprep.subr.mxu0 0.0
        %481 = vmatpush2.msra.mxu0 0.0
        %482 = vmatprep.subr.mxu0 0.0
        %483 = vmatpush2.msra.mxu0 0.0
        %484 = vmatprep.subr.mxu0 0.0
        %485 = vmatpush2.msra.mxu0 0.0
        %486 = vmatprep.mubr.f32.mxu0 0.0
        %487 = vmatmul.mubr.f32.gmra.mxu0 %v374
        %v488 = vpop.f32.mrf.mxu0
        %v489 = vadd.f32 0.0, %v488
        %v490 = vpop.f32.mrf.mxu0
        %491 = vmatprep.mubr.f32.mxu0 0.0
        %492 = vmatmul.mubr.f32.gmra.mxu0 %v375
        %v493 = vpop.f32.mrf.mxu0
        %v494 = vadd.f32 0.0, %v493
        %v495 = vpop.f32.mrf.mxu0
        %496 = vmatprep.mubr.f32.mxu0 0.0
        %497 = vmatmul.mubr.f32.gmra.mxu0 %v376
        %v498 = vpop.f32.mrf.mxu0
        %v499 = vadd.f32 0.0, %v498
        %v500 = vpop.f32.mrf.mxu0
        %501 = vmatprep.mubr.f32.mxu0 0.0
        %502 = vmatmul.mubr.f32.gmra.mxu0 %v377
        %v503 = vpop.f32.mrf.mxu0
        %v504 = vadd.f32 0.0, %v503
        %v505 = vpop.f32.mrf.mxu0
        %506 = vmatprep.mubr.f32.mxu0 0.0
        %507 = vmatmul.mubr.f32.gmra.mxu0 %v378
        %v508 = vpop.f32.mrf.mxu0
        %v509 = vadd.f32 0.0, %v508
        %v510 = vpop.f32.mrf.mxu0
        %511 = vmatprep.mubr.f32.mxu0 0.0
        %512 = vmatmul.mubr.f32.gmra.mxu0 %v379
        %v513 = vpop.f32.mrf.mxu0
        %v514 = vadd.f32 0.0, %v513
        %v515 = vpop.f32.mrf.mxu0
        %516 = vmatprep.mubr.f32.mxu0 0.0
        %517 = vmatmul.mubr.f32.gmra.mxu0 %v380
        %v518 = vpop.f32.mrf.mxu0
        %v519 = vadd.f32 0.0, %v518
        %v520 = vpop.f32.mrf.mxu0
        %521 = vmatprep.mubr.f32.mxu0 0.0
        %522 = vmatmul.mubr.f32.gmra.mxu0 %v381
        %v523 = vpop.f32.mrf.mxu0
        %v524 = vadd.f32 0.0, %v523
        %v525 = vpop.f32.mrf.mxu0
        %526 = vmatprep.mubr.f32.mxu0 0.0
        %527 = vmatmul.mubr.f32.gmra.mxu0 %v382
        %v528 = vpop.f32.mrf.mxu0
        %v529 = vadd.f32 0.0, %v528
        %v530 = vpop.f32.mrf.mxu0
        %531 = vmatprep.mubr.f32.mxu0 0.0
        %532 = vmatmul.mubr.f32.gmra.mxu0 %v383
        %v533 = vpop.f32.mrf.mxu0
        %v534 = vadd.f32 0.0, %v533
        %v535 = vpop.f32.mrf.mxu0
        %536 = vmatprep.mubr.f32.mxu0 0.0
        %537 = vmatmul.mubr.f32.gmra.mxu0 %v384
        %v538 = vpop.f32.mrf.mxu0
        %v539 = vadd.f32 0.0, %v538
        %v540 = vpop.f32.mrf.mxu0
        %541 = vmatprep.mubr.f32.mxu0 0.0
        %542 = vmatmul.mubr.f32.gmra.mxu0 %v385
        %v543 = vpop.f32.mrf.mxu0
        %v544 = vadd.f32 0.0, %v543
        %v545 = vpop.f32.mrf.mxu0
        %546 = vmatprep.mubr.f32.mxu0 0.0
        %547 = vmatmul.mubr.f32.gmra.mxu0 %v386
        %v548 = vpop.f32.mrf.mxu0
        %v549 = vadd.f32 0.0, %v548
        %v550 = vpop.f32.mrf.mxu0
        %551 = vmatprep.mubr.f32.mxu0 0.0
        %552 = vmatmul.mubr.f32.gmra.mxu0 %v387
        %v553 = vpop.f32.mrf.mxu0
        %v554 = vadd.f32 0.0, %v553
        %v555 = vpop.f32.mrf.mxu0
        %556 = vmatprep.mubr.f32.mxu0 0.0
        %557 = vmatmul.mubr.f32.gmra.mxu0 %v388
        %v558 = vpop.f32.mrf.mxu0
        %v559 = vadd.f32 0.0, %v558
        %v560 = vpop.f32.mrf.mxu0
        %561 = vmatprep.mubr.f32.mxu0 0.0
        %562 = vmatmul.mubr.f32.gmra.mxu0 %v389
        %v563 = vpop.f32.mrf.mxu0
        %v564 = vadd.f32 0.0, %v563
        %v565 = vpop.f32.mrf.mxu0
        %566 = vdwg.mxu0
        %v567 = vadd.f32 %v390, %v489
        %v568 = vadd.f32 %v391, %v494
        %v569 = vadd.f32 %v392, %v499
        %v570 = vadd.f32 %v393, %v504
        %v571 = vadd.f32 %v394, %v509
        %v572 = vadd.f32 %v395, %v514
        %v573 = vadd.f32 %v396, %v519
        %v574 = vadd.f32 %v397, %v524
        %v575 = vadd.f32 %v398, %v529
        %v576 = vadd.f32 %v399, %v534
        %v577 = vadd.f32 %v400, %v539
        %v578 = vadd.f32 %v401, %v544
        %v579 = vadd.f32 %v402, %v549
        %v580 = vadd.f32 %v403, %v554
        %v581 = vadd.f32 %v404, %v559
        %v582 = vadd.f32 %v405, %v564
        %vm583 = vcmask 523264
        %584 = vst.msk [vmem:[#allocation2] sm:$0xff] %vm583, %v567
        %585 = vst.msk [vmem:[#allocation2 + $0x8] sm:$0xff] %vm583, %v568
        %586 = vst.msk [vmem:[#allocation2 + $0x10] sm:$0xff] %vm583, %v569
        %587 = vst.msk [vmem:[#allocation2 + $0x18] sm:$0xff] %vm583, %v570
        %588 = vst.msk [vmem:[#allocation2 + $0x20] sm:$0xff] %vm583, %v571
        %589 = vst.msk [vmem:[#allocation2 + $0x28] sm:$0xff] %vm583, %v572
        %590 = vst.msk [vmem:[#allocation2 + $0x30] sm:$0xff] %vm583, %v573
        %591 = vst.msk [vmem:[#allocation2 + $0x38] sm:$0xff] %vm583, %v574
        %592 = vst.msk [vmem:[#allocation2 + $0x40] sm:$0xff] %vm583, %v575
        %593 = vst.msk [vmem:[#allocation2 + $0x48] sm:$0xff] %vm583, %v576
        %594 = vst.msk [vmem:[#allocation2 + $0x50] sm:$0xff] %vm583, %v577
        %595 = vst.msk [vmem:[#allocation2 + $0x58] sm:$0xff] %vm583, %v578
        %596 = vst.msk [vmem:[#allocation2 + $0x60] sm:$0xff] %vm583, %v579
        %597 = vst.msk [vmem:[#allocation2 + $0x68] sm:$0xff] %vm583, %v580
        %598 = vst.msk [vmem:[#allocation2 + $0x70] sm:$0xff] %vm583, %v581
        %599 = vst.msk [vmem:[#allocation2 + $0x78] sm:$0xff] %vm583, %v582
        %p600 = scmp.eq.s32.totalorder %s19, 1
        // Predicated region
        $region78: #{fae_graphconv_forward.5} parent=68 // pred_check
          %p601 = pneg %p600
        $region79: #{fae_graphconv_forward.5} parent=68 // pred_check_branch
          %603 = sbr.rel (%p601) target = $region81
        $region80: #{fae_graphconv_forward.5} parent=68 // pred_region
          %v604 = vld [vmem:[#allocation2] sm:$0xff]
          %v605 = vld [vmem:[#allocation2 + $0x8] sm:$0xff]
          %v606 = vld [vmem:[#allocation2 + $0x10] sm:$0xff]
          %v607 = vld [vmem:[#allocation2 + $0x18] sm:$0xff]
          %v608 = vld [vmem:[#allocation2 + $0x20] sm:$0xff]
          %v609 = vld [vmem:[#allocation2 + $0x28] sm:$0xff]
          %v610 = vld [vmem:[#allocation2 + $0x30] sm:$0xff]
          %v611 = vld [vmem:[#allocation2 + $0x38] sm:$0xff]
          %v612 = vld [vmem:[#allocation2 + $0x40] sm:$0xff]
          %v613 = vld [vmem:[#allocation2 + $0x48] sm:$0xff]
          %v614 = vld [vmem:[#allocation2 + $0x50] sm:$0xff]
          %v615 = vld [vmem:[#allocation2 + $0x58] sm:$0xff]
          %v616 = vld [vmem:[#allocation2 + $0x60] sm:$0xff]
          %v617 = vld [vmem:[#allocation2 + $0x68] sm:$0xff]
          %v618 = vld [vmem:[#allocation2 + $0x70] sm:$0xff]
          %v619 = vld [vmem:[#allocation2 + $0x78] sm:$0xff]
          %v620 = vld [vmem:[%s329] sm:$0xff]
          %v621 = vld [vmem:[%s329 + $0x8] sm:$0xff]
          %v622 = vld [vmem:[%s329 + $0x10] sm:$0xff]
          %v623 = vld [vmem:[%s329 + $0x18] sm:$0xff]
          %v624 = vld [vmem:[%s329 + $0x20] sm:$0xff]
          %v625 = vld [vmem:[%s329 + $0x28] sm:$0xff]
          %v626 = vld [vmem:[%s329 + $0x30] sm:$0xff]
          %v627 = vld [vmem:[%s329 + $0x38] sm:$0xff]
          %v628 = vld [vmem:[%s329 + $0x40] sm:$0xff]
          %v629 = vld [vmem:[%s329 + $0x48] sm:$0xff]
          %v630 = vld [vmem:[%s329 + $0x50] sm:$0xff]
          %v631 = vld [vmem:[%s329 + $0x58] sm:$0xff]
          %v632 = vld [vmem:[%s329 + $0x60] sm:$0xff]
          %v633 = vld [vmem:[%s329 + $0x68] sm:$0xff]
          %v634 = vld [vmem:[%s329 + $0x70] sm:$0xff]
          %v635 = vld [vmem:[%s329 + $0x78] sm:$0xff]
          %v636 = vadd.f32 %v604, %v620
          %v637 = vadd.f32 %v605, %v621
          %v638 = vadd.f32 %v606, %v622
          %v639 = vadd.f32 %v607, %v623
          %v640 = vadd.f32 %v608, %v624
          %v641 = vadd.f32 %v609, %v625
          %v642 = vadd.f32 %v610, %v626
          %v643 = vadd.f32 %v611, %v627
          %v644 = vadd.f32 %v612, %v628
          %v645 = vadd.f32 %v613, %v629
          %v646 = vadd.f32 %v614, %v630
          %v647 = vadd.f32 %v615, %v631
          %v648 = vadd.f32 %v616, %v632
          %v649 = vadd.f32 %v617, %v633
          %v650 = vadd.f32 %v618, %v634
          %v651 = vadd.f32 %v619, %v635
          %v652 = vmax.f32 %v636, 0.0
          %v653 = vmax.f32 %v637, 0.0
          %v654 = vmax.f32 %v638, 0.0
          %v655 = vmax.f32 %v639, 0.0
          %v656 = vmax.f32 %v640, 0.0
          %v657 = vmax.f32 %v641, 0.0
          %v658 = vmax.f32 %v642, 0.0
          %v659 = vmax.f32 %v643, 0.0
          %v660 = vmax.f32 %v644, 0.0
          %v661 = vmax.f32 %v645, 0.0
          %v662 = vmax.f32 %v646, 0.0
          %v663 = vmax.f32 %v647, 0.0
          %v664 = vmax.f32 %v648, 0.0
          %v665 = vmax.f32 %v649, 0.0
          %v666 = vmax.f32 %v650, 0.0
          %v667 = vmax.f32 %v651, 0.0
          %668 = vst.msk [vmem:[%s335] sm:$0xff] %vm583, %v652
          %669 = vst.msk [vmem:[%s335 + $0x8] sm:$0xff] %vm583, %v653
          %670 = vst.msk [vmem:[%s335 + $0x10] sm:$0xff] %vm583, %v654
          %671 = vst.msk [vmem:[%s335 + $0x18] sm:$0xff] %vm583, %v655
          %672 = vst.msk [vmem:[%s335 + $0x20] sm:$0xff] %vm583, %v656
          %673 = vst.msk [vmem:[%s335 + $0x28] sm:$0xff] %vm583, %v657
          %674 = vst.msk [vmem:[%s335 + $0x30] sm:$0xff] %vm583, %v658
          %675 = vst.msk [vmem:[%s335 + $0x38] sm:$0xff] %vm583, %v659
          %676 = vst.msk [vmem:[%s335 + $0x40] sm:$0xff] %vm583, %v660
          %677 = vst.msk [vmem:[%s335 + $0x48] sm:$0xff] %vm583, %v661
          %678 = vst.msk [vmem:[%s335 + $0x50] sm:$0xff] %vm583, %v662
          %679 = vst.msk [vmem:[%s335 + $0x58] sm:$0xff] %vm583, %v663
          %680 = vst.msk [vmem:[%s335 + $0x60] sm:$0xff] %vm583, %v664
          %681 = vst.msk [vmem:[%s335 + $0x68] sm:$0xff] %vm583, %v665
          %682 = vst.msk [vmem:[%s335 + $0x70] sm:$0xff] %vm583, %v666
          %683 = vst.msk [vmem:[%s335 + $0x78] sm:$0xff] %vm583, %v667
        $region81: #{fae_graphconv_forward.5} parent=68 // pred_fallthru
          _
        %s684 = smul.u32 16, %s18
        %p685 = scmp.lt.s32.totalorder %s684, 31
        %s686 = scalar_select %p685, %s684, 31
        %s687 = smul.addr %s686, 8
        %s688 = scalar_lea.vmem %s3, %s687
        // Predicated region
        $region82: #{fae_graphconv_forward.5} parent=68 // pred_check
          %p689 = pneg %p124
        $region83: #{fae_graphconv_forward.5} parent=68 // pred_check_branch
          %691 = sbr.rel (%p689) target = $region85
        $region84: #{fae_graphconv_forward.5} parent=68 // pred_region
          %s692 = smul.u32 16, %s18
        $region85: #{fae_graphconv_forward.5} parent=68 // pred_fallthru
          _
      $region69: #{fae_graphconv_forward.5} parent=5 // pred_fallthru
        _
      %p693 = scmp.le.s32.totalorder 2, %s9
      // Predicated region
      $region86: #{fae_graphconv_forward.5} parent=5 // pred_check
        %p694 = pneg %p693
      $region87: #{fae_graphconv_forward.5} parent=5 // pred_check_branch
        %696 = sbr.rel (%p694) target = $region89
      $region88: #{fae_graphconv_forward.5} parent=5 // pred_region
        %s697 = ssub.s32 %s9, 2
        // Predicated region
        $region90: #{fae_graphconv_forward.5} parent=88 // pred_check
          %p698 = pneg %p130
        $region91: #{fae_graphconv_forward.5} parent=88 // pred_check_branch
          %700 = sbr.rel (%p698) target = $region93
        $region92: #{fae_graphconv_forward.5} parent=88 // pred_region
          %s701 = smul.u32 16, %s20
          %p702 = scmp.lt.s32.totalorder %s701, 31
          %s703 = scalar_select %p702, %s701, 31
          %s704 = smul.addr %s703, 8
          %s705 = scalar_lea.vmem %s3, %s704
        $region93: #{fae_graphconv_forward.5} parent=88 // pred_fallthru
          _
      $region89: #{fae_graphconv_forward.5} parent=5 // pred_fallthru
        _
    $region6: #{fae_graphconv_forward.5} parent=1 // loop_footer
      %s13 = sadd.s32 1, %s9
    $region7: #{fae_graphconv_forward.5} parent=1 // loop_footer_branch
      %8 = sbr.rel target = $region3
    $region8: #{fae_graphconv_forward.5} parent=1 // loop_exit
      _

// kernel: fae_graphconv_forward.7
$region0: #{fae_graphconv_forward.7}
  #allocation0 [shape = 'u32[]', space=smem, size = 0x4, offset = 0x4, fixed_abs, tag = 'smem constant byte address 0x4 - core index']
  #allocation1 [shape = 'u32[144,128]{1,0:T(1,128)}', space=vmem, size = 0x12000, scoped, tag = 'internal scratch']
  #allocation2 [shape = 'f32[128,32]{1,0:T(8,128)}', space=vmem, size = 0x10000, scoped, tag = 'scratch operand']
  %s0 = inlined_call_operand.vmem [shape: bf16[256,256], index: 0, kind: input, shape index: {}]
  %s1 = inlined_call_operand.vmem [shape: f32[256,32], index: 1, kind: input, shape index: {}]
  %s2 = inlined_call_operand.vmem [shape: f32[256,32], index: 2, kind: input, shape index: {}]
  %s3 = inlined_call_operand.vmem [shape: f32[256,32], index: 3, kind: output, shape index: {}]
  %s4 = sld [smem:[#allocation0]]
  $region94: #{fae_graphconv_forward.7} parent=0
    _
  %s6 = ssub.s32 1, %s4
  %s7 = scalar_select 0, %s6, %s4
  $region1: #{fae_graphconv_forward.7} parent=0
    #allocation3 [shape = 'u8[65536]{0}', space=vmem, size = 0x10000, scoped, tag = 'input window, operand 0']
    loop: start=0, step=1, limit=6
    $region2: #{fae_graphconv_forward.7} parent=1 // loop_pre_header
      _
    $region3: #{fae_graphconv_forward.7} parent=1 // loop_header
      %s9 = sphi 0, %s13
      %p10 = scmp.ge.s32.totalorder %s9, 6
      %s16 = sphi 0, %s28
      %s17 = sphi 0, %s24
      %s18 = sphi 0, %s16
      %s19 = sphi 0, %s17
      %s20 = sphi 0, %s18
      %s21 = sphi 0, %s19
      %s33 = sphi 0, %s35
      %s36 = sphi 0, %s33
      %s37 = sphi 0, %s36
      %s53 = sphi 0, %s37
      %s59 = sphi 0, %s61
      %s62 = sphi 0, %s59
      %s63 = sphi 0, %s62
      %s79 = sphi 0, %s63
      %s85 = sphi 0, %s87
      %s88 = sphi 0, %s85
      %s89 = sphi 0, %s88
      %s105 = sphi 0, %s89
      %s111 = sphi 0, %s113
      %s114 = sphi 0, %s111
      %s115 = sphi 0, %s114
      %s131 = sphi 0, %s115
    $region4: #{fae_graphconv_forward.7} parent=1 // loop_header_branch
      %12 = sbr.rel (%p10) target = $region8
    $region5: #{fae_graphconv_forward.7} parent=1 // loop_body
      %s14 = ssub.s32 %s9, 1
      %s15 = ssub.s32 %s9, 2
      %s22 = sadd.s32 1, %s17
      %p23 = scmp.ge.s32.totalorder %s22, 2
      %s24 = scalar_select %p23, 0, %s22
      %s25 = sadd.s32 1, %s16
      %s26 = scalar_select %p23, %s25, %s16
      %p27 = scmp.ge.s32.totalorder %s26, 2
      %s28 = scalar_select %p27, 0, %s26
      %s29 = ssub.s32 %s16, %s28
      %s30 = ssub.s32 %s17, %s24
      %s31 = sor.u32 %s29, %s30
      %p32 = scmp.eq.s32.totalorder %s31, 0
      %s34 = sadd.s32 %s33, 1
      %s35 = scalar_select %p32, %s33, %s34
      %p38 = pneg %p32
      %p39 = scmp.eq.s32.totalorder %s9, 3
      %p40 = por %p38, %p39
      %p41 = scmp.ne.s32.totalorder %s33, %s36
      %p42 = scmp.eq.s32.totalorder %s9, 0
      %p43 = por %p41, %p42
      %p44 = scmp.ne.s32.totalorder %s33, %s36
      %p45 = scmp.eq.s32.totalorder %s14, 3
      %p46 = por %p44, %p45
      %p47 = scmp.ne.s32.totalorder %s36, %s37
      %p48 = scmp.eq.s32.totalorder %s14, 0
      %p49 = por %p47, %p48
      %p50 = scmp.ne.s32.totalorder %s36, %s37
      %p51 = scmp.eq.s32.totalorder %s15, 3
      %p52 = por %p50, %p51
      %p54 = scmp.ne.s32.totalorder %s37, %s53
      %p55 = scmp.eq.s32.totalorder %s15, 0
      %p56 = por %p54, %p55
      %s57 = ssub.s32 %s17, %s24
      %p58 = scmp.eq.s32.totalorder %s57, 0
      %s60 = sadd.s32 %s59, 1
      %s61 = scalar_select %p58, %s59, %s60
      %p64 = pneg %p58
      %p65 = scmp.eq.s32.totalorder %s9, 3
      %p66 = por %p64, %p65
      %p67 = scmp.ne.s32.totalorder %s59, %s62
      %p68 = scmp.eq.s32.totalorder %s9, 0
      %p69 = por %p67, %p68
      %p70 = scmp.ne.s32.totalorder %s59, %s62
      %p71 = scmp.eq.s32.totalorder %s14, 3
      %p72 = por %p70, %p71
      %p73 = scmp.ne.s32.totalorder %s62, %s63
      %p74 = scmp.eq.s32.totalorder %s14, 0
      %p75 = por %p73, %p74
      %p76 = scmp.ne.s32.totalorder %s62, %s63
      %p77 = scmp.eq.s32.totalorder %s15, 3
      %p78 = por %p76, %p77
      %p80 = scmp.ne.s32.totalorder %s63, %s79
      %p81 = scmp.eq.s32.totalorder %s15, 0
      %p82 = por %p80, %p81
      %s83 = ssub.s32 %s16, %s28
      %p84 = scmp.eq.s32.totalorder %s83, 0
      %s86 = sadd.s32 %s85, 1
      %s87 = scalar_select %p84, %s85, %s86
      %p90 = pneg %p84
      %p91 = scmp.eq.s32.totalorder %s9, 3
      %p92 = por %p90, %p91
      %p93 = scmp.ne.s32.totalorder %s85, %s88
      %p94 = scmp.eq.s32.totalorder %s9, 0
      %p95 = por %p93, %p94
      %p96 = scmp.ne.s32.totalorder %s85, %s88
      %p97 = scmp.eq.s32.totalorder %s14, 3
      %p98 = por %p96, %p97
      %p99 = scmp.ne.s32.totalorder %s88, %s89
      %p100 = scmp.eq.s32.totalorder %s14, 0
      %p101 = por %p99, %p100
      %p102 = scmp.ne.s32.totalorder %s88, %s89
      %p103 = scmp.eq.s32.totalorder %s15, 3
      %p104 = por %p102, %p103
      %p106 = scmp.ne.s32.totalorder %s89, %s105
      %p107 = scmp.eq.s32.totalorder %s15, 0
      %p108 = por %p106, %p107
      %s109 = ssub.s32 %s16, %s28
      %p110 = scmp.eq.s32.totalorder %s109, 0
      %s112 = sadd.s32 %s111, 1
      %s113 = scalar_select %p110, %s111, %s112
      %p116 = pneg %p110
      %p117 = scmp.eq.s32.totalorder %s9, 3
      %p118 = por %p116, %p117
      %p119 = scmp.ne.s32.totalorder %s111, %s114
      %p120 = scmp.eq.s32.totalorder %s9, 0
      %p121 = por %p119, %p120
      %p122 = scmp.ne.s32.totalorder %s111, %s114
      %p123 = scmp.eq.s32.totalorder %s14, 3
      %p124 = por %p122, %p123
      %p125 = scmp.ne.s32.totalorder %s114, %s115
      %p126 = scmp.eq.s32.totalorder %s14, 0
      %p127 = por %p125, %p126
      %p128 = scmp.ne.s32.totalorder %s114, %s115
      %p129 = scmp.eq.s32.totalorder %s15, 3
      %p130 = por %p128, %p129
      %p132 = scmp.ne.s32.totalorder %s115, %s131
      %p133 = scmp.eq.s32.totalorder %s15, 0
      %p134 = por %p132, %p133
      %p135 = scmp.le.s32.totalorder 1, %s9
      %p136 = scmp.lt.s32.totalorder %s9, 5
      %p137 = pnand %p135, %p136
      %p138 = pneg %p137
      // Predicated region
      $region9: #{fae_graphconv_forward.7} parent=5 // pred_check
        _
      $region10: #{fae_graphconv_forward.7} parent=5 // pred_check_branch
        %140 = sbr.rel (%p137) target = $region12
      $region11: #{fae_graphconv_forward.7} parent=5 // pred_region
        %s141 = ssub.s32 %s9, 1
      $region12: #{fae_graphconv_forward.7} parent=5 // pred_fallthru
        _
      %p142 = scmp.lt.s32.totalorder %s9, 4
      // Predicated region
      $region13: #{fae_graphconv_forward.7} parent=5 // pred_check
        %p143 = pneg %p142
      $region14: #{fae_graphconv_forward.7} parent=5 // pred_check_branch
        %145 = sbr.rel (%p143) target = $region16
      $region15: #{fae_graphconv_forward.7} parent=5 // pred_region
        // Predicated region
        $region17: #{fae_graphconv_forward.7} parent=15 // pred_check
          %p146 = pneg %p43
        $region18: #{fae_graphconv_forward.7} parent=15 // pred_check_branch
          %148 = sbr.rel (%p146) target = $region20
        $region19: #{fae_graphconv_forward.7} parent=15 // pred_region
          %s149 = sand.u32 %s33, 1
          %s150 = sand.u32 %s33, 1
          %s151 = smul.addr %s150, 64
          %s152 = scalar_lea.vmem [#allocation3], %s151
          %s153 = smul.u32 16, %s16
          %s154 = smul.addr %s153, 2
          %s155 = sadd.s32 %s17, %s154
          %s156 = smul.addr %s155, 4
          %s157 = scalar_lea.vmem %s0, %s156
          // Predicated region
          $region21: #{fae_graphconv_forward.7} parent=19 // pred_check
            _
          $region22: #{fae_graphconv_forward.7} parent=19 // pred_check_branch
            %159 = sbr.rel (0) target = $region24
          $region23: #{fae_graphconv_forward.7} parent=19 // pred_region
            // Predicated region
            $region25: #{fae_graphconv_forward.7} parent=23 // pred_check
              _
            $region26: #{fae_graphconv_forward.7} parent=23 // pred_check_branch
              %161 = sbr.rel target = $region28
            $region27: #{fae_graphconv_forward.7} parent=23 // pred_region
              // Predicated region
              $region40: #{fae_graphconv_forward.7} parent=27 // pred_check
                _
              $region41: #{fae_graphconv_forward.7} parent=27 // pred_check_branch
                %207 = sbr.rel (0) target = $region43
              $region42: #{fae_graphconv_forward.7} parent=27 // pred_region
                loop: start=0, step=1, limit=1
                $region44: #{fae_graphconv_forward.7} parent=42 // loop_pre_header
                  _
                $region45: #{fae_graphconv_forward.7} parent=42 // loop_header
                  %s209 = sphi 0, %s213
                  %p210 = scmp.ge.s32.totalorder %s209, 1
                  %s214 = sphi %s157, %s157
                  %s215 = sphi %s152, %s152
                $region46: #{fae_graphconv_forward.7} parent=42 // loop_header_branch
                  %212 = sbr.rel (%p210) target = $region50
                $region47: #{fae_graphconv_forward.7} parent=42 // loop_body
                  _
                $region48: #{fae_graphconv_forward.7} parent=42 // loop_footer
                  %s213 = sadd.s32 1, %s209
                $region49: #{fae_graphconv_forward.7} parent=42 // loop_footer_branch
                  %208 = sbr.rel target = $region45
                $region50: #{fae_graphconv_forward.7} parent=42 // loop_exit
                  _
                %s217 = ssub.s32 16, 1
                loop: start=0, step=1, limit=1
                $region51: #{fae_graphconv_forward.7} parent=42 // loop_pre_header
                  _
                $region52: #{fae_graphconv_forward.7} parent=42 // loop_header
                  %s219 = sphi 0, %s223
                  %p220 = scmp.ge.s32.totalorder %s219, 1
                  %s224 = sphi %s157, %s157
                  %s225 = sphi %s152, %s152
                $region53: #{fae_graphconv_forward.7} parent=42 // loop_header_branch
                  %222 = sbr.rel (%p220) target = $region57
                $region54: #{fae_graphconv_forward.7} parent=42 // loop_body
                  %v226 = vld [vmem:[%s224] sm:%s217]
                  %227 = vst [vmem:[%s225] sm:%s217] %v226
                  %v228 = vld [vmem:[%s224 + $0x8] sm:%s217]
                  %229 = vst [vmem:[%s225 + $0x4] sm:%s217] %v228
                  %v230 = vld [vmem:[%s224 + $0x10] sm:%s217]
                  %231 = vst [vmem:[%s225 + $0x8] sm:%s217] %v230
                  %v232 = vld [vmem:[%s224 + $0x18] sm:%s217]
                  %233 = vst [vmem:[%s225 + $0xc] sm:%s217] %v232
                  %v234 = vld [vmem:[%s224 + $0x20] sm:%s217]
                  %235 = vst [vmem:[%s225 + $0x10] sm:%s217] %v234
                  %v236 = vld [vmem:[%s224 + $0x28] sm:%s217]
                  %237 = vst [vmem:[%s225 + $0x14] sm:%s217] %v236
                  %v238 = vld [vmem:[%s224 + $0x30] sm:%s217]
                  %239 = vst [vmem:[%s225 + $0x18] sm:%s217] %v238
                  %v240 = vld [vmem:[%s224 + $0x38] sm:%s217]
                  %241 = vst [vmem:[%s225 + $0x1c] sm:%s217] %v240
                  %v242 = vld [vmem:[%s224 + $0x40] sm:%s217]
                  %243 = vst [vmem:[%s225 + $0x20] sm:%s217] %v242
                  %v244 = vld [vmem:[%s224 + $0x48] sm:%s217]
                  %245 = vst [vmem:[%s225 + $0x24] sm:%s217] %v244
                  %v246 = vld [vmem:[%s224 + $0x50] sm:%s217]
                  %247 = vst [vmem:[%s225 + $0x28] sm:%s217] %v246
                  %v248 = vld [vmem:[%s224 + $0x58] sm:%s217]
                  %249 = vst [vmem:[%s225 + $0x2c] sm:%s217] %v248
                  %v250 = vld [vmem:[%s224 + $0x60] sm:%s217]
                  %251 = vst [vmem:[%s225 + $0x30] sm:%s217] %v250
                  %v252 = vld [vmem:[%s224 + $0x68] sm:%s217]
                  %253 = vst [vmem:[%s225 + $0x34] sm:%s217] %v252
                  %v254 = vld [vmem:[%s224 + $0x70] sm:%s217]
                  %255 = vst [vmem:[%s225 + $0x38] sm:%s217] %v254
                  %v256 = vld [vmem:[%s224 + $0x78] sm:%s217]
                  %257 = vst [vmem:[%s225 + $0x3c] sm:%s217] %v256
                $region55: #{fae_graphconv_forward.7} parent=42 // loop_footer
                  %s223 = sadd.s32 1, %s219
                $region56: #{fae_graphconv_forward.7} parent=42 // loop_footer_branch
                  %218 = sbr.rel target = $region52
                $region57: #{fae_graphconv_forward.7} parent=42 // loop_exit
                  _
              $region43: #{fae_graphconv_forward.7} parent=27 // pred_fallthru
                _
            $region28: #{fae_graphconv_forward.7} parent=23 // pred_fallthru
              _
            // Predicated region
            $region29: #{fae_graphconv_forward.7} parent=23 // pred_check
              _
            $region30: #{fae_graphconv_forward.7} parent=23 // pred_check_branch
              %163 = sbr.rel (0) target = $region32
            $region31: #{fae_graphconv_forward.7} parent=23 // pred_region
              %s165 = ssub.s32 16, 1
              loop: start=0, step=1, limit=1
              $region33: #{fae_graphconv_forward.7} parent=31 // loop_pre_header
                _
              $region34: #{fae_graphconv_forward.7} parent=31 // loop_header
                %s167 = sphi 0, %s171
                %p168 = scmp.ge.s32.totalorder %s167, 1
                %s172 = sphi %s157, %s157
                %s173 = sphi %s152, %s152
              $region35: #{fae_graphconv_forward.7} parent=31 // loop_header_branch
                %170 = sbr.rel (%p168) target = $region39
              $region36: #{fae_graphconv_forward.7} parent=31 // loop_body
                %v174 = vld [vmem:[%s172] sm:%s165]
                %175 = vst [vmem:[%s173] sm:%s165] %v174
                %v176 = vld [vmem:[%s172 + $0x8] sm:%s165]
                %177 = vst [vmem:[%s173 + $0x4] sm:%s165] %v176
                %v178 = vld [vmem:[%s172 + $0x10] sm:%s165]
                %179 = vst [vmem:[%s173 + $0x8] sm:%s165] %v178
                %v180 = vld [vmem:[%s172 + $0x18] sm:%s165]
                %181 = vst [vmem:[%s173 + $0xc] sm:%s165] %v180
                %v182 = vld [vmem:[%s172 + $0x20] sm:%s165]
                %183 = vst [vmem:[%s173 + $0x10] sm:%s165] %v182
                %v184 = vld [vmem:[%s172 + $0x28] sm:%s165]
                %185 = vst [vmem:[%s173 + $0x14] sm:%s165] %v184
                %v186 = vld [vmem:[%s172 + $0x30] sm:%s165]
                %187 = vst [vmem:[%s173 + $0x18] sm:%s165] %v186
                %v188 = vld [vmem:[%s172 + $0x38] sm:%s165]
                %189 = vst [vmem:[%s173 + $0x1c] sm:%s165] %v188
                %v190 = vld [vmem:[%s172 + $0x40] sm:%s165]
                %191 = vst [vmem:[%s173 + $0x20] sm:%s165] %v190
                %v192 = vld [vmem:[%s172 + $0x48] sm:%s165]
                %193 = vst [vmem:[%s173 + $0x24] sm:%s165] %v192
                %v194 = vld [vmem:[%s172 + $0x50] sm:%s165]
                %195 = vst [vmem:[%s173 + $0x28] sm:%s165] %v194
                %v196 = vld [vmem:[%s172 + $0x58] sm:%s165]
                %197 = vst [vmem:[%s173 + $0x2c] sm:%s165] %v196
                %v198 = vld [vmem:[%s172 + $0x60] sm:%s165]
                %199 = vst [vmem:[%s173 + $0x30] sm:%s165] %v198
                %v200 = vld [vmem:[%s172 + $0x68] sm:%s165]
                %201 = vst [vmem:[%s173 + $0x34] sm:%s165] %v200
                %v202 = vld [vmem:[%s172 + $0x70] sm:%s165]
                %203 = vst [vmem:[%s173 + $0x38] sm:%s165] %v202
                %v204 = vld [vmem:[%s172 + $0x78] sm:%s165]
                %205 = vst [vmem:[%s173 + $0x3c] sm:%s165] %v204
              $region37: #{fae_graphconv_forward.7} parent=31 // loop_footer
                %s171 = sadd.s32 1, %s167
              $region38: #{fae_graphconv_forward.7} parent=31 // loop_footer_branch
                %166 = sbr.rel target = $region34
              $region39: #{fae_graphconv_forward.7} parent=31 // loop_exit
                _
            $region32: #{fae_graphconv_forward.7} parent=23 // pred_fallthru
              _
          $region24: #{fae_graphconv_forward.7} parent=19 // pred_fallthru
            _
          %258 = vnop
        $region20: #{fae_graphconv_forward.7} parent=15 // pred_fallthru
          _
        // Predicated region
        $region58: #{fae_graphconv_forward.7} parent=15 // pred_check
          %p259 = pneg %p69
        $region59: #{fae_graphconv_forward.7} parent=15 // pred_check_branch
          %261 = sbr.rel (%p259) target = $region61
        $region60: #{fae_graphconv_forward.7} parent=15 // pred_region
          %s262 = smul.u32 16, %s17
          %p263 = scmp.lt.s32.totalorder %s262, 31
          %s264 = scalar_select %p263, %s262, 31
          %s265 = smul.addr %s264, 8
          %s266 = scalar_lea.vmem %s1, %s265
          %s267 = smul.u32 16, %s17
        $region61: #{fae_graphconv_forward.7} parent=15 // pred_fallthru
          _
        // Predicated region
        $region62: #{fae_graphconv_forward.7} parent=15 // pred_check
          %p268 = pneg %p95
        $region63: #{fae_graphconv_forward.7} parent=15 // pred_check_branch
          %270 = sbr.rel (%p268) target = $region65
        $region64: #{fae_graphconv_forward.7} parent=15 // pred_region
          %s271 = smul.u32 16, %s16
          %p272 = scmp.lt.s32.totalorder %s271, 31
          %s273 = scalar_select %p272, %s271, 31
          %s274 = smul.addr %s273, 8
          %s275 = scalar_lea.vmem %s2, %s274
          %s276 = smul.u32 16, %s16
        $region65: #{fae_graphconv_forward.7} parent=15 // pred_fallthru
          _
      $region16: #{fae_graphconv_forward.7} parent=5 // pred_fallthru
        _
      %p277 = scmp.le.s32.totalorder 1, %s9
      %p278 = scmp.lt.s32.totalorder %s9, 5
      %p279 = pnand %p277, %p278
      %p280 = pneg %p279
      // Predicated region
      $region66: #{fae_graphconv_forward.7} parent=5 // pred_check
        _
      $region67: #{fae_graphconv_forward.7} parent=5 // pred_check_branch
        %282 = sbr.rel (%p279) target = $region69
      $region68: #{fae_graphconv_forward.7} parent=5 // pred_region
        %s283 = ssub.s32 %s9, 1
        %s284 = sand.u32 %s36, 1
        %s285 = sand.u32 %s36, 1
        %s286 = smul.addr %s285, 64
        %s287 = scalar_lea.vmem [#allocation3], %s286
        // Predicated region
        $region70: #{fae_graphconv_forward.7} parent=68 // pred_check
          %p288 = pneg %p49
        $region71: #{fae_graphconv_forward.7} parent=68 // pred_check_branch
          %290 = sbr.rel (%p288) target = $region73
        $region72: #{fae_graphconv_forward.7} parent=68 // pred_region
          _
        $region73: #{fae_graphconv_forward.7} parent=68 // pred_fallthru
          _
        %s291 = sand.u32 %s36, 1
        %s292 = sand.u32 %s36, 1
        %s293 = smul.addr %s292, 64
        %s294 = scalar_lea.vmem [#allocation3], %s293
        %p295 = pneg %p49
        %p296 = pneg %p46
        %s297 = smul.u32 16, %s19
        %p298 = scmp.lt.s32.totalorder %s297, 31
        %s299 = scalar_select %p298, %s297, 31
        %s300 = smul.addr %s299, 8
        %s301 = scalar_lea.vmem %s1, %s300
        %p302 = pneg %p75
        %p303 = pneg %p72
        %s304 = smul.u32 16, %s18
        %p305 = scmp.lt.s32.totalorder %s304, 31
        %s306 = scalar_select %p305, %s304, 31
        %s307 = smul.addr %s306, 8
        %s308 = scalar_lea.vmem %s2, %s307
        %p309 = pneg %p101
        %p310 = pneg %p98
        %p311 = pneg %p127
        %p312 = pneg %p124
        %s313 = smul.u32 16, %s18
        %p314 = scmp.lt.s32.totalorder %s313, 31
        %s315 = scalar_select %p314, %s313, 31
        %s316 = smul.addr %s315, 8
        %s317 = scalar_lea.vmem %s3, %s316
        %s318 = smul.u32 16, %s18
        %s319 = smul.u32 16, %s19
        %p320 = scmp.lt.s32.totalorder %s319, 31
        %s321 = scalar_select %p320, %s319, 31
        %s322 = smul.addr %s321, 8
        %s323 = scalar_lea.vmem %s1, %s322
        %s324 = smul.u32 16, %s19
        %s325 = smul.u32 16, %s18
        %p326 = scmp.lt.s32.totalorder %s325, 31
        %s327 = scalar_select %p326, %s325, 31
        %s328 = smul.addr %s327, 8
        %s329 = scalar_lea.vmem %s2, %s328
        %s330 = smul.u32 16, %s18
        %s331 = smul.u32 16, %s18
        %p332 = scmp.lt.s32.totalorder %s331, 31
        %s333 = scalar_select %p332, %s331, 31
        %s334 = smul.addr %s333, 8
        %s335 = scalar_lea.vmem %s3, %s334
        %s336 = smul.u32 16, %s18
        %p337 = scmp.eq.s32.totalorder %s19, 0
        // Predicated region
        $region74: #{fae_graphconv_forward.7} parent=68 // pred_check
          %p338 = pneg %p337
        $region75: #{fae_graphconv_forward.7} parent=68 // pred_check_branch
          %340 = sbr.rel (%p338) target = $region77
        $region76: #{fae_graphconv_forward.7} parent=68 // pred_region
          %vm341 = vcmask 261120
          %342 = vst.msk [vmem:[#allocation2] sm:$0xff] %vm341, 0.0
          %343 = vst.msk [vmem:[#allocation2 + $0x8] sm:$0xff] %vm341, 0.0
          %344 = vst.msk [vmem:[#allocation2 + $0x10] sm:$0xff] %vm341, 0.0
          %345 = vst.msk [vmem:[#allocation2 + $0x18] sm:$0xff] %vm341, 0.0
          %346 = vst.msk [vmem:[#allocation2 + $0x20] sm:$0xff] %vm341, 0.0
          %347 = vst.msk [vmem:[#allocation2 + $0x28] sm:$0xff] %vm341, 0.0
          %348 = vst.msk [vmem:[#allocation2 + $0x30] sm:$0xff] %vm341, 0.0
          %349 = vst.msk [vmem:[#allocation2 + $0x38] sm:$0xff] %vm341, 0.0
          %350 = vst.msk [vmem:[#allocation2 + $0x40] sm:$0xff] %vm341, 0.0
          %351 = vst.msk [vmem:[#allocation2 + $0x48] sm:$0xff] %vm341, 0.0
          %352 = vst.msk [vmem:[#allocation2 + $0x50] sm:$0xff] %vm341, 0.0
          %353 = vst.msk [vmem:[#allocation2 + $0x58] sm:$0xff] %vm341, 0.0
          %354 = vst.msk [vmem:[#allocation2 + $0x60] sm:$0xff] %vm341, 0.0
          %355 = vst.msk [vmem:[#allocation2 + $0x68] sm:$0xff] %vm341, 0.0
          %356 = vst.msk [vmem:[#allocation2 + $0x70] sm:$0xff] %vm341, 0.0
          %357 = vst.msk [vmem:[#allocation2 + $0x78] sm:$0xff] %vm341, 0.0
        $region77: #{fae_graphconv_forward.7} parent=68 // pred_fallthru
          _
        %v358 = vld [vmem:[%s287] sm:$0xf]
        %v359 = vld [vmem:[%s287 + $0x4] sm:$0xf]
        %v360 = vld [vmem:[%s287 + $0x8] sm:$0xf]
        %v361 = vld [vmem:[%s287 + $0xc] sm:$0xf]
        %v362 = vld [vmem:[%s287 + $0x10] sm:$0xf]
        %v363 = vld [vmem:[%s287 + $0x14] sm:$0xf]
        %v364 = vld [vmem:[%s287 + $0x18] sm:$0xf]
        %v365 = vld [vmem:[%s287 + $0x1c] sm:$0xf]
        %v366 = vld [vmem:[%s287 + $0x20] sm:$0xf]
        %v367 = vld [vmem:[%s287 + $0x24] sm:$0xf]
        %v368 = vld [vmem:[%s287 + $0x28] sm:$0xf]
        %v369 = vld [vmem:[%s287 + $0x2c] sm:$0xf]
        %v370 = vld [vmem:[%s287 + $0x30] sm:$0xf]
        %v371 = vld [vmem:[%s287 + $0x34] sm:$0xf]
        %v372 = vld [vmem:[%s287 + $0x38] sm:$0xf]
        %v373 = vld [vmem:[%s287 + $0x3c] sm:$0xf]
        %v374 = vunpack.c.l.bf16 %v358
        %v375 = vunpack.c.l.bf16 %v359
        %v376 = vunpack.c.l.bf16 %v360
        %v377 = vunpack.c.l.bf16 %v361
        %v378 = vunpack.c.l.bf16 %v362
        %v379 = vunpack.c.l.bf16 %v363
        %v380 = vunpack.c.l.bf16 %v364
        %v381 = vunpack.c.l.bf16 %v365
        %v382 = vunpack.c.l.bf16 %v366
        %v383 = vunpack.c.l.bf16 %v367
        %v384 = vunpack.c.l.bf16 %v368
        %v385 = vunpack.c.l.bf16 %v369
        %v386 = vunpack.c.l.bf16 %v370
        %v387 = vunpack.c.l.bf16 %v371
        %v388 = vunpack.c.l.bf16 %v372
        %v389 = vunpack.c.l.bf16 %v373
        %v390 = vld [vmem:[#allocation2] sm:$0xff]
        %v391 = vld [vmem:[#allocation2 + $0x8] sm:$0xff]
        %v392 = vld [vmem:[#allocation2 + $0x10] sm:$0xff]
        %v393 = vld [vmem:[#allocation2 + $0x18] sm:$0xff]
        %v394 = vld [vmem:[#allocation2 + $0x20] sm:$0xff]
        %v395 = vld [vmem:[#allocation2 + $0x28] sm:$0xff]
        %v396 = vld [vmem:[#allocation2 + $0x30] sm:$0xff]
        %v397 = vld [vmem:[#allocation2 + $0x38] sm:$0xff]
        %v398 = vld [vmem:[#allocation2 + $0x40] sm:$0xff]
        %v399 = vld [vmem:[#allocation2 + $0x48] sm:$0xff]
        %v400 = vld [vmem:[#allocation2 + $0x50] sm:$0xff]
        %v401 = vld [vmem:[#allocation2 + $0x58] sm:$0xff]
        %v402 = vld [vmem:[#allocation2 + $0x60] sm:$0xff]
        %v403 = vld [vmem:[#allocation2 + $0x68] sm:$0xff]
        %v404 = vld [vmem:[#allocation2 + $0x70] sm:$0xff]
        %v405 = vld [vmem:[#allocation2 + $0x78] sm:$0xff]
        %v406 = vld [vmem:[%s323] sm:$0xff]
        %v407 = vld [vmem:[%s323 + $0x8] sm:$0xff]
        %v408 = vld [vmem:[%s323 + $0x10] sm:$0xff]
        %v409 = vld [vmem:[%s323 + $0x18] sm:$0xff]
        %v410 = vld [vmem:[%s323 + $0x20] sm:$0xff]
        %v411 = vld [vmem:[%s323 + $0x28] sm:$0xff]
        %v412 = vld [vmem:[%s323 + $0x30] sm:$0xff]
        %v413 = vld [vmem:[%s323 + $0x38] sm:$0xff]
        %v414 = vld [vmem:[%s323 + $0x40] sm:$0xff]
        %v415 = vld [vmem:[%s323 + $0x48] sm:$0xff]
        %v416 = vld [vmem:[%s323 + $0x50] sm:$0xff]
        %v417 = vld [vmem:[%s323 + $0x58] sm:$0xff]
        %v418 = vld [vmem:[%s323 + $0x60] sm:$0xff]
        %v419 = vld [vmem:[%s323 + $0x68] sm:$0xff]
        %v420 = vld [vmem:[%s323 + $0x70] sm:$0xff]
        %v421 = vld [vmem:[%s323 + $0x78] sm:$0xff]
        %422 = vmatprep.subr.mxu0 0.0
        %423 = vmatpush1.msra.mxu0 %v421
        %424 = vmatprep.subr.mxu0 0.0
        %425 = vmatpush1.msra.mxu0 %v420
        %426 = vmatprep.subr.mxu0 0.0
        %427 = vmatpush1.msra.mxu0 %v419
        %428 = vmatprep.subr.mxu0 0.0
        %429 = vmatpush1.msra.mxu0 %v418
        %430 = vmatprep.subr.mxu0 0.0
        %431 = vmatpush1.msra.mxu0 %v417
        %432 = vmatprep.subr.mxu0 0.0
        %433 = vmatpush1.msra.mxu0 %v416
        %434 = vmatprep.subr.mxu0 0.0
        %435 = vmatpush1.msra.mxu0 %v415
        %436 = vmatprep.subr.mxu0 0.0
        %437 = vmatpush1.msra.mxu0 %v414
        %438 = vmatprep.subr.mxu0 0.0
        %439 = vmatpush1.msra.mxu0 %v413
        %440 = vmatprep.subr.mxu0 0.0
        %441 = vmatpush1.msra.mxu0 %v412
        %442 = vmatprep.subr.mxu0 0.0
        %443 = vmatpush1.msra.mxu0 %v411
        %444 = vmatprep.subr.mxu0 0.0
        %445 = vmatpush1.msra.mxu0 %v410
        %446 = vmatprep.subr.mxu0 0.0
        %447 = vmatpush1.msra.mxu0 %v409
        %448 = vmatprep.subr.mxu0 0.0
        %449 = vmatpush1.msra.mxu0 %v408
        %450 = vmatprep.subr.mxu0 0.0
        %451 = vmatpush1.msra.mxu0 %v407
        %452 = vmatprep.subr.mxu0 0.0
        %453 = vmatpush1.msra.mxu0 %v406
        %454 = vmatprep.subr.mxu0 0.0
        %455 = vmatpush2.msra.mxu0 0.0
        %456 = vmatprep.subr.mxu0 0.0
        %457 = vmatpush2.msra.mxu0 0.0
        %458 = vmatprep.subr.mxu0 0.0
        %459 = vmatpush2.msra.mxu0 0.0
        %460 = vmatprep.subr.mxu0 0.0
        %461 = vmatpush2.msra.mxu0 0.0
        %462 = vmatprep.subr.mxu0 0.0
        %463 = vmatpush2.msra.mxu0 0.0
        %464 = vmatprep.subr.mxu0 0.0
        %465 = vmatpush2.msra.mxu0 0.0
        %466 = vmatprep.subr.mxu0 0.0
        %467 = vmatpush2.msra.mxu0 0.0
        %468 = vmatprep.subr.mxu0 0.0
        %469 = vmatpush2.msra.mxu0 0.0
        %470 = vmatprep.subr.mxu0 0.0
        %471 = vmatpush2.msra.mxu0 0.0
        %472 = vmatprep.subr.mxu0 0.0
        %473 = vmatpush2.msra.mxu0 0.0
        %474 = vmatprep.subr.mxu0 0.0
        %475 = vmatpush2.msra.mxu0 0.0
        %476 = vmatprep.subr.mxu0 0.0
        %477 = vmatpush2.msra.mxu0 0.0
        %478 = vmatprep.subr.mxu0 0.0
        %479 = vmatpush2.msra.mxu0 0.0
        %480 = vmatprep.subr.mxu0 0.0
        %481 = vmatpush2.msra.mxu0 0.0
        %482 = vmatprep.subr.mxu0 0.0
        %483 = vmatpush2.msra.mxu0 0.0
        %484 = vmatprep.subr.mxu0 0.0
        %485 = vmatpush2.msra.mxu0 0.0
        %486 = vmatprep.mubr.f32.mxu0 0.0
        %487 = vmatmul.mubr.f32.gmra.mxu0 %v374
        %v488 = vpop.f32.mrf.mxu0
        %v489 = vadd.f32 0.0, %v488
        %v490 = vpop.f32.mrf.mxu0
        %491 = vmatprep.mubr.f32.mxu0 0.0
        %492 = vmatmul.mubr.f32.gmra.mxu0 %v375
        %v493 = vpop.f32.mrf.mxu0
        %v494 = vadd.f32 0.0, %v493
        %v495 = vpop.f32.mrf.mxu0
        %496 = vmatprep.mubr.f32.mxu0 0.0
        %497 = vmatmul.mubr.f32.gmra.mxu0 %v376
        %v498 = vpop.f32.mrf.mxu0
        %v499 = vadd.f32 0.0, %v498
        %v500 = vpop.f32.mrf.mxu0
        %501 = vmatprep.mubr.f32.mxu0 0.0
        %502 = vmatmul.mubr.f32.gmra.mxu0 %v377
        %v503 = vpop.f32.mrf.mxu0
        %v504 = vadd.f32 0.0, %v503
        %v505 = vpop.f32.mrf.mxu0
        %506 = vmatprep.mubr.f32.mxu0 0.0
        %507 = vmatmul.mubr.f32.gmra.mxu0 %v378
        %v508 = vpop.f32.mrf.mxu0
        %v509 = vadd.f32 0.0, %v508
        %v510 = vpop.f32.mrf.mxu0
        %511 = vmatprep.mubr.f32.mxu0 0.0
        %512 = vmatmul.mubr.f32.gmra.mxu0 %v379
        %v513 = vpop.f32.mrf.mxu0
        %v514 = vadd.f32 0.0, %v513
        %v515 = vpop.f32.mrf.mxu0
        %516 = vmatprep.mubr.f32.mxu0 0.0
        %517 = vmatmul.mubr.f32.gmra.mxu0 %v380
        %v518 = vpop.f32.mrf.mxu0
        %v519 = vadd.f32 0.0, %v518
        %v520 = vpop.f32.mrf.mxu0
        %521 = vmatprep.mubr.f32.mxu0 0.0
        %522 = vmatmul.mubr.f32.gmra.mxu0 %v381
        %v523 = vpop.f32.mrf.mxu0
        %v524 = vadd.f32 0.0, %v523
        %v525 = vpop.f32.mrf.mxu0
        %526 = vmatprep.mubr.f32.mxu0 0.0
        %527 = vmatmul.mubr.f32.gmra.mxu0 %v382
        %v528 = vpop.f32.mrf.mxu0
        %v529 = vadd.f32 0.0, %v528
        %v530 = vpop.f32.mrf.mxu0
        %531 = vmatprep.mubr.f32.mxu0 0.0
        %532 = vmatmul.mubr.f32.gmra.mxu0 %v383
        %v533 = vpop.f32.mrf.mxu0
        %v534 = vadd.f32 0.0, %v533
        %v535 = vpop.f32.mrf.mxu0
        %536 = vmatprep.mubr.f32.mxu0 0.0
        %537 = vmatmul.mubr.f32.gmra.mxu0 %v384
        %v538 = vpop.f32.mrf.mxu0
        %v539 = vadd.f32 0.0, %v538
        %v540 = vpop.f32.mrf.mxu0
        %541 = vmatprep.mubr.f32.mxu0 0.0
        %542 = vmatmul.mubr.f32.gmra.mxu0 %v385
        %v543 = vpop.f32.mrf.mxu0
        %v544 = vadd.f32 0.0, %v543
        %v545 = vpop.f32.mrf.mxu0
        %546 = vmatprep.mubr.f32.mxu0 0.0
        %547 = vmatmul.mubr.f32.gmra.mxu0 %v386
        %v548 = vpop.f32.mrf.mxu0
        %v549 = vadd.f32 0.0, %v548
        %v550 = vpop.f32.mrf.mxu0
        %551 = vmatprep.mubr.f32.mxu0 0.0
        %552 = vmatmul.mubr.f32.gmra.mxu0 %v387
        %v553 = vpop.f32.mrf.mxu0
        %v554 = vadd.f32 0.0, %v553
        %v555 = vpop.f32.mrf.mxu0
        %556 = vmatprep.mubr.f32.mxu0 0.0
        %557 = vmatmul.mubr.f32.gmra.mxu0 %v388
        %v558 = vpop.f32.mrf.mxu0
        %v559 = vadd.f32 0.0, %v558
        %v560 = vpop.f32.mrf.mxu0
        %561 = vmatprep.mubr.f32.mxu0 0.0
        %562 = vmatmul.mubr.f32.gmra.mxu0 %v389
        %v563 = vpop.f32.mrf.mxu0
        %v564 = vadd.f32 0.0, %v563
        %v565 = vpop.f32.mrf.mxu0
        %566 = vdwg.mxu0
        %v567 = vadd.f32 %v390, %v489
        %v568 = vadd.f32 %v391, %v494
        %v569 = vadd.f32 %v392, %v499
        %v570 = vadd.f32 %v393, %v504
        %v571 = vadd.f32 %v394, %v509
        %v572 = vadd.f32 %v395, %v514
        %v573 = vadd.f32 %v396, %v519
        %v574 = vadd.f32 %v397, %v524
        %v575 = vadd.f32 %v398, %v529
        %v576 = vadd.f32 %v399, %v534
        %v577 = vadd.f32 %v400, %v539
        %v578 = vadd.f32 %v401, %v544
        %v579 = vadd.f32 %v402, %v549
        %v580 = vadd.f32 %v403, %v554
        %v581 = vadd.f32 %v404, %v559
        %v582 = vadd.f32 %v405, %v564
        %vm583 = vcmask 261120
        %584 = vst.msk [vmem:[#allocation2] sm:$0xff] %vm583, %v567
        %585 = vst.msk [vmem:[#allocation2 + $0x8] sm:$0xff] %vm583, %v568
        %586 = vst.msk [vmem:[#allocation2 + $0x10] sm:$0xff] %vm583, %v569
        %587 = vst.msk [vmem:[#allocation2 + $0x18] sm:$0xff] %vm583, %v570
        %588 = vst.msk [vmem:[#allocation2 + $0x20] sm:$0xff] %vm583, %v571
        %589 = vst.msk [vmem:[#allocation2 + $0x28] sm:$0xff] %vm583, %v572
        %590 = vst.msk [vmem:[#allocation2 + $0x30] sm:$0xff] %vm583, %v573
        %591 = vst.msk [vmem:[#allocation2 + $0x38] sm:$0xff] %vm583, %v574
        %592 = vst.msk [vmem:[#allocation2 + $0x40] sm:$0xff] %vm583, %v575
        %593 = vst.msk [vmem:[#allocation2 + $0x48] sm:$0xff] %vm583, %v576
        %594 = vst.msk [vmem:[#allocation2 + $0x50] sm:$0xff] %vm583, %v577
        %595 = vst.msk [vmem:[#allocation2 + $0x58] sm:$0xff] %vm583, %v578
        %596 = vst.msk [vmem:[#allocation2 + $0x60] sm:$0xff] %vm583, %v579
        %597 = vst.msk [vmem:[#allocation2 + $0x68] sm:$0xff] %vm583, %v580
        %598 = vst.msk [vmem:[#allocation2 + $0x70] sm:$0xff] %vm583, %v581
        %599 = vst.msk [vmem:[#allocation2 + $0x78] sm:$0xff] %vm583, %v582
        %p600 = scmp.eq.s32.totalorder %s19, 1
        // Predicated region
        $region78: #{fae_graphconv_forward.7} parent=68 // pred_check
          %p601 = pneg %p600
        $region79: #{fae_graphconv_forward.7} parent=68 // pred_check_branch
          %603 = sbr.rel (%p601) target = $region81
        $region80: #{fae_graphconv_forward.7} parent=68 // pred_region
          %v604 = vld [vmem:[#allocation2] sm:$0xff]
          %v605 = vld [vmem:[#allocation2 + $0x8] sm:$0xff]
          %v606 = vld [vmem:[#allocation2 + $0x10] sm:$0xff]
          %v607 = vld [vmem:[#allocation2 + $0x18] sm:$0xff]
          %v608 = vld [vmem:[#allocation2 + $0x20] sm:$0xff]
          %v609 = vld [vmem:[#allocation2 + $0x28] sm:$0xff]
          %v610 = vld [vmem:[#allocation2 + $0x30] sm:$0xff]
          %v611 = vld [vmem:[#allocation2 + $0x38] sm:$0xff]
          %v612 = vld [vmem:[#allocation2 + $0x40] sm:$0xff]
          %v613 = vld [vmem:[#allocation2 + $0x48] sm:$0xff]
          %v614 = vld [vmem:[#allocation2 + $0x50] sm:$0xff]
          %v615 = vld [vmem:[#allocation2 + $0x58] sm:$0xff]
          %v616 = vld [vmem:[#allocation2 + $0x60] sm:$0xff]
          %v617 = vld [vmem:[#allocation2 + $0x68] sm:$0xff]
          %v618 = vld [vmem:[#allocation2 + $0x70] sm:$0xff]
          %v619 = vld [vmem:[#allocation2 + $0x78] sm:$0xff]
          %v620 = vld [vmem:[%s329] sm:$0xff]
          %v621 = vld [vmem:[%s329 + $0x8] sm:$0xff]
          %v622 = vld [vmem:[%s329 + $0x10] sm:$0xff]
          %v623 = vld [vmem:[%s329 + $0x18] sm:$0xff]
          %v624 = vld [vmem:[%s329 + $0x20] sm:$0xff]
          %v625 = vld [vmem:[%s329 + $0x28] sm:$0xff]
          %v626 = vld [vmem:[%s329 + $0x30] sm:$0xff]
          %v627 = vld [vmem:[%s329 + $0x38] sm:$0xff]
          %v628 = vld [vmem:[%s329 + $0x40] sm:$0xff]
          %v629 = vld [vmem:[%s329 + $0x48] sm:$0xff]
          %v630 = vld [vmem:[%s329 + $0x50] sm:$0xff]
          %v631 = vld [vmem:[%s329 + $0x58] sm:$0xff]
          %v632 = vld [vmem:[%s329 + $0x60] sm:$0xff]
          %v633 = vld [vmem:[%s329 + $0x68] sm:$0xff]
          %v634 = vld [vmem:[%s329 + $0x70] sm:$0xff]
          %v635 = vld [vmem:[%s329 + $0x78] sm:$0xff]
          %v636 = vadd.f32 %v604, %v620
          %v637 = vadd.f32 %v605, %v621
          %v638 = vadd.f32 %v606, %v622
          %v639 = vadd.f32 %v607, %v623
          %v640 = vadd.f32 %v608, %v624
          %v641 = vadd.f32 %v609, %v625
          %v642 = vadd.f32 %v610, %v626
          %v643 = vadd.f32 %v611, %v627
          %v644 = vadd.f32 %v612, %v628
          %v645 = vadd.f32 %v613, %v629
          %v646 = vadd.f32 %v614, %v630
          %v647 = vadd.f32 %v615, %v631
          %v648 = vadd.f32 %v616, %v632
          %v649 = vadd.f32 %v617, %v633
          %v650 = vadd.f32 %v618, %v634
          %v651 = vadd.f32 %v619, %v635
          %v652 = vmax.f32 %v636, 0.0
          %v653 = vmax.f32 %v637, 0.0
          %v654 = vmax.f32 %v638, 0.0
          %v655 = vmax.f32 %v639, 0.0
          %v656 = vmax.f32 %v640, 0.0
          %v657 = vmax.f32 %v641, 0.0
          %v658 = vmax.f32 %v642, 0.0
          %v659 = vmax.f32 %v643, 0.0
          %v660 = vmax.f32 %v644, 0.0
          %v661 = vmax.f32 %v645, 0.0
          %v662 = vmax.f32 %v646, 0.0
          %v663 = vmax.f32 %v647, 0.0
          %v664 = vmax.f32 %v648, 0.0
          %v665 = vmax.f32 %v649, 0.0
          %v666 = vmax.f32 %v650, 0.0
          %v667 = vmax.f32 %v651, 0.0
          %668 = vst.msk [vmem:[%s335] sm:$0xff] %vm583, %v652
          %669 = vst.msk [vmem:[%s335 + $0x8] sm:$0xff] %vm583, %v653
          %670 = vst.msk [vmem:[%s335 + $0x10] sm:$0xff] %vm583, %v654
          %671 = vst.msk [vmem:[%s335 + $0x18] sm:$0xff] %vm583, %v655
          %672 = vst.msk [vmem:[%s335 + $0x20] sm:$0xff] %vm583, %v656
          %673 = vst.msk [vmem:[%s335 + $0x28] sm:$0xff] %vm583, %v657
          %674 = vst.msk [vmem:[%s335 + $0x30] sm:$0xff] %vm583, %v658
          %675 = vst.msk [vmem:[%s335 + $0x38] sm:$0xff] %vm583, %v659
          %676 = vst.msk [vmem:[%s335 + $0x40] sm:$0xff] %vm583, %v660
          %677 = vst.msk [vmem:[%s335 + $0x48] sm:$0xff] %vm583, %v661
          %678 = vst.msk [vmem:[%s335 + $0x50] sm:$0xff] %vm583, %v662
          %679 = vst.msk [vmem:[%s335 + $0x58] sm:$0xff] %vm583, %v663
          %680 = vst.msk [vmem:[%s335 + $0x60] sm:$0xff] %vm583, %v664
          %681 = vst.msk [vmem:[%s335 + $0x68] sm:$0xff] %vm583, %v665
          %682 = vst.msk [vmem:[%s335 + $0x70] sm:$0xff] %vm583, %v666
          %683 = vst.msk [vmem:[%s335 + $0x78] sm:$0xff] %vm583, %v667
        $region81: #{fae_graphconv_forward.7} parent=68 // pred_fallthru
          _
        %s684 = smul.u32 16, %s18
        %p685 = scmp.lt.s32.totalorder %s684, 31
        %s686 = scalar_select %p685, %s684, 31
        %s687 = smul.addr %s686, 8
        %s688 = scalar_lea.vmem %s3, %s687
        // Predicated region
        $region82: #{fae_graphconv_forward.7} parent=68 // pred_check
          %p689 = pneg %p124
        $region83: #{fae_graphconv_forward.7} parent=68 // pred_check_branch
          %691 = sbr.rel (%p689) target = $region85
        $region84: #{fae_graphconv_forward.7} parent=68 // pred_region
          %s692 = smul.u32 16, %s18
        $region85: #{fae_graphconv_forward.7} parent=68 // pred_fallthru
          _
      $region69: #{fae_graphconv_forward.7} parent=5 // pred_fallthru
        _
      %p693 = scmp.le.s32.totalorder 2, %s9
      // Predicated region
      $region86: #{fae_graphconv_forward.7} parent=5 // pred_check
        %p694 = pneg %p693
      $region87: #{fae_graphconv_forward.7} parent=5 // pred_check_branch
        %696 = sbr.rel (%p694) target = $region89
      $region88: #{fae_graphconv_forward.7} parent=5 // pred_region
        %s697 = ssub.s32 %s9, 2
        // Predicated region
        $region90: #{fae_graphconv_forward.7} parent=88 // pred_check
          %p698 = pneg %p130
        $region91: #{fae_graphconv_forward.7} parent=88 // pred_check_branch
          %700 = sbr.rel (%p698) target = $region93
        $region92: #{fae_graphconv_forward.7} parent=88 // pred_region
          %s701 = smul.u32 16, %s20
          %p702 = scmp.lt.s32.totalorder %s701, 31
          %s703 = scalar_select %p702, %s701, 31
          %s704 = smul.addr %s703, 8
          %s705 = scalar_lea.vmem %s3, %s704
        $region93: #{fae_graphconv_forward.7} parent=88 // pred_fallthru
          _
      $region89: #{fae_graphconv_forward.7} parent=5 // pred_fallthru
        _
    $region6: #{fae_graphconv_forward.7} parent=1 // loop_footer
      %s13 = sadd.s32 1, %s9
    $region7: #{fae_graphconv_forward.7} parent=1 // loop_footer_branch
      %8 = sbr.rel target = $region3
    $region8: #{fae_graphconv_forward.7} parent=1 // loop_exit
      _

// kernel: fae_graphconv_forward.6
$region0: #{fae_graphconv_forward.6}
  #allocation0 [shape = 'u32[]', space=smem, size = 0x4, offset = 0x4, fixed_abs, tag = 'smem constant byte address 0x4 - core index']
  #allocation1 [shape = 'u32[144,128]{1,0:T(1,128)}', space=vmem, size = 0x12000, scoped, tag = 'internal scratch']
  %s0 = inlined_call_operand.vmem [shape: f32[256,64], index: 0, kind: input, shape index: {}]
  %s1 = inlined_call_operand.vmem [shape: f32[64,32], index: 1, kind: input, shape index: {}]
  %s2 = inlined_call_operand.vmem [shape: f32[64,32], index: 2, kind: input, shape index: {}]
  %s3 = inlined_call_operand.vmem [shape: f32[1,32], index: 3, kind: input, shape index: {}]
  %s4 = inlined_call_operand.vmem [shape: f32[256,32], index: 4, kind: output, shape index: {0}]
  %s5 = inlined_call_operand.vmem [shape: f32[256,32], index: 5, kind: output, shape index: {1}]
  %6 = xla_tuple %s4, %s5
  %s7 = sld [smem:[#allocation0]]
  $region57: #{fae_graphconv_forward.6} parent=0
    _
  %s9 = ssub.s32 1, %s7
  %s10 = scalar_select 0, %s9, %s7
  loop: start=0, step=1, limit=4
  $region2: #{fae_graphconv_forward.6} parent=0 // loop_pre_header
    _
  $region3: #{fae_graphconv_forward.6} parent=0 // loop_header
    %s12 = sphi 0, %s16
    %p13 = scmp.ge.s32.totalorder %s12, 4
    %s22 = sphi 0, %s24
    %s25 = sphi 0, %s22
    %s26 = sphi 0, %s25
    %s42 = sphi 0, %s26
    %s46 = sphi 0, %s46
    %s48 = sphi 0, %s46
    %s49 = sphi 0, %s48
    %s63 = sphi 0, %s49
    %s67 = sphi 0, %s67
    %s69 = sphi 0, %s67
    %s70 = sphi 0, %s69
    %s84 = sphi 0, %s70
    %s88 = sphi 0, %s88
    %s90 = sphi 0, %s88
    %s91 = sphi 0, %s90
    %s105 = sphi 0, %s91
    %s111 = sphi 0, %s113
    %s114 = sphi 0, %s111
    %s115 = sphi 0, %s114
    %s131 = sphi 0, %s115
    %s137 = sphi 0, %s139
    %s140 = sphi 0, %s137
    %s141 = sphi 0, %s140
    %s157 = sphi 0, %s141
  $region4: #{fae_graphconv_forward.6} parent=0 // loop_header_branch
    %15 = sbr.rel (%p13) target = $region8
  $region5: #{fae_graphconv_forward.6} parent=0 // loop_body
    %s17 = ssub.s32 %s12, 1
    %s18 = ssub.s32 %s12, 2
    %s19 = sadd.s32 %s12, 1
    %s20 = ssub.s32 %s12, %s19
    %p21 = scmp.eq.s32.totalorder %s20, 0
    %s23 = sadd.s32 %s22, 1
    %s24 = scalar_select %p21, %s22, %s23
    %p27 = pneg %p21
    %p28 = scmp.eq.s32.totalorder %s12, 1
    %p29 = por %p27, %p28
    %p30 = scmp.ne.s32.totalorder %s22, %s25
    %p31 = scmp.eq.s32.totalorder %s12, 0
    %p32 = por %p30, %p31
    %p33 = scmp.ne.s32.totalorder %s22, %s25
    %p34 = scmp.eq.s32.totalorder %s17, 1
    %p35 = por %p33, %p34
    %p36 = scmp.ne.s32.totalorder %s25, %s26
    %p37 = scmp.eq.s32.totalorder %s17, 0
    %p38 = por %p36, %p37
    %p39 = scmp.ne.s32.totalorder %s25, %s26
    %p40 = scmp.eq.s32.totalorder %s18, 1
    %p41 = por %p39, %p40
    %p43 = scmp.ne.s32.totalorder %s26, %s42
    %p44 = scmp.eq.s32.totalorder %s18, 0
    %p45 = por %p43, %p44
    %s47 = sadd.s32 %s46, 1
    %p50 = scmp.eq.s32.totalorder %s12, 1
    %p51 = scmp.ne.s32.totalorder %s46, %s48
    %p52 = scmp.eq.s32.totalorder %s12, 0
    %p53 = por %p51, %p52
    %p54 = scmp.ne.s32.totalorder %s46, %s48
    %p55 = scmp.eq.s32.totalorder %s17, 1
    %p56 = por %p54, %p55
    %p57 = scmp.ne.s32.totalorder %s48, %s49
    %p58 = scmp.eq.s32.totalorder %s17, 0
    %p59 = por %p57, %p58
    %p60 = scmp.ne.s32.totalorder %s48, %s49
    %p61 = scmp.eq.s32.totalorder %s18, 1
    %p62 = por %p60, %p61
    %p64 = scmp.ne.s32.totalorder %s49, %s63
    %p65 = scmp.eq.s32.totalorder %s18, 0
    %p66 = por %p64, %p65
    %s68 = sadd.s32 %s67, 1
    %p71 = scmp.eq.s32.totalorder %s12, 1
    %p72 = scmp.ne.s32.totalorder %s67, %s69
    %p73 = scmp.eq.s32.totalorder %s12, 0
    %p74 = por %p72, %p73
    %p75 = scmp.ne.s32.totalorder %s67, %s69
    %p76 = scmp.eq.s32.totalorder %s17, 1
    %p77 = por %p75, %p76
    %p78 = scmp.ne.s32.totalorder %s69, %s70
    %p79 = scmp.eq.s32.totalorder %s17, 0
    %p80 = por %p78, %p79
    %p81 = scmp.ne.s32.totalorder %s69, %s70
    %p82 = scmp.eq.s32.totalorder %s18, 1
    %p83 = por %p81, %p82
    %p85 = scmp.ne.s32.totalorder %s70, %s84
    %p86 = scmp.eq.s32.totalorder %s18, 0
    %p87 = por %p85, %p86
    %s89 = sadd.s32 %s88, 1
    %p92 = scmp.eq.s32.totalorder %s12, 1
    %p93 = scmp.ne.s32.totalorder %s88, %s90
    %p94 = scmp.eq.s32.totalorder %s12, 0
    %p95 = por %p93, %p94
    %p96 = scmp.ne.s32.totalorder %s88, %s90
    %p97 = scmp.eq.s32.totalorder %s17, 1
    %p98 = por %p96, %p97
    %p99 = scmp.ne.s32.totalorder %s90, %s91
    %p100 = scmp.eq.s32.totalorder %s17, 0
    %p101 = por %p99, %p100
    %p102 = scmp.ne.s32.totalorder %s90, %s91
    %p103 = scmp.eq.s32.totalorder %s18, 1
    %p104 = por %p102, %p103
    %p106 = scmp.ne.s32.totalorder %s91, %s105
    %p107 = scmp.eq.s32.totalorder %s18, 0
    %p108 = por %p106, %p107
    %s109 = ssub.s32 %s12, %s19
    %p110 = scmp.eq.s32.totalorder %s109, 0
    %s112 = sadd.s32 %s111, 1
    %s113 = scalar_select %p110, %s111, %s112
    %p116 = pneg %p110
    %p117 = scmp.eq.s32.totalorder %s12, 1
    %p118 = por %p116, %p117
    %p119 = scmp.ne.s32.totalorder %s111, %s114
    %p120 = scmp.eq.s32.totalorder %s12, 0
    %p121 = por %p119, %p120
    %p122 = scmp.ne.s32.totalorder %s111, %s114
    %p123 = scmp.eq.s32.totalorder %s17, 1
    %p124 = por %p122, %p123
    %p125 = scmp.ne.s32.totalorder %s114, %s115
    %p126 = scmp.eq.s32.totalorder %s17, 0
    %p127 = por %p125, %p126
    %p128 = scmp.ne.s32.totalorder %s114, %s115
    %p129 = scmp.eq.s32.totalorder %s18, 1
    %p130 = por %p128, %p129
    %p132 = scmp.ne.s32.totalorder %s115, %s131
    %p133 = scmp.eq.s32.totalorder %s18, 0
    %p134 = por %p132, %p133
    %s135 = ssub.s32 %s12, %s19
    %p136 = scmp.eq.s32.totalorder %s135, 0
    %s138 = sadd.s32 %s137, 1
    %s139 = scalar_select %p136, %s137, %s138
    %p142 = pneg %p136
    %p143 = scmp.eq.s32.totalorder %s12, 1
    %p144 = por %p142, %p143
    %p145 = scmp.ne.s32.totalorder %s137, %s140
    %p146 = scmp.eq.s32.totalorder %s12, 0
    %p147 = por %p145, %p146
    %p148 = scmp.ne.s32.totalorder %s137, %s140
    %p149 = scmp.eq.s32.totalorder %s17, 1
    %p150 = por %p148, %p149
    %p151 = scmp.ne.s32.totalorder %s140, %s141
    %p152 = scmp.eq.s32.totalorder %s17, 0
    %p153 = por %p151, %p152
    %p154 = scmp.ne.s32.totalorder %s140, %s141
    %p155 = scmp.eq.s32.totalorder %s18, 1
    %p156 = por %p154, %p155
    %p158 = scmp.ne.s32.totalorder %s141, %s157
    %p159 = scmp.eq.s32.totalorder %s18, 0
    %p160 = por %p158, %p159
    %p161 = scmp.le.s32.totalorder 1, %s12
    %p162 = scmp.lt.s32.totalorder %s12, 3
    %p163 = pnand %p161, %p162
    %p164 = pneg %p163
    // Predicated region
    $region9: #{fae_graphconv_forward.6} parent=5 // pred_check
      _
    $region10: #{fae_graphconv_forward.6} parent=5 // pred_check_branch
      %166 = sbr.rel (%p163) target = $region12
    $region11: #{fae_graphconv_forward.6} parent=5 // pred_region
      %s167 = ssub.s32 %s12, 1
      // Predicated region
      $region13: #{fae_graphconv_forward.6} parent=11 // pred_check
        %p168 = pneg %p59
      $region14: #{fae_graphconv_forward.6} parent=11 // pred_check_branch
        %170 = sbr.rel (%p168) target = $region16
      $region15: #{fae_graphconv_forward.6} parent=11 // pred_region
        _
      $region16: #{fae_graphconv_forward.6} parent=11 // pred_fallthru
        _
      // Predicated region
      $region17: #{fae_graphconv_forward.6} parent=11 // pred_check
        %p171 = pneg %p80
      $region18: #{fae_graphconv_forward.6} parent=11 // pred_check_branch
        %173 = sbr.rel (%p171) target = $region20
      $region19: #{fae_graphconv_forward.6} parent=11 // pred_region
        _
      $region20: #{fae_graphconv_forward.6} parent=11 // pred_fallthru
        _
      // Predicated region
      $region21: #{fae_graphconv_forward.6} parent=11 // pred_check
        %p174 = pneg %p101
      $region22: #{fae_graphconv_forward.6} parent=11 // pred_check_branch
        %176 = sbr.rel (%p174) target = $region24
      $region23: #{fae_graphconv_forward.6} parent=11 // pred_region
        _
      $region24: #{fae_graphconv_forward.6} parent=11 // pred_fallthru
        _
    $region12: #{fae_graphconv_forward.6} parent=5 // pred_fallthru
      _
    %p177 = scmp.lt.s32.totalorder %s12, 2
    // Predicated region
    $region25: #{fae_graphconv_forward.6} parent=5 // pred_check
      %p178 = pneg %p177
    $region26: #{fae_graphconv_forward.6} parent=5 // pred_check_branch
      %180 = sbr.rel (%p178) target = $region28
    $region27: #{fae_graphconv_forward.6} parent=5 // pred_region
      // Predicated region
      $region29: #{fae_graphconv_forward.6} parent=27 // pred_check
        %p181 = pneg %p32
      $region30: #{fae_graphconv_forward.6} parent=27 // pred_check_branch
        %183 = sbr.rel (%p181) target = $region32
      $region31: #{fae_graphconv_forward.6} parent=27 // pred_region
        %s184 = smul.u32 16, %s12
        %p185 = scmp.lt.s32.totalorder %s184, 31
        %s186 = scalar_select %p185, %s184, 31
        %s187 = smul.addr %s186, 8
        %s188 = scalar_lea.vmem %s0, %s187
        %s189 = smul.u32 16, %s12
      $region32: #{fae_graphconv_forward.6} parent=27 // pred_fallthru
        _
    $region28: #{fae_graphconv_forward.6} parent=5 // pred_fallthru
      _
    %p190 = scmp.le.s32.totalorder 1, %s12
    %p191 = scmp.lt.s32.totalorder %s12, 3
    %p192 = pnand %p190, %p191
    %p193 = pneg %p192
    // Predicated region
    $region33: #{fae_graphconv_forward.6} parent=5 // pred_check
      _
    $region34: #{fae_graphconv_forward.6} parent=5 // pred_check_branch
      %195 = sbr.rel (%p192) target = $region36
    $region35: #{fae_graphconv_forward.6} parent=5 // pred_region
      %s196 = ssub.s32 %s12, 1
      %s197 = smul.u32 16, %s17
      %p198 = scmp.lt.s32.totalorder %s197, 31
      %s199 = scalar_select %p198, %s197, 31
      %s200 = smul.addr %s199, 8
      %s201 = scalar_lea.vmem %s0, %s200
      %p202 = pneg %p38
      %p203 = pneg %p35
      %p204 = pneg %p59
      %p205 = pneg %p56
      %p206 = pneg %p80
      %p207 = pneg %p77
      %p208 = pneg %p101
      %p209 = pneg %p98
      %p210 = pneg %p127
      %p211 = pneg %p124
      %s212 = smul.u32 16, %s17
      %p213 = scmp.lt.s32.totalorder %s212, 31
      %s214 = scalar_select %p213, %s212, 31
      %s215 = smul.addr %s214, 8
      %s216 = scalar_lea.vmem %s4, %s215
      %p217 = pneg %p153
      %p218 = pneg %p150
      %s219 = smul.u32 16, %s17
      %p220 = scmp.lt.s32.totalorder %s219, 31
      %s221 = scalar_select %p220, %s219, 31
      %s222 = smul.addr %s221, 8
      %s223 = scalar_lea.vmem %s5, %s222
      %s224 = smul.u32 16, %s17
      %p225 = scmp.lt.s32.totalorder %s224, 31
      %s226 = scalar_select %p225, %s224, 31
      %s227 = smul.addr %s226, 8
      %s228 = scalar_lea.vmem %s0, %s227
      %s229 = smul.u32 16, %s17
      %s230 = smul.u32 16, %s17
      %p231 = scmp.lt.s32.totalorder %s230, 31
      %s232 = scalar_select %p231, %s230, 31
      %s233 = smul.addr %s232, 8
      %s234 = scalar_lea.vmem %s4, %s233
      %s235 = smul.u32 16, %s17
      %s236 = smul.u32 16, %s17
      %p237 = scmp.lt.s32.totalorder %s236, 31
      %s238 = scalar_select %p237, %s236, 31
      %s239 = smul.addr %s238, 8
      %s240 = scalar_lea.vmem %s5, %s239
      %s241 = smul.u32 16, %s17
      %v242 = vld [vmem:[%s228] sm:$0xff]
      %v243 = vld [vmem:[%s228 + $0x8] sm:$0xff]
      %v244 = vld [vmem:[%s228 + $0x10] sm:$0xff]
      %v245 = vld [vmem:[%s228 + $0x18] sm:$0xff]
      %v246 = vld [vmem:[%s228 + $0x20] sm:$0xff]
      %v247 = vld [vmem:[%s228 + $0x28] sm:$0xff]
      %v248 = vld [vmem:[%s228 + $0x30] sm:$0xff]
      %v249 = vld [vmem:[%s228 + $0x38] sm:$0xff]
      %v250 = vld [vmem:[%s228 + $0x40] sm:$0xff]
      %v251 = vld [vmem:[%s228 + $0x48] sm:$0xff]
      %v252 = vld [vmem:[%s228 + $0x50] sm:$0xff]
      %v253 = vld [vmem:[%s228 + $0x58] sm:$0xff]
      %v254 = vld [vmem:[%s228 + $0x60] sm:$0xff]
      %v255 = vld [vmem:[%s228 + $0x68] sm:$0xff]
      %v256 = vld [vmem:[%s228 + $0x70] sm:$0xff]
      %v257 = vld [vmem:[%s228 + $0x78] sm:$0xff]
      %v258 = vld [vmem:[%s1] sm:$0xff]
      %v259 = vld [vmem:[%s1 + $0x8] sm:$0xff]
      %v260 = vld [vmem:[%s1 + $0x10] sm:$0xff]
      %v261 = vld [vmem:[%s1 + $0x18] sm:$0xff]
      %v262 = vld [vmem:[%s1 + $0x20] sm:$0xff]
      %v263 = vld [vmem:[%s1 + $0x28] sm:$0xff]
      %v264 = vld [vmem:[%s1 + $0x30] sm:$0xff]
      %v265 = vld [vmem:[%s1 + $0x38] sm:$0xff]
      %vm266 = vcmask 523264
      %v268 = vsel %vm266, %v242, 0
      %v271 = vsel %vm266, %v243, 0
      %v274 = vsel %vm266, %v244, 0
      %v277 = vsel %vm266, %v245, 0
      %v280 = vsel %vm266, %v246, 0
      %v283 = vsel %vm266, %v247, 0
      %v286 = vsel %vm266, %v248, 0
      %v289 = vsel %vm266, %v249, 0
      %v292 = vsel %vm266, %v250, 0
      %v295 = vsel %vm266, %v251, 0
      %v298 = vsel %vm266, %v252, 0
      %v301 = vsel %vm266, %v253, 0
      %v304 = vsel %vm266, %v254, 0
      %v307 = vsel %vm266, %v255, 0
      %v310 = vsel %vm266, %v256, 0
      %v313 = vsel %vm266, %v257, 0
      %315 = vmatprep.subr.mxu0 0.0
      %316 = vmatpush1.msra.mxu0 0.0
      %317 = vmatprep.subr.mxu0 0.0
      %318 = vmatpush1.msra.mxu0 0.0
      %319 = vmatprep.subr.mxu0 0.0
      %320 = vmatpush1.msra.mxu0 0.0
      %321 = vmatprep.subr.mxu0 0.0
      %322 = vmatpush1.msra.mxu0 0.0
      %323 = vmatprep.subr.mxu0 0.0
      %324 = vmatpush1.msra.mxu0 0.0
      %325 = vmatprep.subr.mxu0 0.0
      %326 = vmatpush1.msra.mxu0 0.0
      %327 = vmatprep.subr.mxu0 0.0
      %328 = vmatpush1.msra.mxu0 0.0
      %329 = vmatprep.subr.mxu0 0.0
      %330 = vmatpush1.msra.mxu0 0.0
      %331 = vmatprep.subr.mxu0 0.0
      %332 = vmatpush1.msra.mxu0 %v265
      %333 = vmatprep.subr.mxu0 0.0
      %334 = vmatpush1.msra.mxu0 %v264
      %335 = vmatprep.subr.mxu0 0.0
      %336 = vmatpush1.msra.mxu0 %v263
      %337 = vmatprep.subr.mxu0 0.0
      %338 = vmatpush1.msra.mxu0 %v262
      %339 = vmatprep.subr.mxu0 0.0
      %340 = vmatpush1.msra.mxu0 %v261
      %341 = vmatprep.subr.mxu0 0.0
      %342 = vmatpush1.msra.mxu0 %v260
      %343 = vmatprep.subr.mxu0 0.0
      %344 = vmatpush1.msra.mxu0 %v259
      %345 = vmatprep.subr.mxu0 0.0
      %346 = vmatpush1.msra.mxu0 %v258
      %347 = vmatprep.subr.mxu0 0.0
      %348 = vmatpush2.msra.mxu0 0.0
      %349 = vmatprep.subr.mxu0 0.0
      %350 = vmatpush2.msra.mxu0 0.0
      %351 = vmatprep.subr.mxu0 0.0
      %352 = vmatpush2.msra.mxu0 0.0
      %353 = vmatprep.subr.mxu0 0.0
      %354 = vmatpush2.msra.mxu0 0.0
      %355 = vmatprep.subr.mxu0 0.0
      %356 = vmatpush2.msra.mxu0 0.0
      %357 = vmatprep.subr.mxu0 0.0
      %358 = vmatpush2.msra.mxu0 0.0
      %359 = vmatprep.subr.mxu0 0.0
      %360 = vmatpush2.msra.mxu0 0.0
      %361 = vmatprep.subr.mxu0 0.0
      %362 = vmatpush2.msra.mxu0 0.0
      %363 = vmatprep.subr.mxu0 0.0
      %364 = vmatpush2.msra.mxu0 0.0
      %365 = vmatprep.subr.mxu0 0.0
      %366 = vmatpush2.msra.mxu0 0.0
      %367 = vmatprep.subr.mxu0 0.0
      %368 = vmatpush2.msra.mxu0 0.0
      %369 = vmatprep.subr.mxu0 0.0
      %370 = vmatpush2.msra.mxu0 0.0
      %371 = vmatprep.subr.mxu0 0.0
      %372 = vmatpush2.msra.mxu0 0.0
      %373 = vmatprep.subr.mxu0 0.0
      %374 = vmatpush2.msra.mxu0 0.0
      %375 = vmatprep.subr.mxu0 0.0
      %376 = vmatpush2.msra.mxu0 0.0
      %377 = vmatprep.subr.mxu0 0.0
      %378 = vmatpush2.msra.mxu0 0.0
      %379 = vmatprep.mubr.f32.mxu0 0.0
      %380 = vmatmul.mubr.f32.gmra.mxu0 %v268
      %v381 = vpop.f32.mrf.mxu0
      %v382 = vadd.f32 0.0, %v381
      %v383 = vpop.f32.mrf.mxu0
      %384 = vmatprep.mubr.f32.mxu0 0.0
      %385 = vmatmul.mubr.f32.gmra.mxu0 %v271
      %v386 = vpop.f32.mrf.mxu0
      %v387 = vadd.f32 0.0, %v386
      %v388 = vpop.f32.mrf.mxu0
      %389 = vmatprep.mubr.f32.mxu0 0.0
      %390 = vmatmul.mubr.f32.gmra.mxu0 %v274
      %v391 = vpop.f32.mrf.mxu0
      %v392 = vadd.f32 0.0, %v391
      %v393 = vpop.f32.mrf.mxu0
      %394 = vmatprep.mubr.f32.mxu0 0.0
      %395 = vmatmul.mubr.f32.gmra.mxu0 %v277
      %v396 = vpop.f32.mrf.mxu0
      %v397 = vadd.f32 0.0, %v396
      %v398 = vpop.f32.mrf.mxu0
      %399 = vmatprep.mubr.f32.mxu0 0.0
      %400 = vmatmul.mubr.f32.gmra.mxu0 %v280
      %v401 = vpop.f32.mrf.mxu0
      %v402 = vadd.f32 0.0, %v401
      %v403 = vpop.f32.mrf.mxu0
      %404 = vmatprep.mubr.f32.mxu0 0.0
      %405 = vmatmul.mubr.f32.gmra.mxu0 %v283
      %v406 = vpop.f32.mrf.mxu0
      %v407 = vadd.f32 0.0, %v406
      %v408 = vpop.f32.mrf.mxu0
      %409 = vmatprep.mubr.f32.mxu0 0.0
      %410 = vmatmul.mubr.f32.gmra.mxu0 %v286
      %v411 = vpop.f32.mrf.mxu0
      %v412 = vadd.f32 0.0, %v411
      %v413 = vpop.f32.mrf.mxu0
      %414 = vmatprep.mubr.f32.mxu0 0.0
      %415 = vmatmul.mubr.f32.gmra.mxu0 %v289
      %v416 = vpop.f32.mrf.mxu0
      %v417 = vadd.f32 0.0, %v416
      %v418 = vpop.f32.mrf.mxu0
      %419 = vmatprep.mubr.f32.mxu0 0.0
      %420 = vmatmul.mubr.f32.gmra.mxu0 %v292
      %v421 = vpop.f32.mrf.mxu0
      %v422 = vadd.f32 0.0, %v421
      %v423 = vpop.f32.mrf.mxu0
      %424 = vmatprep.mubr.f32.mxu0 0.0
      %425 = vmatmul.mubr.f32.gmra.mxu0 %v295
      %v426 = vpop.f32.mrf.mxu0
      %v427 = vadd.f32 0.0, %v426
      %v428 = vpop.f32.mrf.mxu0
      %429 = vmatprep.mubr.f32.mxu0 0.0
      %430 = vmatmul.mubr.f32.gmra.mxu0 %v298
      %v431 = vpop.f32.mrf.mxu0
      %v432 = vadd.f32 0.0, %v431
      %v433 = vpop.f32.mrf.mxu0
      %434 = vmatprep.mubr.f32.mxu0 0.0
      %435 = vmatmul.mubr.f32.gmra.mxu0 %v301
      %v436 = vpop.f32.mrf.mxu0
      %v437 = vadd.f32 0.0, %v436
      %v438 = vpop.f32.mrf.mxu0
      %439 = vmatprep.mubr.f32.mxu0 0.0
      %440 = vmatmul.mubr.f32.gmra.mxu0 %v304
      %v441 = vpop.f32.mrf.mxu0
      %v442 = vadd.f32 0.0, %v441
      %v443 = vpop.f32.mrf.mxu0
      %444 = vmatprep.mubr.f32.mxu0 0.0
      %445 = vmatmul.mubr.f32.gmra.mxu0 %v307
      %v446 = vpop.f32.mrf.mxu0
      %v447 = vadd.f32 0.0, %v446
      %v448 = vpop.f32.mrf.mxu0
      %449 = vmatprep.mubr.f32.mxu0 0.0
      %450 = vmatmul.mubr.f32.gmra.mxu0 %v310
      %v451 = vpop.f32.mrf.mxu0
      %v452 = vadd.f32 0.0, %v451
      %v453 = vpop.f32.mrf.mxu0
      %454 = vmatprep.mubr.f32.mxu0 0.0
      %455 = vmatmul.mubr.f32.gmra.mxu0 %v313
      %v456 = vpop.f32.mrf.mxu0
      %v457 = vadd.f32 0.0, %v456
      %v458 = vpop.f32.mrf.mxu0
      %459 = vdwg.mxu0
      %vm460 = vcmask 261120
      %461 = vst.msk [vmem:[%s234] sm:$0xff] %vm460, %v382
      %462 = vst.msk [vmem:[%s234 + $0x8] sm:$0xff] %vm460, %v387
      %463 = vst.msk [vmem:[%s234 + $0x10] sm:$0xff] %vm460, %v392
      %464 = vst.msk [vmem:[%s234 + $0x18] sm:$0xff] %vm460, %v397
      %465 = vst.msk [vmem:[%s234 + $0x20] sm:$0xff] %vm460, %v402
      %466 = vst.msk [vmem:[%s234 + $0x28] sm:$0xff] %vm460, %v407
      %467 = vst.msk [vmem:[%s234 + $0x30] sm:$0xff] %vm460, %v412
      %468 = vst.msk [vmem:[%s234 + $0x38] sm:$0xff] %vm460, %v417
      %469 = vst.msk [vmem:[%s234 + $0x40] sm:$0xff] %vm460, %v422
      %470 = vst.msk [vmem:[%s234 + $0x48] sm:$0xff] %vm460, %v427
      %471 = vst.msk [vmem:[%s234 + $0x50] sm:$0xff] %vm460, %v432
      %472 = vst.msk [vmem:[%s234 + $0x58] sm:$0xff] %vm460, %v437
      %473 = vst.msk [vmem:[%s234 + $0x60] sm:$0xff] %vm460, %v442
      %474 = vst.msk [vmem:[%s234 + $0x68] sm:$0xff] %vm460, %v447
      %475 = vst.msk [vmem:[%s234 + $0x70] sm:$0xff] %vm460, %v452
      %476 = vst.msk [vmem:[%s234 + $0x78] sm:$0xff] %vm460, %v457
      %v477 = vld [vmem:[%s2] sm:$0xff]
      %v478 = vld [vmem:[%s2 + $0x8] sm:$0xff]
      %v479 = vld [vmem:[%s2 + $0x10] sm:$0xff]
      %v480 = vld [vmem:[%s2 + $0x18] sm:$0xff]
      %v481 = vld [vmem:[%s2 + $0x20] sm:$0xff]
      %v482 = vld [vmem:[%s2 + $0x28] sm:$0xff]
      %v483 = vld [vmem:[%s2 + $0x30] sm:$0xff]
      %v484 = vld [vmem:[%s2 + $0x38] sm:$0xff]
      %v485 = vld [vmem:[%s3] sm:$0x1]
      %v487 = vlaneseq
      %v488 = vshrl.u32 %v487, 7
      %v489 = vsub.s32 0, %v488
      %v490 = vrot.slane %v485, %v489
      %492 = vmatprep.subr.mxu0 0.0
      %493 = vmatpush1.msra.mxu0 0.0
      %494 = vmatprep.subr.mxu0 0.0
      %495 = vmatpush1.msra.mxu0 0.0
      %496 = vmatprep.subr.mxu0 0.0
      %497 = vmatpush1.msra.mxu0 0.0
      %498 = vmatprep.subr.mxu0 0.0
      %499 = vmatpush1.msra.mxu0 0.0
      %500 = vmatprep.subr.mxu0 0.0
      %501 = vmatpush1.msra.mxu0 0.0
      %502 = vmatprep.subr.mxu0 0.0
      %503 = vmatpush1.msra.mxu0 0.0
      %504 = vmatprep.subr.mxu0 0.0
      %505 = vmatpush1.msra.mxu0 0.0
      %506 = vmatprep.subr.mxu0 0.0
      %507 = vmatpush1.msra.mxu0 0.0
      %508 = vmatprep.subr.mxu0 0.0
      %509 = vmatpush1.msra.mxu0 %v484
      %510 = vmatprep.subr.mxu0 0.0
      %511 = vmatpush1.msra.mxu0 %v483
      %512 = vmatprep.subr.mxu0 0.0
      %513 = vmatpush1.msra.mxu0 %v482
      %514 = vmatprep.subr.mxu0 0.0
      %515 = vmatpush1.msra.mxu0 %v481
      %516 = vmatprep.subr.mxu0 0.0
      %517 = vmatpush1.msra.mxu0 %v480
      %518 = vmatprep.subr.mxu0 0.0
      %519 = vmatpush1.msra.mxu0 %v479
      %520 = vmatprep.subr.mxu0 0.0
      %521 = vmatpush1.msra.mxu0 %v478
      %522 = vmatprep.subr.mxu0 0.0
      %523 = vmatpush1.msra.mxu0 %v477
      %524 = vmatprep.subr.mxu0 0.0
      %525 = vmatpush2.msra.mxu0 0.0
      %526 = vmatprep.subr.mxu0 0.0
      %527 = vmatpush2.msra.mxu0 0.0
      %528 = vmatprep.subr.mxu0 0.0
      %529 = vmatpush2.msra.mxu0 0.0
      %530 = vmatprep.subr.mxu0 0.0
      %531 = vmatpush2.msra.mxu0 0.0
      %532 = vmatprep.subr.mxu0 0.0
      %533 = vmatpush2.msra.mxu0 0.0
      %534 = vmatprep.subr.mxu0 0.0
      %535 = vmatpush2.msra.mxu0 0.0
      %536 = vmatprep.subr.mxu0 0.0
      %537 = vmatpush2.msra.mxu0 0.0
      %538 = vmatprep.subr.mxu0 0.0
      %539 = vmatpush2.msra.mxu0 0.0
      %540 = vmatprep.subr.mxu0 0.0
      %541 = vmatpush2.msra.mxu0 0.0
      %542 = vmatprep.subr.mxu0 0.0
      %543 = vmatpush2.msra.mxu0 0.0
      %544 = vmatprep.subr.mxu0 0.0
      %545 = vmatpush2.msra.mxu0 0.0
      %546 = vmatprep.subr.mxu0 0.0
      %547 = vmatpush2.msra.mxu0 0.0
      %548 = vmatprep.subr.mxu0 0.0
      %549 = vmatpush2.msra.mxu0 0.0
      %550 = vmatprep.subr.mxu0 0.0
      %551 = vmatpush2.msra.mxu0 0.0
      %552 = vmatprep.subr.mxu0 0.0
      %553 = vmatpush2.msra.mxu0 0.0
      %554 = vmatprep.subr.mxu0 0.0
      %555 = vmatpush2.msra.mxu0 0.0
      %556 = vmatprep.mubr.f32.mxu0 0.0
      %557 = vmatmul.mubr.f32.gmra.mxu0 %v268
      %v558 = vpop.f32.mrf.mxu0
      %v559 = vadd.f32 %v490, %v558
      %v560 = vpop.f32.mrf.mxu0
      %561 = vmatprep.mubr.f32.mxu0 0.0
      %562 = vmatmul.mubr.f32.gmra.mxu0 %v271
      %v563 = vpop.f32.mrf.mxu0
      %v564 = vadd.f32 %v490, %v563
      %v565 = vpop.f32.mrf.mxu0
      %566 = vmatprep.mubr.f32.mxu0 0.0
      %567 = vmatmul.mubr.f32.gmra.mxu0 %v274
      %v568 = vpop.f32.mrf.mxu0
      %v569 = vadd.f32 %v490, %v568
      %v570 = vpop.f32.mrf.mxu0
      %571 = vmatprep.mubr.f32.mxu0 0.0
      %572 = vmatmul.mubr.f32.gmra.mxu0 %v277
      %v573 = vpop.f32.mrf.mxu0
      %v574 = vadd.f32 %v490, %v573
      %v575 = vpop.f32.mrf.mxu0
      %576 = vmatprep.mubr.f32.mxu0 0.0
      %577 = vmatmul.mubr.f32.gmra.mxu0 %v280
      %v578 = vpop.f32.mrf.mxu0
      %v579 = vadd.f32 %v490, %v578
      %v580 = vpop.f32.mrf.mxu0
      %581 = vmatprep.mubr.f32.mxu0 0.0
      %582 = vmatmul.mubr.f32.gmra.mxu0 %v283
      %v583 = vpop.f32.mrf.mxu0
      %v584 = vadd.f32 %v490, %v583
      %v585 = vpop.f32.mrf.mxu0
      %586 = vmatprep.mubr.f32.mxu0 0.0
      %587 = vmatmul.mubr.f32.gmra.mxu0 %v286
      %v588 = vpop.f32.mrf.mxu0
      %v589 = vadd.f32 %v490, %v588
      %v590 = vpop.f32.mrf.mxu0
      %591 = vmatprep.mubr.f32.mxu0 0.0
      %592 = vmatmul.mubr.f32.gmra.mxu0 %v289
      %v593 = vpop.f32.mrf.mxu0
      %v594 = vadd.f32 %v490, %v593
      %v595 = vpop.f32.mrf.mxu0
      %596 = vmatprep.mubr.f32.mxu0 0.0
      %597 = vmatmul.mubr.f32.gmra.mxu0 %v292
      %v598 = vpop.f32.mrf.mxu0
      %v599 = vadd.f32 %v490, %v598
      %v600 = vpop.f32.mrf.mxu0
      %601 = vmatprep.mubr.f32.mxu0 0.0
      %602 = vmatmul.mubr.f32.gmra.mxu0 %v295
      %v603 = vpop.f32.mrf.mxu0
      %v604 = vadd.f32 %v490, %v603
      %v605 = vpop.f32.mrf.mxu0
      %606 = vmatprep.mubr.f32.mxu0 0.0
      %607 = vmatmul.mubr.f32.gmra.mxu0 %v298
      %v608 = vpop.f32.mrf.mxu0
      %v609 = vadd.f32 %v490, %v608
      %v610 = vpop.f32.mrf.mxu0
      %611 = vmatprep.mubr.f32.mxu0 0.0
      %612 = vmatmul.mubr.f32.gmra.mxu0 %v301
      %v613 = vpop.f32.mrf.mxu0
      %v614 = vadd.f32 %v490, %v613
      %v615 = vpop.f32.mrf.mxu0
      %616 = vmatprep.mubr.f32.mxu0 0.0
      %617 = vmatmul.mubr.f32.gmra.mxu0 %v304
      %v618 = vpop.f32.mrf.mxu0
      %v619 = vadd.f32 %v490, %v618
      %v620 = vpop.f32.mrf.mxu0
      %621 = vmatprep.mubr.f32.mxu0 0.0
      %622 = vmatmul.mubr.f32.gmra.mxu0 %v307
      %v623 = vpop.f32.mrf.mxu0
      %v624 = vadd.f32 %v490, %v623
      %v625 = vpop.f32.mrf.mxu0
      %626 = vmatprep.mubr.f32.mxu0 0.0
      %627 = vmatmul.mubr.f32.gmra.mxu0 %v310
      %v628 = vpop.f32.mrf.mxu0
      %v629 = vadd.f32 %v490, %v628
      %v630 = vpop.f32.mrf.mxu0
      %631 = vmatprep.mubr.f32.mxu0 0.0
      %632 = vmatmul.mubr.f32.gmra.mxu0 %v313
      %v633 = vpop.f32.mrf.mxu0
      %v634 = vadd.f32 %v490, %v633
      %v635 = vpop.f32.mrf.mxu0
      %636 = vdwg.mxu0
      %637 = vst.msk [vmem:[%s240] sm:$0xff] %vm460, %v559
      %638 = vst.msk [vmem:[%s240 + $0x8] sm:$0xff] %vm460, %v564
      %639 = vst.msk [vmem:[%s240 + $0x10] sm:$0xff] %vm460, %v569
      %640 = vst.msk [vmem:[%s240 + $0x18] sm:$0xff] %vm460, %v574
      %641 = vst.msk [vmem:[%s240 + $0x20] sm:$0xff] %vm460, %v579
      %642 = vst.msk [vmem:[%s240 + $0x28] sm:$0xff] %vm460, %v584
      %643 = vst.msk [vmem:[%s240 + $0x30] sm:$0xff] %vm460, %v589
      %644 = vst.msk [vmem:[%s240 + $0x38] sm:$0xff] %vm460, %v594
      %645 = vst.msk [vmem:[%s240 + $0x40] sm:$0xff] %vm460, %v599
      %646 = vst.msk [vmem:[%s240 + $0x48] sm:$0xff] %vm460, %v604
      %647 = vst.msk [vmem:[%s240 + $0x50] sm:$0xff] %vm460, %v609
      %648 = vst.msk [vmem:[%s240 + $0x58] sm:$0xff] %vm460, %v614
      %649 = vst.msk [vmem:[%s240 + $0x60] sm:$0xff] %vm460, %v619
      %650 = vst.msk [vmem:[%s240 + $0x68] sm:$0xff] %vm460, %v624
      %651 = vst.msk [vmem:[%s240 + $0x70] sm:$0xff] %vm460, %v629
      %652 = vst.msk [vmem:[%s240 + $0x78] sm:$0xff] %vm460, %v634
      %s653 = smul.u32 16, %s17
      %p654 = scmp.lt.s32.totalorder %s653, 31
      %s655 = scalar_select %p654, %s653, 31
      %s656 = smul.addr %s655, 8
      %s657 = scalar_lea.vmem %s4, %s656
      %s658 = smul.u32 16, %s17
      %p659 = scmp.lt.s32.totalorder %s658, 31
      %s660 = scalar_select %p659, %s658, 31
      %s661 = smul.addr %s660, 8
      %s662 = scalar_lea.vmem %s5, %s661
      // Predicated region
      $region37: #{fae_graphconv_forward.6} parent=35 // pred_check
        %p663 = pneg %p124
      $region38: #{fae_graphconv_forward.6} parent=35 // pred_check_branch
        %665 = sbr.rel (%p663) target = $region40
      $region39: #{fae_graphconv_forward.6} parent=35 // pred_region
        %s666 = smul.u32 16, %s17
      $region40: #{fae_graphconv_forward.6} parent=35 // pred_fallthru
        _
      // Predicated region
      $region41: #{fae_graphconv_forward.6} parent=35 // pred_check
        %p667 = pneg %p150
      $region42: #{fae_graphconv_forward.6} parent=35 // pred_check_branch
        %669 = sbr.rel (%p667) target = $region44
      $region43: #{fae_graphconv_forward.6} parent=35 // pred_region
        %s670 = smul.u32 16, %s17
      $region44: #{fae_graphconv_forward.6} parent=35 // pred_fallthru
        _
    $region36: #{fae_graphconv_forward.6} parent=5 // pred_fallthru
      _
    %p671 = scmp.le.s32.totalorder 2, %s12
    // Predicated region
    $region45: #{fae_graphconv_forward.6} parent=5 // pred_check
      %p672 = pneg %p671
    $region46: #{fae_graphconv_forward.6} parent=5 // pred_check_branch
      %674 = sbr.rel (%p672) target = $region48
    $region47: #{fae_graphconv_forward.6} parent=5 // pred_region
      %s675 = ssub.s32 %s12, 2
      // Predicated region
      $region49: #{fae_graphconv_forward.6} parent=47 // pred_check
        %p676 = pneg %p130
      $region50: #{fae_graphconv_forward.6} parent=47 // pred_check_branch
        %678 = sbr.rel (%p676) target = $region52
      $region51: #{fae_graphconv_forward.6} parent=47 // pred_region
        %s679 = smul.u32 16, %s18
        %p680 = scmp.lt.s32.totalorder %s679, 31
        %s681 = scalar_select %p680, %s679, 31
        %s682 = smul.addr %s681, 8
        %s683 = scalar_lea.vmem %s4, %s682
      $region52: #{fae_graphconv_forward.6} parent=47 // pred_fallthru
        _
      // Predicated region
      $region53: #{fae_graphconv_forward.6} parent=47 // pred_check
        %p684 = pneg %p156
      $region54: #{fae_graphconv_forward.6} parent=47 // pred_check_branch
        %686 = sbr.rel (%p684) target = $region56
      $region55: #{fae_graphconv_forward.6} parent=47 // pred_region
        %s687 = smul.u32 16, %s18
        %p688 = scmp.lt.s32.totalorder %s687, 31
        %s689 = scalar_select %p688, %s687, 31
        %s690 = smul.addr %s689, 8
        %s691 = scalar_lea.vmem %s5, %s690
      $region56: #{fae_graphconv_forward.6} parent=47 // pred_fallthru
        _
    $region48: #{fae_graphconv_forward.6} parent=5 // pred_fallthru
      _
  $region6: #{fae_graphconv_forward.6} parent=0 // loop_footer
    %s16 = sadd.s32 1, %s12
  $region7: #{fae_graphconv_forward.6} parent=0 // loop_footer_branch
    %11 = sbr.rel target = $region3
  $region8: #{fae_graphconv_forward.6} parent=0 // loop_exit
    _

</llo_original>
